<compile_context>
chip_gen: v5e
topology: v5e:2x2
jax: 0.10.0
libtpu: 0.0.40
codegen_flags: <defaults>
</compile_context>

<pallas_src>
import jax
import jax.numpy as jnp
from jax import lax
from jax.experimental import pallas as pl
from jax.experimental.pallas import tpu as pltpu

LANE = 128
EX_DTYPE = jnp.bfloat16   # expanded-activation scratch dtype (prefer f32 on v5e)


def _round_up(x, m):
    return (x + m - 1) // m * m


def fold_bn(gamma, beta, mean, var, eps=1e-5):
    scale = gamma / jnp.sqrt(var + eps)
    bias = beta - mean * scale
    return scale, bias


def _pick_nb(n, ho, wo):
    """Images per grid step: keep the matmul M dimension >= ~256 rows."""
    if ho * wo >= 256 or n <= 1:
        return 1
    nb = min(n, -(-256 // (ho * wo)))
    while n % nb:
        nb -= 1
    return max(nb, 1)


def _pick_te(ep, has_exp, nb, h, w):
    """E-channel tile width.  256 feeds the v6e/v7x MXU natively; gate on the
    expanded-activation scratch size so v7x (64 MiB physical VMEM) stays safe."""
    if not has_exp:
        return ep
    ex_bytes_256 = nb * (h + 2) * (w + 2) * 256 * jnp.dtype(EX_DTYPE).itemsize
    if ep % 256 == 0 and ex_bytes_256 <= 4 * 2**20:
        return 256
    return 128


# ----------------------------------------------------------------------------
# Fused InvertedResidual kernel
#   grid = (N//NB, nE):  batch-tile axis -> "parallel"
#                        E-tile axis     -> "arbitrary" (projection accumulates)
# ----------------------------------------------------------------------------
def _make_block_kernel(*, stride, NB, H, W, Ho, Wo, TE, has_exp, residual,
                       nE, ex_dtype):
    Hp, Wp = H + 2, W + 2

    def compute(x_ref, wexp_ref, bexp_ref, wdw_ref, bdw_ref, wproj_ref,
                bproj_ref, o_ref, ex_ref, acc_ref):
        e = pl.program_id(1)

        # Zero the 1-pixel halo of the expanded-activation scratch once per
        # batch step (e == 0); the interior store below never touches it, so
        # re-zeroing on every E tile is redundant.  Gated only on the
        # "arbitrary" axis so it stays correct if the "parallel" batch axis is
        # ever sharded across TensorCores with per-core scratch.
        @pl.when(e == 0)
        def _zero_halo():
            zrow = jnp.zeros((NB, 1, Wp, TE), ex_dtype)
            ex_ref[:, 0:1, :, :] = zrow
            ex_ref[:, Hp - 1:Hp, :, :] = zrow
            zcol = jnp.zeros((NB, Hp, 1, TE), ex_dtype)
            ex_ref[:, :, 0:1, :] = zcol
            ex_ref[:, :, Wp - 1:Wp, :] = zcol

        xv = x_ref[...]                                    # (NB, H, W, Cip) bf16

        # ---- 1x1 expansion conv (BN scale folded into weights) + ReLU6 ------
        if has_exp:
            h = jnp.dot(xv.reshape(NB * H * W, xv.shape[-1]), wexp_ref[...],
                        preferred_element_type=jnp.float32)      # (NB*H*W, TE)
            h = jnp.clip(h + bexp_ref[...], 0.0, 6.0)
            ex_ref[:, 1:H + 1, 1:W + 1, :] = h.reshape(NB, H, W, TE).astype(ex_dtype)
        else:
            ex_ref[:, 1:H + 1, 1:W + 1, :] = xv.astype(ex_dtype)

        # ---- 3x3 depthwise conv (stride 1/2), folded BN + ReLU6 -------------
        # TODO(synk): generate the kw shifts with pltpu.roll + de-interleave
        #             even/odd W planes for stride 2 to avoid sublane relayouts.
        wdw = wdw_ref[...]                                 # (3, 3, TE) f32 (hoisted)
        bdw = bdw_ref[...]                                 # (1, TE)    f32 (hoisted)
        acc = jnp.zeros((NB, Ho, Wo, TE), jnp.float32)
        for kh in range(3):
            for kw in range(3):
                if stride == 1:
                    patch = ex_ref[:, kh:kh + Ho, kw:kw + Wo, :]
                else:
                    patch = ex_ref[:, pl.ds(kh, Ho, stride=stride),
                                   pl.ds(kw, Wo, stride=stride), :]
                acc = acc + patch.astype(jnp.float32) * wdw[kh, kw, :]
        y = jnp.clip(acc + bdw, 0.0, 6.0)                  # (NB, Ho, Wo, TE)
        y2d = y.reshape(NB * Ho * Wo, TE).astype(jnp.bfloat16)

        # ---- 1x1 projection conv (+ folded BN bias, + residual) -------------
        if nE == 1:
            # Whole expanded width in one tile: no accumulator RMW needed.
            out = jnp.dot(y2d, wproj_ref[...],
                          preferred_element_type=jnp.float32) + bproj_ref[...]
            if residual:
                out = out + xv.reshape(NB * Ho * Wo, xv.shape[-1]).astype(jnp.float32)
            o_ref[...] = out.reshape(NB, Ho, Wo, out.shape[-1]).astype(o_ref.dtype)
        else:
            @pl.when(e == 0)
            def _init():
                acc_ref[...] = jnp.zeros_like(acc_ref)

            acc_ref[...] += jnp.dot(y2d, wproj_ref[...],
                                    preferred_element_type=jnp.float32)

            @pl.when(e == pl.num_programs(1) - 1)
            def _finalize():
                out = acc_ref[...] + bproj_ref[...]
                if residual:
                    out = out + xv.reshape(NB * Ho * Wo,
                                           xv.shape[-1]).astype(jnp.float32)
                o_ref[...] = out.reshape(NB, Ho, Wo,
                                         out.shape[-1]).astype(o_ref.dtype)

    if has_exp and nE > 1:
        def kernel(x, we, be, wd, bd, wp, bp, o, ex, acc):
            compute(x, we, be, wd, bd, wp, bp, o, ex, acc)
    elif has_exp:
        def kernel(x, we, be, wd, bd, wp, bp, o, ex):
            compute(x, we, be, wd, bd, wp, bp, o, ex, None)
    elif nE > 1:
        def kernel(x, wd, bd, wp, bp, o, ex, acc):
            compute(x, None, None, wd, bd, wp, bp, o, ex, acc)
    else:
        def kernel(x, wd, bd, wp, bp, o, ex):
            compute(x, None, None, wd, bd, wp, bp, o, ex, None)
    return kernel


# ----------------------------------------------------------------------------
# Per-layer weight prep (run once, cache) and the padded-layout entry point.
# ----------------------------------------------------------------------------
def prepare_block_params(params, *, cin, cout, stride, expansion_ratio):
    """BN-fold, channel-pad and bf16-cast the block weights once per layer."""
    assert stride in (1, 2)
    has_exp = expansion_ratio != 1
    E = cin * expansion_ratio
    Cip, Ep, Cop = _round_up(cin, LANE), _round_up(E, LANE), _round_up(cout, LANE)
    residual = (stride == 1) and (cin == cout)
    if residual:
        assert Cip == Cop   # residual reuses the resident padded x block
    if not has_exp:
        assert Ep == Cip

    f32, bf16 = jnp.float32, jnp.bfloat16
    prep = dict(cin=cin, cout=cout, E=E, Cip=Cip, Ep=Ep, Cop=Cop, stride=stride,
                has_exp=has_exp, residual=residual)

    if has_exp:
        se, be = fold_bn(*params["bn_exp"])
        w_ex = params["w_exp"] * se[None, :]                       # (cin, E)
        prep["w_exp"] = jnp.zeros((Cip, Ep), f32).at[:cin, :E].set(w_ex).astype(bf16)
        prep["b_exp"] = jnp.zeros((1, Ep), f32).at[0, :E].set(be)

    sd, bd = fold_bn(*params["bn_dw"])
    w_dw = params["w_dw"] * sd[None, None, :]                      # (3, 3, E)
    prep["w_dw"] = jnp.zeros((3, 3, Ep), f32).at[:, :, :E].set(w_dw)
    prep["b_dw"] = jnp.zeros((1, Ep), f32).at[0, :E].set(bd)

    sp, bp = fold_bn(*params["bn_proj"])
    w_pr = params["w_proj"] * sp[None, :]                          # (E, cout)
    prep["w_proj"] = jnp.zeros((Ep, Cop), f32).at[:E, :cout].set(w_pr).astype(bf16)
    prep["b_proj"] = jnp.zeros((1, Cop), f32).at[0, :cout].set(bp)
    return prep


def inverted_residual_padded(x_p, prep):
    """Fused InvertedResidual on a channel-padded bf16 NHWC tensor.

    x_p: (N, H, W, Cip) bf16 with padded lanes zero.  Returns (N, Ho, Wo, Cop)
    bf16 with padded lanes zero, so blocks chain in padded layout with no HBM
    pad/slice copies between them (pad once at model entry, slice once at exit).
    """
    N, H, W, Cip = x_p.shape
    assert Cip == prep["Cip"] and x_p.dtype == jnp.bfloat16
    stride, Ep, Cop = prep["stride"], prep["Ep"], prep["Cop"]
    has_exp, residual = prep["has_exp"], prep["residual"]
    Ho = (H + 2 - 3) // stride + 1
    Wo = (W + 2 - 3) // stride + 1

    NB = _pick_nb(N, Ho, Wo)
    TE = _pick_te(Ep, has_exp, NB, H, W)
    assert Ep % TE == 0
    nE = Ep // TE

    args = [x_p]
    in_specs = [pl.BlockSpec((NB, H, W, Cip), lambda n, e: (n, 0, 0, 0))]
    if has_exp:
        args += [prep["w_exp"], prep["b_exp"]]
        in_specs += [pl.BlockSpec((Cip, TE), lambda n, e: (0, e)),
                     pl.BlockSpec((1, TE), lambda n, e: (0, e))]
    args += [prep["w_dw"], prep["b_dw"], prep["w_proj"], prep["b_proj"]]
    in_specs += [pl.BlockSpec((3, 3, TE), lambda n, e: (0, 0, e)),
                 pl.BlockSpec((1, TE), lambda n, e: (0, e)),
                 pl.BlockSpec((TE, Cop), lambda n, e: (e, 0)),
                 pl.BlockSpec((1, Cop), lambda n, e: (0, 0))]

    scratch = [pltpu.VMEM((NB, H + 2, W + 2, TE), EX_DTYPE)]  # expanded act + halo
    if nE > 1:
        scratch.append(pltpu.VMEM((NB * Ho * Wo, Cop), jnp.float32))  # proj accum

    kernel = _make_block_kernel(stride=stride, NB=NB, H=H, W=W, Ho=Ho, Wo=Wo,
                                TE=TE, has_exp=has_exp, residual=residual,
                                nE=nE, ex_dtype=EX_DTYPE)

    # Explicit VMEM budget: scratch + double-buffered blocks + headroom, so the
    # large early layers compile on v5e's 16 MiB scoped default and the tile
    # choices stay inside v7x's 64 MiB physical VMEM.
    ex_b = NB * (H + 2) * (W + 2) * TE * jnp.dtype(EX_DTYPE).itemsize
    acc_b = NB * Ho * Wo * Cop * 4 if nE > 1 else 0
    blk_b = NB * H * W * Cip * 2 + NB * Ho * Wo * Cop * 2
    wt_b = (Cip * TE * 2 if has_exp else 0) + 11 * TE * 4 + TE * Cop * 2 + Cop * 4
    vmem_limit = int(min(96 * 2**20,
                         max(2 * (ex_b + acc_b) + 3 * (blk_b + wt_b), 32 * 2**20)))

    E, cin, cout = prep["E"], prep["cin"], prep["cout"]
    flops = 2 * N * ((H * W * cin * E if has_exp else 0)
                     + 9 * Ho * Wo * E + Ho * Wo * E * cout)
    bytes_acc = (N * H * W * Cip + N * Ho * Wo * Cop) * 2 \
        + (Cip * Ep * 2 if has_exp else 0) + Ep * (4 + 36 + 4) + Ep * Cop * 2 + Cop * 4

    out = pl.pallas_call(
        kernel,
        out_shape=jax.ShapeDtypeStruct((N, Ho, Wo, Cop), jnp.bfloat16),
        grid=(N // NB, nE),
        in_specs=in_specs,
        out_specs=pl.BlockSpec((NB, Ho, Wo, Cop), lambda n, e: (n, 0, 0, 0)),
        scratch_shapes=scratch,
        compiler_params=pltpu.CompilerParams(
            dimension_semantics=("parallel", "arbitrary"),
            vmem_limit_bytes=vmem_limit),
        cost_estimate=pl.CostEstimate(flops=int(flops), transcendentals=0,
                                      bytes_accessed=int(bytes_acc)),
    )(*args)
    return out


def pad_channels_nhwc(x, c_padded):
    n, h, w, c = x.shape
    return jnp.pad(x.astype(jnp.bfloat16),
                   ((0, 0), (0, 0), (0, 0), (0, c_padded - c)))


def inverted_residual_nchw(x_nchw, prep):
    """PyTorch-layout convenience wrapper for a single block.  In a full
    network keep the channel-padded NHWC layout persistent across all blocks
    and pad/slice/transpose only once at the model boundary."""
    x = jnp.transpose(x_nchw, (0, 2, 3, 1))
    y_p = inverted_residual_padded(pad_channels_nhwc(x, prep["Cip"]), prep)
    y = y_p[..., :prep["cout"]]
    return jnp.transpose(y, (0, 3, 1, 2))


# ----------------------------------------------------------------------------
# Parameter setup & pure-JAX f32 reference (eval-mode BN) for self-check.
# ----------------------------------------------------------------------------
def init_params(key, cin, cout, expansion_ratio):
    E = cin * expansion_ratio
    ks = jax.random.split(key, 16)
    p = {}
    if expansion_ratio != 1:
        p["w_exp"] = jax.random.normal(ks[0], (cin, E), jnp.float32) * 0.2
        p["bn_exp"] = (1.0 + 0.1 * jax.random.normal(ks[1], (E,)),
                       0.1 * jax.random.normal(ks[2], (E,)),
                       0.1 * jax.random.normal(ks[3], (E,)),
                       1.0 + 0.1 * jnp.abs(jax.random.normal(ks[4], (E,))))
    p["w_dw"] = jax.random.normal(ks[5], (3, 3, E), jnp.float32) * 0.2
    p["bn_dw"] = (1.0 + 0.1 * jax.random.normal(ks[6], (E,)),
                  0.1 * jax.random.normal(ks[7], (E,)),
                  0.1 * jax.random.normal(ks[8], (E,)),
                  1.0 + 0.1 * jnp.abs(jax.random.normal(ks[9], (E,))))
    p["w_proj"] = jax.random.normal(ks[10], (E, cout), jnp.float32) * 0.2
    p["bn_proj"] = (1.0 + 0.1 * jax.random.normal(ks[11], (cout,)),
                    0.1 * jax.random.normal(ks[12], (cout,)),
                    0.1 * jax.random.normal(ks[13], (cout,)),
                    1.0 + 0.1 * jnp.abs(jax.random.normal(ks[14], (cout,))))
    return p


def reference(x_nchw, params, *, cin, cout, stride, expansion_ratio):
    h = x_nchw
    if expansion_ratio != 1:
        w = jnp.transpose(params["w_exp"], (1, 0))[:, :, None, None]   # OIHW
        h = lax.conv_general_dilated(h, w, (1, 1), "VALID",
                                     dimension_numbers=("NCHW", "OIHW", "NCHW"))
        s, b = fold_bn(*params["bn_exp"])
        h = jnp.clip(h * s[None, :, None, None] + b[None, :, None, None], 0.0, 6.0)
    E = h.shape[1]
    wdw = jnp.transpose(params["w_dw"], (2, 0, 1))[:, None, :, :]      # (E,1,3,3)
    h = lax.conv_general_dilated(h, wdw, (stride, stride), ((1, 1), (1, 1)),
                                 feature_group_count=E,
                                 dimension_numbers=("NCHW", "OIHW", "NCHW"))
    s, b = fold_bn(*params["bn_dw"])
    h = jnp.clip(h * s[None, :, None, None] + b[None, :, None, None], 0.0, 6.0)
    wpr = jnp.transpose(params["w_proj"], (1, 0))[:, :, None, None]
    h = lax.conv_general_dilated(h, wpr, (1, 1), "VALID",
                                 dimension_numbers=("NCHW", "OIHW", "NCHW"))
    s, b = fold_bn(*params["bn_proj"])
    h = h * s[None, :, None, None] + b[None, :, None, None]
    if stride == 1 and cin == cout:
        h = h + x_nchw
    return h


if __name__ == "__main__":
    key = jax.random.PRNGKey(0)
    N, H, W = 2, 16, 16
    configs = [
        dict(cin=24, cout=24, stride=1, t=6),   # residual, TE=256, single E tile
        dict(cin=24, cout=32, stride=2, t=6),   # stride-2 depthwise, NB=2 batching
        dict(cin=16, cout=16, stride=1, t=1),   # no-expansion (t=1) + residual
        dict(cin=48, cout=48, stride=1, t=6),   # Ep=384 -> 3 E tiles (accumulator)
    ]
    preps, params_list, xs = [], [], []
    for cfg in configs:
        key, kx, kp = jax.random.split(key, 3)
        x = jax.random.normal(kx, (N, cfg["cin"], H, W), jnp.float32)
        params = init_params(kp, cfg["cin"], cfg["cout"], cfg["t"])
        prep = prepare_block_params(params, cin=cfg["cin"], cout=cfg["cout"],
                                    stride=cfg["stride"],
                                    expansion_ratio=cfg["t"])

        out = inverted_residual_nchw(x, prep)
        out = jax.block_until_ready(out).astype(jnp.float32)

        ref = reference(x, params, cin=cfg["cin"], cout=cfg["cout"],
                        stride=cfg["stride"], expansion_ratio=cfg["t"])
        assert out.shape == ref.shape, (out.shape, ref.shape)
        rel = float(jnp.linalg.norm(out - ref) / (jnp.linalg.norm(ref) + 1e-6))
        assert rel < 2e-2, f"mismatch for {cfg}: rel_err={rel}"
        preps.append(prep)
        params_list.append(params)
        xs.append(x)

    # Chain two blocks in the persistent channel-padded NHWC layout (no HBM
    # pad/slice round trips between blocks -- the main perf fix).
    x = xs[0]                                               # (N, 24, 16, 16)
    x_p = pad_channels_nhwc(jnp.transpose(x, (0, 2, 3, 1)), preps[0]["Cip"])
    y_p = inverted_residual_padded(x_p, preps[0])           # 24 -> 24, s=1
    y_p = inverted_residual_padded(y_p, preps[1])           # 24 -> 32, s=2
    out = jnp.transpose(y_p[..., :preps[1]["cout"]], (0, 3, 1, 2))
    out = jax.block_until_ready(out).astype(jnp.float32)
    ref = reference(reference(x, params_list[0], cin=24, cout=24, stride=1,
                              expansion_ratio=6),
                    params_list[1], cin=24, cout=32, stride=2,
                    expansion_ratio=6)
    assert out.shape == ref.shape, (out.shape, ref.shape)
    rel = float(jnp.linalg.norm(out - ref) / (jnp.linalg.norm(ref) + 1e-6))
    assert rel < 5e-2, f"chained mismatch: rel_err={rel}"

    print("KERNEL_OK")
</pallas_src>

<mosaic_0001>
module attributes {stable_mosaic.version = 11 : i64} {
  func.func @kernel(%arg0: i32, %arg1: i32, %arg2: memref<1x16x16x128xbf16, #tpu.memory_space<vmem>>, %arg3: memref<128x256xbf16, #tpu.memory_space<vmem>>, %arg4: memref<1x256xf32, #tpu.memory_space<vmem>>, %arg5: memref<3x3x256xf32, #tpu.memory_space<vmem>>, %arg6: memref<1x256xf32, #tpu.memory_space<vmem>>, %arg7: memref<256x128xbf16, #tpu.memory_space<vmem>>, %arg8: memref<1x128xf32, #tpu.memory_space<vmem>>, %arg9: memref<1x16x16x128xbf16, #tpu.memory_space<vmem>>, %arg10: memref<1x18x18x256xbf16, #tpu.memory_space<vmem>>) attributes {dimension_semantics = [#tpu.dimension_semantics<parallel>, #tpu.dimension_semantics<arbitrary>], iteration_bounds = array<i64: 2, 1>, scalar_prefetch = 0 : i64, scratch_operands = 1 : i64, tpu.core_type = #tpu.core_type<tc>, window_params = [{transform_indices = @transform_0, window_bounds = array<i64: 1, 16, 16, 128>}, {transform_indices = @transform_1, window_bounds = array<i64: 128, 256>}, {transform_indices = @transform_2, window_bounds = array<i64: 1, 256>}, {transform_indices = @transform_3, window_bounds = array<i64: 3, 3, 256>}, {transform_indices = @transform_4, window_bounds = array<i64: 1, 256>}, {transform_indices = @transform_5, window_bounds = array<i64: 256, 128>}, {pipeline_mode = #tpu.pipeline_mode<synchronous>, transform_indices = @transform_6, window_bounds = array<i64: 1, 128>}, {transform_indices = @transform_7, window_bounds = array<i64: 1, 16, 16, 128>}]} {
    %c0_i32 = arith.constant 0 : i32
    %0 = arith.cmpi eq, %arg1, %c0_i32 : i32
    %1 = arith.extui %0 : i1 to i32
    %c0_i32_0 = arith.constant 0 : i32
    %2 = arith.cmpi ne, %1, %c0_i32_0 : i32
    scf.if %2 {
      %cst_65 = arith.constant 0.000000e+00 : bf16
      %112 = vector.broadcast %cst_65 : bf16 to vector<1x1x18x256xbf16>
      %c0_66 = arith.constant 0 : index
      %c0_67 = arith.constant 0 : index
      %c0_68 = arith.constant 0 : index
      %c0_69 = arith.constant 0 : index
      %113 = vector.load %arg10[%c0_66, %c0_67, %c0_68, %c0_69] : memref<1x18x18x256xbf16, #tpu.memory_space<vmem>>, vector<1x1x18x256xbf16>
      tpu.vector_store %arg10[%c0_66, %c0_67, %c0_68, %c0_69], %112 {strides = array<i32>} : memref<1x18x18x256xbf16, #tpu.memory_space<vmem>>, vector<1x1x18x256xbf16>,
      %c0_70 = arith.constant 0 : index
      %c17 = arith.constant 17 : index
      %c0_71 = arith.constant 0 : index
      %c0_72 = arith.constant 0 : index
      %114 = vector.load %arg10[%c0_70, %c17, %c0_71, %c0_72] : memref<1x18x18x256xbf16, #tpu.memory_space<vmem>>, vector<1x1x18x256xbf16>
      tpu.vector_store %arg10[%c0_70, %c17, %c0_71, %c0_72], %112 {strides = array<i32>} : memref<1x18x18x256xbf16, #tpu.memory_space<vmem>>, vector<1x1x18x256xbf16>,
      %cst_73 = arith.constant 0.000000e+00 : bf16
      %115 = vector.broadcast %cst_73 : bf16 to vector<1x18x1x256xbf16>
      %c0_74 = arith.constant 0 : index
      %c0_75 = arith.constant 0 : index
      %c0_76 = arith.constant 0 : index
      %c0_77 = arith.constant 0 : index
      %116 = vector.load %arg10[%c0_74, %c0_75, %c0_76, %c0_77] : memref<1x18x18x256xbf16, #tpu.memory_space<vmem>>, vector<1x18x1x256xbf16>
      tpu.vector_store %arg10[%c0_74, %c0_75, %c0_76, %c0_77], %115 {strides = array<i32>} : memref<1x18x18x256xbf16, #tpu.memory_space<vmem>>, vector<1x18x1x256xbf16>,
      %c0_78 = arith.constant 0 : index
      %c0_79 = arith.constant 0 : index
      %c17_80 = arith.constant 17 : index
      %c0_81 = arith.constant 0 : index
      %117 = vector.load %arg10[%c0_78, %c0_79, %c17_80, %c0_81] : memref<1x18x18x256xbf16, #tpu.memory_space<vmem>>, vector<1x18x1x256xbf16>
      tpu.vector_store %arg10[%c0_78, %c0_79, %c17_80, %c0_81], %115 {strides = array<i32>} : memref<1x18x18x256xbf16, #tpu.memory_space<vmem>>, vector<1x18x1x256xbf16>,
    } else {
    }
    %c0 = arith.constant 0 : index
    %c0_1 = arith.constant 0 : index
    %c0_2 = arith.constant 0 : index
    %c0_3 = arith.constant 0 : index
    %3 = vector.load %arg2[%c0, %c0_1, %c0_2, %c0_3] : memref<1x16x16x128xbf16, #tpu.memory_space<vmem>>, vector<1x16x16x128xbf16>
    %4 = vector.shape_cast %3 : vector<1x16x16x128xbf16> to vector<256x128xbf16>
    %c0_4 = arith.constant 0 : index
    %c0_5 = arith.constant 0 : index
    %5 = vector.load %arg3[%c0_4, %c0_5] : memref<128x256xbf16, #tpu.memory_space<vmem>>, vector<128x256xbf16>
    %cst = arith.constant dense<0.000000e+00> : vector<256x256xf32>
    %6 = tpu.matmul %4, %5, %cst {dimension_numbers = #tpu.dot_dimension_numbers<[1], [0], [0], [1], [0, 0, 1, 1], [], []>} : vector<256x128xbf16>, vector<128x256xbf16>, vector<256x256xf32> -> vector<256x256xf32>
    %c0_6 = arith.constant 0 : index
    %c0_7 = arith.constant 0 : index
    %7 = vector.load %arg4[%c0_6, %c0_7] : memref<1x256xf32, #tpu.memory_space<vmem>>, vector<1x256xf32>
    %8 = vector.broadcast %7 : vector<1x256xf32> to vector<256x256xf32>
    %9 = arith.addf %6, %8 : vector<256x256xf32>
    %cst_8 = arith.constant 0.000000e+00 : f32
    %cst_9 = arith.constant 6.000000e+00 : f32
    %10 = vector.broadcast %cst_8 : f32 to vector<256x256xf32>
    %11 = arith.maximumf %10, %9 : vector<256x256xf32>
    %12 = vector.broadcast %cst_9 : f32 to vector<256x256xf32>
    %13 = arith.minimumf %12, %11 : vector<256x256xf32>
    %14 = vector.shape_cast %13 : vector<256x256xf32> to vector<1x16x16x256xf32>
    %15 = arith.truncf %14 : vector<1x16x16x256xf32> to vector<1x16x16x256xbf16>
    %c0_10 = arith.constant 0 : index
    %c1 = arith.constant 1 : index
    %c1_11 = arith.constant 1 : index
    %c0_12 = arith.constant 0 : index
    %16 = vector.load %arg10[%c0_10, %c1, %c1_11, %c0_12] : memref<1x18x18x256xbf16, #tpu.memory_space<vmem>>, vector<1x16x16x256xbf16>
    tpu.vector_store %arg10[%c0_10, %c1, %c1_11, %c0_12], %15 {strides = array<i32>} : memref<1x18x18x256xbf16, #tpu.memory_space<vmem>>, vector<1x16x16x256xbf16>,
    %c0_13 = arith.constant 0 : index
    %c0_14 = arith.constant 0 : index
    %c0_15 = arith.constant 0 : index
    %17 = vector.load %arg5[%c0_13, %c0_14, %c0_15] : memref<3x3x256xf32, #tpu.memory_space<vmem>>, vector<3x3x256xf32>
    %c0_16 = arith.constant 0 : index
    %c0_17 = arith.constant 0 : index
    %18 = vector.load %arg6[%c0_16, %c0_17] : memref<1x256xf32, #tpu.memory_space<vmem>>, vector<1x256xf32>
    %cst_18 = arith.constant 0.000000e+00 : f32
    %19 = vector.broadcast %cst_18 : f32 to vector<1x16x16x256xf32>
    %c0_19 = arith.constant 0 : index
    %c0_20 = arith.constant 0 : index
    %c0_21 = arith.constant 0 : index
    %c0_22 = arith.constant 0 : index
    %20 = vector.load %arg10[%c0_19, %c0_20, %c0_21, %c0_22] : memref<1x18x18x256xbf16, #tpu.memory_space<vmem>>, vector<1x16x16x256xbf16>
    %21 = arith.extf %20 : vector<1x16x16x256xbf16> to vector<1x16x16x256xf32>
    %22 = vector.extract_strided_slice %17 {offsets = [0, 0, 0], sizes = [1, 1, 256], strides = [1, 1, 1]} : vector<3x3x256xf32> to vector<1x1x256xf32>
    %23 = vector.shape_cast %22 : vector<1x1x256xf32> to vector<256xf32>
    %24 = vector.shape_cast %23 : vector<256xf32> to vector<1x1x1x256xf32>
    %25 = vector.broadcast %24 : vector<1x1x1x256xf32> to vector<1x16x16x256xf32>
    %26 = arith.mulf %21, %25 : vector<1x16x16x256xf32>
    %27 = arith.addf %19, %26 : vector<1x16x16x256xf32>
    %c0_23 = arith.constant 0 : index
    %c0_24 = arith.constant 0 : index
    %c1_25 = arith.constant 1 : index
    %c0_26 = arith.constant 0 : index
    %28 = vector.load %arg10[%c0_23, %c0_24, %c1_25, %c0_26] : memref<1x18x18x256xbf16, #tpu.memory_space<vmem>>, vector<1x16x16x256xbf16>
    %29 = arith.extf %28 : vector<1x16x16x256xbf16> to vector<1x16x16x256xf32>
    %30 = vector.extract_strided_slice %17 {offsets = [0, 1, 0], sizes = [1, 1, 256], strides = [1, 1, 1]} : vector<3x3x256xf32> to vector<1x1x256xf32>
    %31 = vector.shape_cast %30 : vector<1x1x256xf32> to vector<256xf32>
    %32 = vector.shape_cast %31 : vector<256xf32> to vector<1x1x1x256xf32>
    %33 = vector.broadcast %32 : vector<1x1x1x256xf32> to vector<1x16x16x256xf32>
    %34 = arith.mulf %29, %33 : vector<1x16x16x256xf32>
    %35 = arith.addf %27, %34 : vector<1x16x16x256xf32>
    %c0_27 = arith.constant 0 : index
    %c0_28 = arith.constant 0 : index
    %c2 = arith.constant 2 : index
    %c0_29 = arith.constant 0 : index
    %36 = vector.load %arg10[%c0_27, %c0_28, %c2, %c0_29] : memref<1x18x18x256xbf16, #tpu.memory_space<vmem>>, vector<1x16x16x256xbf16>
    %37 = arith.extf %36 : vector<1x16x16x256xbf16> to vector<1x16x16x256xf32>
    %38 = vector.extract_strided_slice %17 {offsets = [0, 2, 0], sizes = [1, 1, 256], strides = [1, 1, 1]} : vector<3x3x256xf32> to vector<1x1x256xf32>
    %39 = vector.shape_cast %38 : vector<1x1x256xf32> to vector<256xf32>
    %40 = vector.shape_cast %39 : vector<256xf32> to vector<1x1x1x256xf32>
    %41 = vector.broadcast %40 : vector<1x1x1x256xf32> to vector<1x16x16x256xf32>
    %42 = arith.mulf %37, %41 : vector<1x16x16x256xf32>
    %43 = arith.addf %35, %42 : vector<1x16x16x256xf32>
    %c0_30 = arith.constant 0 : index
    %c1_31 = arith.constant 1 : index
    %c0_32 = arith.constant 0 : index
    %c0_33 = arith.constant 0 : index
    %44 = vector.load %arg10[%c0_30, %c1_31, %c0_32, %c0_33] : memref<1x18x18x256xbf16, #tpu.memory_space<vmem>>, vector<1x16x16x256xbf16>
    %45 = arith.extf %44 : vector<1x16x16x256xbf16> to vector<1x16x16x256xf32>
    %46 = vector.extract_strided_slice %17 {offsets = [1, 0, 0], sizes = [1, 1, 256], strides = [1, 1, 1]} : vector<3x3x256xf32> to vector<1x1x256xf32>
    %47 = vector.shape_cast %46 : vector<1x1x256xf32> to vector<256xf32>
    %48 = vector.shape_cast %47 : vector<256xf32> to vector<1x1x1x256xf32>
    %49 = vector.broadcast %48 : vector<1x1x1x256xf32> to vector<1x16x16x256xf32>
    %50 = arith.mulf %45, %49 : vector<1x16x16x256xf32>
    %51 = arith.addf %43, %50 : vector<1x16x16x256xf32>
    %c0_34 = arith.constant 0 : index
    %c1_35 = arith.constant 1 : index
    %c1_36 = arith.constant 1 : index
    %c0_37 = arith.constant 0 : index
    %52 = vector.load %arg10[%c0_34, %c1_35, %c1_36, %c0_37] : memref<1x18x18x256xbf16, #tpu.memory_space<vmem>>, vector<1x16x16x256xbf16>
    %53 = arith.extf %52 : vector<1x16x16x256xbf16> to vector<1x16x16x256xf32>
    %54 = vector.extract_strided_slice %17 {offsets = [1, 1, 0], sizes = [1, 1, 256], strides = [1, 1, 1]} : vector<3x3x256xf32> to vector<1x1x256xf32>
    %55 = vector.shape_cast %54 : vector<1x1x256xf32> to vector<256xf32>
    %56 = vector.shape_cast %55 : vector<256xf32> to vector<1x1x1x256xf32>
    %57 = vector.broadcast %56 : vector<1x1x1x256xf32> to vector<1x16x16x256xf32>
    %58 = arith.mulf %53, %57 : vector<1x16x16x256xf32>
    %59 = arith.addf %51, %58 : vector<1x16x16x256xf32>
    %c0_38 = arith.constant 0 : index
    %c1_39 = arith.constant 1 : index
    %c2_40 = arith.constant 2 : index
    %c0_41 = arith.constant 0 : index
    %60 = vector.load %arg10[%c0_38, %c1_39, %c2_40, %c0_41] : memref<1x18x18x256xbf16, #tpu.memory_space<vmem>>, vector<1x16x16x256xbf16>
    %61 = arith.extf %60 : vector<1x16x16x256xbf16> to vector<1x16x16x256xf32>
    %62 = vector.extract_strided_slice %17 {offsets = [1, 2, 0], sizes = [1, 1, 256], strides = [1, 1, 1]} : vector<3x3x256xf32> to vector<1x1x256xf32>
    %63 = vector.shape_cast %62 : vector<1x1x256xf32> to vector<256xf32>
    %64 = vector.shape_cast %63 : vector<256xf32> to vector<1x1x1x256xf32>
    %65 = vector.broadcast %64 : vector<1x1x1x256xf32> to vector<1x16x16x256xf32>
    %66 = arith.mulf %61, %65 : vector<1x16x16x256xf32>
    %67 = arith.addf %59, %66 : vector<1x16x16x256xf32>
    %c0_42 = arith.constant 0 : index
    %c2_43 = arith.constant 2 : index
    %c0_44 = arith.constant 0 : index
    %c0_45 = arith.constant 0 : index
    %68 = vector.load %arg10[%c0_42, %c2_43, %c0_44, %c0_45] : memref<1x18x18x256xbf16, #tpu.memory_space<vmem>>, vector<1x16x16x256xbf16>
    %69 = arith.extf %68 : vector<1x16x16x256xbf16> to vector<1x16x16x256xf32>
    %70 = vector.extract_strided_slice %17 {offsets = [2, 0, 0], sizes = [1, 1, 256], strides = [1, 1, 1]} : vector<3x3x256xf32> to vector<1x1x256xf32>
    %71 = vector.shape_cast %70 : vector<1x1x256xf32> to vector<256xf32>
    %72 = vector.shape_cast %71 : vector<256xf32> to vector<1x1x1x256xf32>
    %73 = vector.broadcast %72 : vector<1x1x1x256xf32> to vector<1x16x16x256xf32>
    %74 = arith.mulf %69, %73 : vector<1x16x16x256xf32>
    %75 = arith.addf %67, %74 : vector<1x16x16x256xf32>
    %c0_46 = arith.constant 0 : index
    %c2_47 = arith.constant 2 : index
    %c1_48 = arith.constant 1 : index
    %c0_49 = arith.constant 0 : index
    %76 = vector.load %arg10[%c0_46, %c2_47, %c1_48, %c0_49] : memref<1x18x18x256xbf16, #tpu.memory_space<vmem>>, vector<1x16x16x256xbf16>
    %77 = arith.extf %76 : vector<1x16x16x256xbf16> to vector<1x16x16x256xf32>
    %78 = vector.extract_strided_slice %17 {offsets = [2, 1, 0], sizes = [1, 1, 256], strides = [1, 1, 1]} : vector<3x3x256xf32> to vector<1x1x256xf32>
    %79 = vector.shape_cast %78 : vector<1x1x256xf32> to vector<256xf32>
    %80 = vector.shape_cast %79 : vector<256xf32> to vector<1x1x1x256xf32>
    %81 = vector.broadcast %80 : vector<1x1x1x256xf32> to vector<1x16x16x256xf32>
    %82 = arith.mulf %77, %81 : vector<1x16x16x256xf32>
    %83 = arith.addf %75, %82 : vector<1x16x16x256xf32>
    %c0_50 = arith.constant 0 : index
    %c2_51 = arith.constant 2 : index
    %c2_52 = arith.constant 2 : index
    %c0_53 = arith.constant 0 : index
    %84 = vector.load %arg10[%c0_50, %c2_51, %c2_52, %c0_53] : memref<1x18x18x256xbf16, #tpu.memory_space<vmem>>, vector<1x16x16x256xbf16>
    %85 = arith.extf %84 : vector<1x16x16x256xbf16> to vector<1x16x16x256xf32>
    %86 = vector.extract_strided_slice %17 {offsets = [2, 2, 0], sizes = [1, 1, 256], strides = [1, 1, 1]} : vector<3x3x256xf32> to vector<1x1x256xf32>
    %87 = vector.shape_cast %86 : vector<1x1x256xf32> to vector<256xf32>
    %88 = vector.shape_cast %87 : vector<256xf32> to vector<1x1x1x256xf32>
    %89 = vector.broadcast %88 : vector<1x1x1x256xf32> to vector<1x16x16x256xf32>
    %90 = arith.mulf %85, %89 : vector<1x16x16x256xf32>
    %91 = arith.addf %83, %90 : vector<1x16x16x256xf32>
    %92 = vector.shape_cast %18 : vector<1x256xf32> to vector<1x1x1x256xf32>
    %93 = vector.broadcast %92 : vector<1x1x1x256xf32> to vector<1x16x16x256xf32>
    %94 = arith.addf %91, %93 : vector<1x16x16x256xf32>
    %cst_54 = arith.constant 0.000000e+00 : f32
    %cst_55 = arith.constant 6.000000e+00 : f32
    %95 = vector.broadcast %cst_54 : f32 to vector<1x16x16x256xf32>
    %96 = arith.maximumf %95, %94 : vector<1x16x16x256xf32>
    %97 = vector.broadcast %cst_55 : f32 to vector<1x16x16x256xf32>
    %98 = arith.minimumf %97, %96 : vector<1x16x16x256xf32>
    %99 = vector.shape_cast %98 : vector<1x16x16x256xf32> to vector<256x256xf32>
    %100 = arith.truncf %99 : vector<256x256xf32> to vector<256x256xbf16>
    %c0_56 = arith.constant 0 : index
    %c0_57 = arith.constant 0 : index
    %101 = vector.load %arg7[%c0_56, %c0_57] : memref<256x128xbf16, #tpu.memory_space<vmem>>, vector<256x128xbf16>
    %cst_58 = arith.constant dense<0.000000e+00> : vector<256x128xf32>
    %102 = tpu.matmul %100, %101, %cst_58 {dimension_numbers = #tpu.dot_dimension_numbers<[1], [0], [0], [1], [0, 0, 1, 1], [], []>} : vector<256x256xbf16>, vector<256x128xbf16>, vector<256x128xf32> -> vector<256x128xf32>
    %c0_59 = arith.constant 0 : index
    %c0_60 = arith.constant 0 : index
    %103 = vector.load %arg8[%c0_59, %c0_60] : memref<1x128xf32, #tpu.memory_space<vmem>>, vector<1x128xf32>
    %104 = vector.broadcast %103 : vector<1x128xf32> to vector<256x128xf32>
    %105 = arith.addf %102, %104 : vector<256x128xf32>
    %106 = vector.shape_cast %3 : vector<1x16x16x128xbf16> to vector<256x128xbf16>
    %107 = arith.extf %106 : vector<256x128xbf16> to vector<256x128xf32>
    %108 = arith.addf %105, %107 : vector<256x128xf32>
    %109 = vector.shape_cast %108 : vector<256x128xf32> to vector<1x16x16x128xf32>
    %110 = arith.truncf %109 : vector<1x16x16x128xf32> to vector<1x16x16x128xbf16>
    %c0_61 = arith.constant 0 : index
    %c0_62 = arith.constant 0 : index
    %c0_63 = arith.constant 0 : index
    %c0_64 = arith.constant 0 : index
    %111 = vector.load %arg9[%c0_61, %c0_62, %c0_63, %c0_64] : memref<1x16x16x128xbf16, #tpu.memory_space<vmem>>, vector<1x16x16x128xbf16>
    tpu.vector_store %arg9[%c0_61, %c0_62, %c0_63, %c0_64], %110 {strides = array<i32>} : memref<1x16x16x128xbf16, #tpu.memory_space<vmem>>, vector<1x16x16x128xbf16>,
    return
  }
  func.func @transform_0(%arg0: i32, %arg1: i32) -> (i32, i32, i32, i32) {
    %c0_i32 = arith.constant 0 : i32
    %c0_i32_0 = arith.constant 0 : i32
    %c0_i32_1 = arith.constant 0 : i32
    %c0_i32_2 = arith.constant 0 : i32
    return %arg0, %c0_i32, %c0_i32_0, %c0_i32_1 : i32, i32, i32, i32
  }
  func.func @transform_1(%arg0: i32, %arg1: i32) -> (i32, i32) {
    %c0_i32 = arith.constant 0 : i32
    %c0_i32_0 = arith.constant 0 : i32
    return %c0_i32, %arg1 : i32, i32
  }
  func.func @transform_2(%arg0: i32, %arg1: i32) -> (i32, i32) {
    %c0_i32 = arith.constant 0 : i32
    %c0_i32_0 = arith.constant 0 : i32
    return %c0_i32, %arg1 : i32, i32
  }
  func.func @transform_3(%arg0: i32, %arg1: i32) -> (i32, i32, i32) {
    %c0_i32 = arith.constant 0 : i32
    %c0_i32_0 = arith.constant 0 : i32
    %c0_i32_1 = arith.constant 0 : i32
    return %c0_i32, %c0_i32_0, %arg1 : i32, i32, i32
  }
  func.func @transform_4(%arg0: i32, %arg1: i32) -> (i32, i32) {
    %c0_i32 = arith.constant 0 : i32
    %c0_i32_0 = arith.constant 0 : i32
    return %c0_i32, %arg1 : i32, i32
  }
  func.func @transform_5(%arg0: i32, %arg1: i32) -> (i32, i32) {
    %c0_i32 = arith.constant 0 : i32
    %c0_i32_0 = arith.constant 0 : i32
    return %arg1, %c0_i32 : i32, i32
  }
  func.func @transform_6(%arg0: i32, %arg1: i32) -> (i32, i32) {
    %c0_i32 = arith.constant 0 : i32
    %c0_i32_0 = arith.constant 0 : i32
    %c0_i32_1 = arith.constant 0 : i32
    return %c0_i32, %c0_i32_0 : i32, i32
  }
  func.func @transform_7(%arg0: i32, %arg1: i32) -> (i32, i32, i32, i32) {
    %c0_i32 = arith.constant 0 : i32
    %c0_i32_0 = arith.constant 0 : i32
    %c0_i32_1 = arith.constant 0 : i32
    %c0_i32_2 = arith.constant 0 : i32
    return %arg0, %c0_i32, %c0_i32_0, %c0_i32_1 : i32, i32, i32, i32
  }
}

</mosaic_0001>

<llo_original>
// kernel: tpu_custom_call.1
$region0: #{tpu_custom_call.1}
  #allocation0 [shape = 'u32[]', space=smem, size = 0x4, offset = 0x4, fixed_abs, tag = 'smem constant byte address 0x4 - core index']
  #allocation1 [shape = 'u32[72,128]{1,0:T(1,128)}', space=vmem, size = 0x9000, scoped, tag = 'internal scratch']
  #allocation2 [shape = 'bf16[1,18,18,256]{3,2,1,0:T(8,128)(2,1)}', space=vmem, size = 0x36000, scoped, tag = 'scratch operand']
  %s0 = inlined_call_operand.hbm [shape: bf16[2,16,16,128], index: 0, kind: input, shape index: {}]
  %s1 = inlined_call_operand.hbm [shape: bf16[128,256], index: 1, kind: input, shape index: {}]
  %s2 = inlined_call_operand.hbm [shape: f32[1,256], index: 2, kind: input, shape index: {}]
  %s3 = inlined_call_operand.hbm [shape: f32[3,3,256], index: 3, kind: input, shape index: {}]
  %s4 = inlined_call_operand.vmem [shape: f32[1,256], index: 4, kind: input, shape index: {}]
  %s5 = inlined_call_operand.hbm [shape: bf16[256,128], index: 5, kind: input, shape index: {}]
  %s6 = inlined_call_operand.vmem [shape: f32[1,128], index: 6, kind: input, shape index: {}]
  %s7 = inlined_call_operand.hbm [shape: bf16[2,16,16,128], index: 7, kind: output, shape index: {}]
  %s8 = sld [smem:[#allocation0]]
  $region85: #{tpu_custom_call.1} parent=0
    _
  %s10 = ssub.s32 1, %s8
  %s11 = scalar_select 0, %s10, %s8
  $region1: #{tpu_custom_call.1} parent=0
    #allocation3 [shape = 'u8[131072]{0}', space=vmem, size = 0x20000, scoped, tag = 'input window, operand 0']
    #allocation4 [shape = 's32[2]{0}', space=sflag, size = 0x8, scoped, tag = 'scoped memory for tpu_custom_call.1']
    #allocation5 [shape = 's32[2]{0}', space=sflag, size = 0x8, scoped, tag = 'scoped memory for tpu_custom_call.1']
    #allocation6 [shape = 'u8[65536]{0}', space=vmem, size = 0x10000, scoped, tag = 'input window, operand 1, single buffered']
    #allocation7 [shape = 's32[1]{0}', space=sflag, size = 0x4, scoped, tag = 'scoped memory for tpu_custom_call.1']
    #allocation8 [shape = 'u8[1024]{0}', space=vmem, size = 0x400, scoped, tag = 'input window, operand 2, single buffered']
    #allocation9 [shape = 'u8[12288]{0}', space=vmem, size = 0x3000, scoped, tag = 'input window, operand 3, single buffered']
    #allocation10 [shape = 's32[1]{0}', space=sflag, size = 0x4, scoped, tag = 'scoped memory for tpu_custom_call.1']
    #allocation11 [shape = 'u8[65536]{0}', space=vmem, size = 0x10000, scoped, tag = 'input window, operand 5, single buffered']
    #allocation12 [shape = 'u8[131072]{0}', space=vmem, size = 0x20000, scoped, tag = 'output window, operand 0']
    %12 = vsyncpa [#allocation4], 0
    %s13 = scalar_lea.sflag [#allocation4], 1
    %14 = vsyncpa %s13, 0
    %15 = vsyncpa [#allocation7], 0
    %16 = vsyncpa [#allocation10], 0
    %17 = vsyncpa [#allocation5], 0
    %s18 = scalar_lea.sflag [#allocation5], 1
    %19 = vsyncpa %s18, 0
    loop: start=0, step=1, limit=4
    $region2: #{tpu_custom_call.1} parent=1 // loop_pre_header
      _
    $region3: #{tpu_custom_call.1} parent=1 // loop_header
      %s21 = sphi 0, %s25
      %p22 = scmp.ge.s32.totalorder %s21, 4
      %s28 = sphi 0, %s40
      %s29 = sphi 0, %s36
      %s30 = sphi 0, %s28
      %s31 = sphi 0, %s29
      %s32 = sphi 0, %s30
      %s33 = sphi 0, %s31
      %s43 = sphi 0, %s45
      %s46 = sphi 0, %s43
      %s47 = sphi 0, %s46
      %s63 = sphi 0, %s47
      %s69 = sphi 0, %s71
      %s72 = sphi 0, %s69
      %s73 = sphi 0, %s72
      %s89 = sphi 0, %s73
      %s95 = sphi 0, %s97
      %s98 = sphi 0, %s95
      %s99 = sphi 0, %s98
      %s115 = sphi 0, %s99
      %s121 = sphi 0, %s123
      %s124 = sphi 0, %s121
      %s125 = sphi 0, %s124
      %s141 = sphi 0, %s125
      %s147 = sphi 0, %s149
      %s150 = sphi 0, %s147
      %s151 = sphi 0, %s150
      %s167 = sphi 0, %s151
      %s173 = sphi 0, %s175
      %s176 = sphi 0, %s173
      %s177 = sphi 0, %s176
      %s193 = sphi 0, %s177
      %s197 = sphi 0, %s197
      %s199 = sphi 0, %s197
      %s200 = sphi 0, %s199
      %s214 = sphi 0, %s200
      %s220 = sphi 0, %s222
      %s223 = sphi 0, %s220
      %s224 = sphi 0, %s223
      %s240 = sphi 0, %s224
    $region4: #{tpu_custom_call.1} parent=1 // loop_header_branch
      %24 = sbr.rel (%p22) target = $region8
    $region5: #{tpu_custom_call.1} parent=1 // loop_body
      %s26 = ssub.s32 %s21, 1
      %s27 = ssub.s32 %s21, 2
      %s34 = sadd.s32 1, %s29
      %p35 = scmp.ge.s32.totalorder %s34, 1
      %s36 = scalar_select %p35, 0, %s34
      %s37 = sadd.s32 1, %s28
      %s38 = scalar_select %p35, %s37, %s28
      %p39 = scmp.ge.s32.totalorder %s38, 2
      %s40 = scalar_select %p39, 0, %s38
      %s41 = ssub.s32 %s28, %s40
      %p42 = scmp.eq.s32.totalorder %s41, 0
      %s44 = sadd.s32 %s43, 1
      %s45 = scalar_select %p42, %s43, %s44
      %p48 = pneg %p42
      %p49 = scmp.eq.s32.totalorder %s21, 1
      %p50 = por %p48, %p49
      %p51 = scmp.ne.s32.totalorder %s43, %s46
      %p52 = scmp.eq.s32.totalorder %s21, 0
      %p53 = por %p51, %p52
      %p54 = scmp.ne.s32.totalorder %s43, %s46
      %p55 = scmp.eq.s32.totalorder %s26, 1
      %p56 = por %p54, %p55
      %p57 = scmp.ne.s32.totalorder %s46, %s47
      %p58 = scmp.eq.s32.totalorder %s26, 0
      %p59 = por %p57, %p58
      %p60 = scmp.ne.s32.totalorder %s46, %s47
      %p61 = scmp.eq.s32.totalorder %s27, 1
      %p62 = por %p60, %p61
      %p64 = scmp.ne.s32.totalorder %s47, %s63
      %p65 = scmp.eq.s32.totalorder %s27, 0
      %p66 = por %p64, %p65
      %s67 = ssub.s32 %s29, %s36
      %p68 = scmp.eq.s32.totalorder %s67, 0
      %s70 = sadd.s32 %s69, 1
      %s71 = scalar_select %p68, %s69, %s70
      %p74 = pneg %p68
      %p75 = scmp.eq.s32.totalorder %s21, 1
      %p76 = por %p74, %p75
      %p77 = scmp.ne.s32.totalorder %s69, %s72
      %p78 = scmp.eq.s32.totalorder %s21, 0
      %p79 = por %p77, %p78
      %p80 = scmp.ne.s32.totalorder %s69, %s72
      %p81 = scmp.eq.s32.totalorder %s26, 1
      %p82 = por %p80, %p81
      %p83 = scmp.ne.s32.totalorder %s72, %s73
      %p84 = scmp.eq.s32.totalorder %s26, 0
      %p85 = por %p83, %p84
      %p86 = scmp.ne.s32.totalorder %s72, %s73
      %p87 = scmp.eq.s32.totalorder %s27, 1
      %p88 = por %p86, %p87
      %p90 = scmp.ne.s32.totalorder %s73, %s89
      %p91 = scmp.eq.s32.totalorder %s27, 0
      %p92 = por %p90, %p91
      %s93 = ssub.s32 %s29, %s36
      %p94 = scmp.eq.s32.totalorder %s93, 0
      %s96 = sadd.s32 %s95, 1
      %s97 = scalar_select %p94, %s95, %s96
      %p100 = pneg %p94
      %p101 = scmp.eq.s32.totalorder %s21, 1
      %p102 = por %p100, %p101
      %p103 = scmp.ne.s32.totalorder %s95, %s98
      %p104 = scmp.eq.s32.totalorder %s21, 0
      %p105 = por %p103, %p104
      %p106 = scmp.ne.s32.totalorder %s95, %s98
      %p107 = scmp.eq.s32.totalorder %s26, 1
      %p108 = por %p106, %p107
      %p109 = scmp.ne.s32.totalorder %s98, %s99
      %p110 = scmp.eq.s32.totalorder %s26, 0
      %p111 = por %p109, %p110
      %p112 = scmp.ne.s32.totalorder %s98, %s99
      %p113 = scmp.eq.s32.totalorder %s27, 1
      %p114 = por %p112, %p113
      %p116 = scmp.ne.s32.totalorder %s99, %s115
      %p117 = scmp.eq.s32.totalorder %s27, 0
      %p118 = por %p116, %p117
      %s119 = ssub.s32 %s29, %s36
      %p120 = scmp.eq.s32.totalorder %s119, 0
      %s122 = sadd.s32 %s121, 1
      %s123 = scalar_select %p120, %s121, %s122
      %p126 = pneg %p120
      %p127 = scmp.eq.s32.totalorder %s21, 1
      %p128 = por %p126, %p127
      %p129 = scmp.ne.s32.totalorder %s121, %s124
      %p130 = scmp.eq.s32.totalorder %s21, 0
      %p131 = por %p129, %p130
      %p132 = scmp.ne.s32.totalorder %s121, %s124
      %p133 = scmp.eq.s32.totalorder %s26, 1
      %p134 = por %p132, %p133
      %p135 = scmp.ne.s32.totalorder %s124, %s125
      %p136 = scmp.eq.s32.totalorder %s26, 0
      %p137 = por %p135, %p136
      %p138 = scmp.ne.s32.totalorder %s124, %s125
      %p139 = scmp.eq.s32.totalorder %s27, 1
      %p140 = por %p138, %p139
      %p142 = scmp.ne.s32.totalorder %s125, %s141
      %p143 = scmp.eq.s32.totalorder %s27, 0
      %p144 = por %p142, %p143
      %s145 = ssub.s32 %s29, %s36
      %p146 = scmp.eq.s32.totalorder %s145, 0
      %s148 = sadd.s32 %s147, 1
      %s149 = scalar_select %p146, %s147, %s148
      %p152 = pneg %p146
      %p153 = scmp.eq.s32.totalorder %s21, 1
      %p154 = por %p152, %p153
      %p155 = scmp.ne.s32.totalorder %s147, %s150
      %p156 = scmp.eq.s32.totalorder %s21, 0
      %p157 = por %p155, %p156
      %p158 = scmp.ne.s32.totalorder %s147, %s150
      %p159 = scmp.eq.s32.totalorder %s26, 1
      %p160 = por %p158, %p159
      %p161 = scmp.ne.s32.totalorder %s150, %s151
      %p162 = scmp.eq.s32.totalorder %s26, 0
      %p163 = por %p161, %p162
      %p164 = scmp.ne.s32.totalorder %s150, %s151
      %p165 = scmp.eq.s32.totalorder %s27, 1
      %p166 = por %p164, %p165
      %p168 = scmp.ne.s32.totalorder %s151, %s167
      %p169 = scmp.eq.s32.totalorder %s27, 0
      %p170 = por %p168, %p169
      %s171 = ssub.s32 %s29, %s36
      %p172 = scmp.eq.s32.totalorder %s171, 0
      %s174 = sadd.s32 %s173, 1
      %s175 = scalar_select %p172, %s173, %s174
      %p178 = pneg %p172
      %p179 = scmp.eq.s32.totalorder %s21, 1
      %p180 = por %p178, %p179
      %p181 = scmp.ne.s32.totalorder %s173, %s176
      %p182 = scmp.eq.s32.totalorder %s21, 0
      %p183 = por %p181, %p182
      %p184 = scmp.ne.s32.totalorder %s173, %s176
      %p185 = scmp.eq.s32.totalorder %s26, 1
      %p186 = por %p184, %p185
      %p187 = scmp.ne.s32.totalorder %s176, %s177
      %p188 = scmp.eq.s32.totalorder %s26, 0
      %p189 = por %p187, %p188
      %p190 = scmp.ne.s32.totalorder %s176, %s177
      %p191 = scmp.eq.s32.totalorder %s27, 1
      %p192 = por %p190, %p191
      %p194 = scmp.ne.s32.totalorder %s177, %s193
      %p195 = scmp.eq.s32.totalorder %s27, 0
      %p196 = por %p194, %p195
      %s198 = sadd.s32 %s197, 1
      %p201 = scmp.eq.s32.totalorder %s21, 1
      %p202 = scmp.ne.s32.totalorder %s197, %s199
      %p203 = scmp.eq.s32.totalorder %s21, 0
      %p204 = por %p202, %p203
      %p205 = scmp.ne.s32.totalorder %s197, %s199
      %p206 = scmp.eq.s32.totalorder %s26, 1
      %p207 = por %p205, %p206
      %p208 = scmp.ne.s32.totalorder %s199, %s200
      %p209 = scmp.eq.s32.totalorder %s26, 0
      %p210 = por %p208, %p209
      %p211 = scmp.ne.s32.totalorder %s199, %s200
      %p212 = scmp.eq.s32.totalorder %s27, 1
      %p213 = por %p211, %p212
      %p215 = scmp.ne.s32.totalorder %s200, %s214
      %p216 = scmp.eq.s32.totalorder %s27, 0
      %p217 = por %p215, %p216
      %s218 = ssub.s32 %s28, %s40
      %p219 = scmp.eq.s32.totalorder %s218, 0
      %s221 = sadd.s32 %s220, 1
      %s222 = scalar_select %p219, %s220, %s221
      %p225 = pneg %p219
      %p226 = scmp.eq.s32.totalorder %s21, 1
      %p227 = por %p225, %p226
      %p228 = scmp.ne.s32.totalorder %s220, %s223
      %p229 = scmp.eq.s32.totalorder %s21, 0
      %p230 = por %p228, %p229
      %p231 = scmp.ne.s32.totalorder %s220, %s223
      %p232 = scmp.eq.s32.totalorder %s26, 1
      %p233 = por %p231, %p232
      %p234 = scmp.ne.s32.totalorder %s223, %s224
      %p235 = scmp.eq.s32.totalorder %s26, 0
      %p236 = por %p234, %p235
      %p237 = scmp.ne.s32.totalorder %s223, %s224
      %p238 = scmp.eq.s32.totalorder %s27, 1
      %p239 = por %p237, %p238
      %p241 = scmp.ne.s32.totalorder %s224, %s240
      %p242 = scmp.eq.s32.totalorder %s27, 0
      %p243 = por %p241, %p242
      %p244 = scmp.le.s32.totalorder 1, %s21
      %p245 = scmp.lt.s32.totalorder %s21, 3
      %p246 = pnand %p244, %p245
      %p247 = pneg %p246
      // Predicated region
      $region9: #{tpu_custom_call.1} parent=5 // pred_check
        _
      $region10: #{tpu_custom_call.1} parent=5 // pred_check_branch
        %249 = sbr.rel (%p246) target = $region12
      $region11: #{tpu_custom_call.1} parent=5 // pred_region
        %s250 = ssub.s32 %s21, 1
        // Predicated region
        $region13: #{tpu_custom_call.1} parent=11 // pred_check
          %p251 = pneg %p85
        $region14: #{tpu_custom_call.1} parent=11 // pred_check_branch
          %253 = sbr.rel (%p251) target = $region16
        $region15: #{tpu_custom_call.1} parent=11 // pred_region
          %s254 = smul.u32 2, %s31
          %256 = vsyncadd [#allocation7], 0
          %s257 = smul.addr %s254, 4
          %s258 = scalar_lea.hbm %s1, %s257
          %s259 = sshll.u32 %s258, 4
          %s260 = int_to_ptr.hbm [resolvable:$true] %s259
          %s261 = sshll.u32 [#allocation6], 4
          %s262 = int_to_ptr.vmem [resolvable:$true] %s261
          %267 = dma.hbm_to_vmem [thread:$0]  %s260, 2048, %s262, [#allocation7], 128, 128, 8
        $region16: #{tpu_custom_call.1} parent=11 // pred_fallthru
          _
        // Predicated region
        $region17: #{tpu_custom_call.1} parent=11 // pred_check
          %p268 = pneg %p111
        $region18: #{tpu_custom_call.1} parent=11 // pred_check_branch
          %270 = sbr.rel (%p268) target = $region20
        $region19: #{tpu_custom_call.1} parent=11 // pred_region
          %s271 = smul.u32 2, %s31
          %273 = vsyncadd [#allocation7], 0
          %s274 = scalar_lea.hbm %s2, %s271
          %s276 = sshll.u32 %s274, 4
          %s277 = int_to_ptr.hbm [resolvable:$true] %s276
          %s278 = sshll.u32 [#allocation8], 4
          %s279 = int_to_ptr.vmem [resolvable:$true] %s278
          %281 = dma.hbm_to_vmem [thread:$0]  %s277, 32, %s279, [#allocation7]
        $region20: #{tpu_custom_call.1} parent=11 // pred_fallthru
          _
        // Predicated region
        $region21: #{tpu_custom_call.1} parent=11 // pred_check
          %p282 = pneg %p137
        $region22: #{tpu_custom_call.1} parent=11 // pred_check_branch
          %284 = sbr.rel (%p282) target = $region24
        $region23: #{tpu_custom_call.1} parent=11 // pred_region
          %s285 = smul.u32 2, %s31
          %287 = vsyncadd [#allocation10], 0
          %s288 = smul.addr %s285, 4
          %s289 = scalar_lea.hbm %s3, %s288
          %s290 = sshll.u32 %s289, 4
          %s291 = int_to_ptr.hbm [resolvable:$true] %s290
          %s292 = sshll.u32 [#allocation9], 4
          %s293 = int_to_ptr.vmem [resolvable:$true] %s292
          %298 = dma.hbm_to_vmem [thread:$0]  %s291, 384, %s293, [#allocation10], 128, 128, 8
        $region24: #{tpu_custom_call.1} parent=11 // pred_fallthru
          _
        // Predicated region
        $region25: #{tpu_custom_call.1} parent=11 // pred_check
          %p299 = pneg %p163
        $region26: #{tpu_custom_call.1} parent=11 // pred_check_branch
          %301 = sbr.rel (%p299) target = $region28
        $region27: #{tpu_custom_call.1} parent=11 // pred_region
          %s302 = smul.u32 2, %s31
          %p303 = scmp.lt.s32.totalorder %s302, 1
          %s304 = scalar_select %p303, %s302, 1
          %s305 = scalar_lea.vmem %s4, %s304
          %s306 = smul.u32 2, %s31
        $region28: #{tpu_custom_call.1} parent=11 // pred_fallthru
          _
        // Predicated region
        $region29: #{tpu_custom_call.1} parent=11 // pred_check
          %p307 = pneg %p189
        $region30: #{tpu_custom_call.1} parent=11 // pred_check_branch
          %309 = sbr.rel (%p307) target = $region32
        $region31: #{tpu_custom_call.1} parent=11 // pred_region
          %s310 = smul.u32 32, %s31
          %312 = vsyncadd [#allocation10], 0
          %s313 = smul.addr %s310, 4
          %s314 = scalar_lea.hbm %s5, %s313
          %s315 = sshll.u32 %s314, 4
          %s316 = int_to_ptr.hbm [resolvable:$true] %s315
          %s317 = sshll.u32 [#allocation11], 4
          %s318 = int_to_ptr.vmem [resolvable:$true] %s317
          %323 = dma.hbm_to_vmem [thread:$0]  %s316, 2048, %s318, [#allocation10], 64, 64, 4
        $region32: #{tpu_custom_call.1} parent=11 // pred_fallthru
          _
        // Predicated region
        $region33: #{tpu_custom_call.1} parent=11 // pred_check
          %p324 = pneg %p210
        $region34: #{tpu_custom_call.1} parent=11 // pred_check_branch
          %326 = sbr.rel (%p324) target = $region36
        $region35: #{tpu_custom_call.1} parent=11 // pred_region
          _
        $region36: #{tpu_custom_call.1} parent=11 // pred_fallthru
          _
      $region12: #{tpu_custom_call.1} parent=5 // pred_fallthru
        _
      %p327 = scmp.lt.s32.totalorder %s21, 2
      // Predicated region
      $region37: #{tpu_custom_call.1} parent=5 // pred_check
        %p328 = pneg %p327
      $region38: #{tpu_custom_call.1} parent=5 // pred_check_branch
        %330 = sbr.rel (%p328) target = $region40
      $region39: #{tpu_custom_call.1} parent=5 // pred_region
        // Predicated region
        $region41: #{tpu_custom_call.1} parent=39 // pred_check
          %p331 = pneg %p53
        $region42: #{tpu_custom_call.1} parent=39 // pred_check_branch
          %333 = sbr.rel (%p331) target = $region44
        $region43: #{tpu_custom_call.1} parent=39 // pred_region
          %s334 = sand.u32 %s43, 1
          %s335 = scalar_lea.sflag [#allocation4], %s334
          %s336 = sand.u32 %s43, 1
          %s337 = smul.addr %s336, 128
          %s338 = scalar_lea.vmem [#allocation3], %s337
          %340 = vsyncadd %s335, 0
          %s341 = smul.addr %s28, 32
          %s342 = smul.addr %s341, 4
          %s343 = scalar_lea.hbm %s0, %s342
          %s344 = sshll.u32 %s343, 4
          %s345 = int_to_ptr.hbm [resolvable:$true] %s344
          %s346 = sshll.u32 %s338, 4
          %s347 = int_to_ptr.vmem [resolvable:$true] %s346
          %352 = dma.hbm_to_vmem [thread:$0]  %s345, 2048, %s347, %s335, 64, 64, 4
        $region44: #{tpu_custom_call.1} parent=39 // pred_fallthru
          _
      $region40: #{tpu_custom_call.1} parent=5 // pred_fallthru
        _
      %p353 = scmp.le.s32.totalorder 1, %s21
      %p354 = scmp.lt.s32.totalorder %s21, 3
      %p355 = pnand %p353, %p354
      %p356 = pneg %p355
      // Predicated region
      $region45: #{tpu_custom_call.1} parent=5 // pred_check
        _
      $region46: #{tpu_custom_call.1} parent=5 // pred_check_branch
        %358 = sbr.rel (%p355) target = $region48
      $region47: #{tpu_custom_call.1} parent=5 // pred_region
        %s359 = ssub.s32 %s21, 1
        %s360 = sand.u32 %s46, 1
        %s361 = scalar_lea.sflag [#allocation4], %s360
        %s362 = sand.u32 %s46, 1
        %s363 = smul.addr %s362, 128
        %s364 = scalar_lea.vmem [#allocation3], %s363
        // Predicated region
        $region49: #{tpu_custom_call.1} parent=47 // pred_check
          %p365 = pneg %p59
        $region50: #{tpu_custom_call.1} parent=47 // pred_check_branch
          %367 = sbr.rel (%p365) target = $region52
        $region51: #{tpu_custom_call.1} parent=47 // pred_region
          %369 = dma.done %s361, 2048
        $region52: #{tpu_custom_call.1} parent=47 // pred_fallthru
          _
        // Predicated region
        $region53: #{tpu_custom_call.1} parent=47 // pred_check
          %p370 = pneg %p85
        $region54: #{tpu_custom_call.1} parent=47 // pred_check_branch
          %372 = sbr.rel (%p370) target = $region56
        $region55: #{tpu_custom_call.1} parent=47 // pred_region
          %374 = dma.done [#allocation7], 2048
        $region56: #{tpu_custom_call.1} parent=47 // pred_fallthru
          _
        // Predicated region
        $region57: #{tpu_custom_call.1} parent=47 // pred_check
          %p375 = pneg %p111
        $region58: #{tpu_custom_call.1} parent=47 // pred_check_branch
          %377 = sbr.rel (%p375) target = $region60
        $region59: #{tpu_custom_call.1} parent=47 // pred_region
          %379 = dma.done [#allocation7], 32
        $region60: #{tpu_custom_call.1} parent=47 // pred_fallthru
          _
        // Predicated region
        $region61: #{tpu_custom_call.1} parent=47 // pred_check
          %p380 = pneg %p137
        $region62: #{tpu_custom_call.1} parent=47 // pred_check_branch
          %382 = sbr.rel (%p380) target = $region64
        $region63: #{tpu_custom_call.1} parent=47 // pred_region
          %384 = dma.done [#allocation10], 384
        $region64: #{tpu_custom_call.1} parent=47 // pred_fallthru
          _
        // Predicated region
        $region65: #{tpu_custom_call.1} parent=47 // pred_check
          %p385 = pneg %p189
        $region66: #{tpu_custom_call.1} parent=47 // pred_check_branch
          %387 = sbr.rel (%p385) target = $region68
        $region67: #{tpu_custom_call.1} parent=47 // pred_region
          %389 = dma.done [#allocation10], 2048
        $region68: #{tpu_custom_call.1} parent=47 // pred_fallthru
          _
        %s390 = sand.u32 %s46, 1
        %s391 = scalar_lea.sflag [#allocation4], %s390
        %s392 = sand.u32 %s46, 1
        %s393 = smul.addr %s392, 128
        %s394 = scalar_lea.vmem [#allocation3], %s393
        %p395 = pneg %p59
        %p396 = pneg %p56
        %p397 = pneg %p85
        %p398 = pneg %p82
        %p399 = pneg %p111
        %p400 = pneg %p108
        %p401 = pneg %p137
        %p402 = pneg %p134
        %s403 = smul.u32 2, %s31
        %p404 = scmp.lt.s32.totalorder %s403, 1
        %s405 = scalar_select %p404, %s403, 1
        %s406 = scalar_lea.vmem %s4, %s405
        %p407 = pneg %p163
        %p408 = pneg %p160
        %p409 = pneg %p189
        %p410 = pneg %p186
        %p411 = pneg %p210
        %p412 = pneg %p207
        %p413 = pneg %p236
        %p414 = pneg %p233
        %s415 = sand.u32 %s223, 1
        %s416 = scalar_lea.sflag [#allocation5], %s415
        %s417 = sand.u32 %s223, 1
        %s418 = smul.addr %s417, 128
        %s419 = scalar_lea.vmem [#allocation12], %s418
        %s420 = smul.u32 2, %s31
        %s421 = smul.u32 2, %s31
        %s422 = smul.u32 2, %s31
        %s423 = smul.u32 2, %s31
        %p424 = scmp.lt.s32.totalorder %s423, 1
        %s425 = scalar_select %p424, %s423, 1
        %s426 = scalar_lea.vmem %s4, %s425
        %s427 = smul.u32 2, %s31
        %s428 = smul.u32 32, %s31
        %p430 = scmp.eq.s32.totalorder %s31, 0
        // Predicated region
        $region69: #{tpu_custom_call.1} parent=47 // pred_check
          %p431 = pneg %p430
        $region70: #{tpu_custom_call.1} parent=47 // pred_check_branch
          %433 = sbr.rel (%p431) target = $region72
        $region71: #{tpu_custom_call.1} parent=47 // pred_region
          %434 = vst [vmem:[#allocation2] sm:$0xff] 0
          %435 = vst [vmem:[#allocation2 + $0x8] sm:$0xff] 0
          %436 = vst [vmem:[#allocation2 + $0x10] sm:$0x11] 0
          %s437 = scalar_lea.vmem [#allocation2], 408
          %438 = vst [vmem:[%s437] sm:$0xff] 0
          %439 = vst [vmem:[%s437 + $0x8] sm:$0xff] 0
          %440 = vst [vmem:[%s437 + $0x10] sm:$0x11] 0
          %vm441 = vcmask 1040384
          %vm442 = vsmask.f32 256
          %vm443 = vmand %vm441, %vm442
          %vm444 = vcmask 1044484
          %vm445 = vsmask.f32 4352
          %vm446 = vmand %vm444, %vm445
          %vm447 = vmor %vm446, %vm443
          %v448 = vld [vmem:[#allocation2] sm:$0x11]
          %v449 = vsel %vm447, 0, %v448
          %450 = vst [vmem:[#allocation2] sm:$0x11] %v449
          %v451 = vld [vmem:[#allocation2 + $0x18] sm:$0x11]
          %v452 = vsel %vm447, 0, %v451
          %453 = vst [vmem:[#allocation2 + $0x18] sm:$0x11] %v452
          %v454 = vld [vmem:[#allocation2 + $0x30] sm:$0x11]
          %v455 = vsel %vm447, 0, %v454
          %456 = vst [vmem:[#allocation2 + $0x30] sm:$0x11] %v455
          %v457 = vld [vmem:[#allocation2 + $0x48] sm:$0x11]
          %v458 = vsel %vm447, 0, %v457
          %459 = vst [vmem:[#allocation2 + $0x48] sm:$0x11] %v458
          %v460 = vld [vmem:[#allocation2 + $0x60] sm:$0x11]
          %v461 = vsel %vm447, 0, %v460
          %462 = vst [vmem:[#allocation2 + $0x60] sm:$0x11] %v461
          %v463 = vld [vmem:[#allocation2 + $0x78] sm:$0x11]
          %v464 = vsel %vm447, 0, %v463
          %465 = vst [vmem:[#allocation2 + $0x78] sm:$0x11] %v464
          %v466 = vld [vmem:[#allocation2 + $0x90] sm:$0x11]
          %v467 = vsel %vm447, 0, %v466
          %468 = vst [vmem:[#allocation2 + $0x90] sm:$0x11] %v467
          %v469 = vld [vmem:[#allocation2 + $0xa8] sm:$0x11]
          %v470 = vsel %vm447, 0, %v469
          %471 = vst [vmem:[#allocation2 + $0xa8] sm:$0x11] %v470
          %v472 = vld [vmem:[#allocation2 + $0xc0] sm:$0x11]
          %v473 = vsel %vm447, 0, %v472
          %474 = vst [vmem:[#allocation2 + $0xc0] sm:$0x11] %v473
          %v475 = vld [vmem:[#allocation2 + $0xd8] sm:$0x11]
          %v476 = vsel %vm447, 0, %v475
          %477 = vst [vmem:[#allocation2 + $0xd8] sm:$0x11] %v476
          %v478 = vld [vmem:[#allocation2 + $0xf0] sm:$0x11]
          %v479 = vsel %vm447, 0, %v478
          %480 = vst [vmem:[#allocation2 + $0xf0] sm:$0x11] %v479
          %v481 = vld [vmem:[#allocation2 + $0x108] sm:$0x11]
          %v482 = vsel %vm447, 0, %v481
          %483 = vst [vmem:[#allocation2 + $0x108] sm:$0x11] %v482
          %v484 = vld [vmem:[#allocation2 + $0x120] sm:$0x11]
          %v485 = vsel %vm447, 0, %v484
          %486 = vst [vmem:[#allocation2 + $0x120] sm:$0x11] %v485
          %v487 = vld [vmem:[#allocation2 + $0x138] sm:$0x11]
          %v488 = vsel %vm447, 0, %v487
          %489 = vst [vmem:[#allocation2 + $0x138] sm:$0x11] %v488
          %v490 = vld [vmem:[#allocation2 + $0x150] sm:$0x11]
          %v491 = vsel %vm447, 0, %v490
          %492 = vst [vmem:[#allocation2 + $0x150] sm:$0x11] %v491
          %v493 = vld [vmem:[#allocation2 + $0x168] sm:$0x11]
          %v494 = vsel %vm447, 0, %v493
          %495 = vst [vmem:[#allocation2 + $0x168] sm:$0x11] %v494
          %v496 = vld [vmem:[#allocation2 + $0x180] sm:$0x11]
          %v497 = vsel %vm447, 0, %v496
          %498 = vst [vmem:[#allocation2 + $0x180] sm:$0x11] %v497
          %v499 = vld [vmem:[#allocation2 + $0x198] sm:$0x11]
          %v500 = vsel %vm447, 0, %v499
          %501 = vst [vmem:[#allocation2 + $0x198] sm:$0x11] %v500
          %vm502 = vsmask.f32 7938
          %vm503 = vmand %vm441, %vm502
          %vm504 = vsmask.f32 7954
          %vm505 = vmand %vm444, %vm504
          %vm506 = vmor %vm505, %vm503
          %v507 = vld [vmem:[#allocation2 + $0x10] sm:$0x11]
          %v508 = vsel %vm506, 0, %v507
          %509 = vst [vmem:[#allocation2 + $0x10] sm:$0x11] %v508
          %v510 = vld [vmem:[#allocation2 + $0x28] sm:$0x11]
          %v511 = vsel %vm506, 0, %v510
          %512 = vst [vmem:[#allocation2 + $0x28] sm:$0x11] %v511
          %v513 = vld [vmem:[#allocation2 + $0x40] sm:$0x11]
          %v514 = vsel %vm506, 0, %v513
          %515 = vst [vmem:[#allocation2 + $0x40] sm:$0x11] %v514
          %v516 = vld [vmem:[#allocation2 + $0x58] sm:$0x11]
          %v517 = vsel %vm506, 0, %v516
          %518 = vst [vmem:[#allocation2 + $0x58] sm:$0x11] %v517
          %v519 = vld [vmem:[#allocation2 + $0x70] sm:$0x11]
          %v520 = vsel %vm506, 0, %v519
          %521 = vst [vmem:[#allocation2 + $0x70] sm:$0x11] %v520
          %v522 = vld [vmem:[#allocation2 + $0x88] sm:$0x11]
          %v523 = vsel %vm506, 0, %v522
          %524 = vst [vmem:[#allocation2 + $0x88] sm:$0x11] %v523
          %v525 = vld [vmem:[#allocation2 + $0xa0] sm:$0x11]
          %v526 = vsel %vm506, 0, %v525
          %527 = vst [vmem:[#allocation2 + $0xa0] sm:$0x11] %v526
          %v528 = vld [vmem:[#allocation2 + $0xb8] sm:$0x11]
          %v529 = vsel %vm506, 0, %v528
          %530 = vst [vmem:[#allocation2 + $0xb8] sm:$0x11] %v529
          %v531 = vld [vmem:[#allocation2 + $0xd0] sm:$0x11]
          %v532 = vsel %vm506, 0, %v531
          %533 = vst [vmem:[#allocation2 + $0xd0] sm:$0x11] %v532
          %v534 = vld [vmem:[#allocation2 + $0xe8] sm:$0x11]
          %v535 = vsel %vm506, 0, %v534
          %536 = vst [vmem:[#allocation2 + $0xe8] sm:$0x11] %v535
          %v537 = vld [vmem:[#allocation2 + $0x100] sm:$0x11]
          %v538 = vsel %vm506, 0, %v537
          %539 = vst [vmem:[#allocation2 + $0x100] sm:$0x11] %v538
          %v540 = vld [vmem:[#allocation2 + $0x118] sm:$0x11]
          %v541 = vsel %vm506, 0, %v540
          %542 = vst [vmem:[#allocation2 + $0x118] sm:$0x11] %v541
          %v543 = vld [vmem:[#allocation2 + $0x130] sm:$0x11]
          %v544 = vsel %vm506, 0, %v543
          %545 = vst [vmem:[#allocation2 + $0x130] sm:$0x11] %v544
          %v546 = vld [vmem:[#allocation2 + $0x148] sm:$0x11]
          %v547 = vsel %vm506, 0, %v546
          %548 = vst [vmem:[#allocation2 + $0x148] sm:$0x11] %v547
          %v549 = vld [vmem:[#allocation2 + $0x160] sm:$0x11]
          %v550 = vsel %vm506, 0, %v549
          %551 = vst [vmem:[#allocation2 + $0x160] sm:$0x11] %v550
          %v552 = vld [vmem:[#allocation2 + $0x178] sm:$0x11]
          %v553 = vsel %vm506, 0, %v552
          %554 = vst [vmem:[#allocation2 + $0x178] sm:$0x11] %v553
          %v555 = vld [vmem:[#allocation2 + $0x190] sm:$0x11]
          %v556 = vsel %vm506, 0, %v555
          %557 = vst [vmem:[#allocation2 + $0x190] sm:$0x11] %v556
          %v558 = vld [vmem:[#allocation2 + $0x1a8] sm:$0x11]
          %v559 = vsel %vm506, 0, %v558
          %560 = vst [vmem:[#allocation2 + $0x1a8] sm:$0x11] %v559
        $region72: #{tpu_custom_call.1} parent=47 // pred_fallthru
          _
        %v561 = vld [vmem:[%s364] sm:$0xf]
        %v562 = vld [vmem:[%s364 + $0x4] sm:$0xf]
        %v563 = vld [vmem:[%s364 + $0x8] sm:$0xf]
        %v564 = vld [vmem:[%s364 + $0xc] sm:$0xf]
        %v565 = vld [vmem:[%s364 + $0x10] sm:$0xf]
        %v566 = vld [vmem:[%s364 + $0x14] sm:$0xf]
        %v567 = vld [vmem:[%s364 + $0x18] sm:$0xf]
        %v568 = vld [vmem:[%s364 + $0x1c] sm:$0xf]
        %v569 = vld [vmem:[%s364 + $0x20] sm:$0xf]
        %v570 = vld [vmem:[%s364 + $0x24] sm:$0xf]
        %v571 = vld [vmem:[%s364 + $0x28] sm:$0xf]
        %v572 = vld [vmem:[%s364 + $0x2c] sm:$0xf]
        %v573 = vld [vmem:[%s364 + $0x30] sm:$0xf]
        %v574 = vld [vmem:[%s364 + $0x34] sm:$0xf]
        %v575 = vld [vmem:[%s364 + $0x38] sm:$0xf]
        %v576 = vld [vmem:[%s364 + $0x3c] sm:$0xf]
        %v577 = vld [vmem:[%s364 + $0x40] sm:$0xf]
        %v578 = vld [vmem:[%s364 + $0x44] sm:$0xf]
        %v579 = vld [vmem:[%s364 + $0x48] sm:$0xf]
        %v580 = vld [vmem:[%s364 + $0x4c] sm:$0xf]
        %v581 = vld [vmem:[%s364 + $0x50] sm:$0xf]
        %v582 = vld [vmem:[%s364 + $0x54] sm:$0xf]
        %v583 = vld [vmem:[%s364 + $0x58] sm:$0xf]
        %v584 = vld [vmem:[%s364 + $0x5c] sm:$0xf]
        %v585 = vld [vmem:[%s364 + $0x60] sm:$0xf]
        %v586 = vld [vmem:[%s364 + $0x64] sm:$0xf]
        %v587 = vld [vmem:[%s364 + $0x68] sm:$0xf]
        %v588 = vld [vmem:[%s364 + $0x6c] sm:$0xf]
        %v589 = vld [vmem:[%s364 + $0x70] sm:$0xf]
        %v590 = vld [vmem:[%s364 + $0x74] sm:$0xf]
        %v591 = vld [vmem:[%s364 + $0x78] sm:$0xf]
        %v592 = vld [vmem:[%s364 + $0x7c] sm:$0xf]
        %v593 = vld [vmem:[#allocation6] sm:$0xff]
        %v594 = vld [vmem:[#allocation6 + $0x8] sm:$0xff]
        %v595 = vld [vmem:[#allocation6 + $0x10] sm:$0xff]
        %v596 = vld [vmem:[#allocation6 + $0x18] sm:$0xff]
        %v597 = vld [vmem:[#allocation6 + $0x20] sm:$0xff]
        %v598 = vld [vmem:[#allocation6 + $0x28] sm:$0xff]
        %v599 = vld [vmem:[#allocation6 + $0x30] sm:$0xff]
        %v600 = vld [vmem:[#allocation6 + $0x38] sm:$0xff]
        %v601 = vld [vmem:[#allocation6 + $0x40] sm:$0xff]
        %v602 = vld [vmem:[#allocation6 + $0x48] sm:$0xff]
        %v603 = vld [vmem:[#allocation6 + $0x50] sm:$0xff]
        %v604 = vld [vmem:[#allocation6 + $0x58] sm:$0xff]
        %v605 = vld [vmem:[#allocation6 + $0x60] sm:$0xff]
        %v606 = vld [vmem:[#allocation6 + $0x68] sm:$0xff]
        %v607 = vld [vmem:[#allocation6 + $0x70] sm:$0xff]
        %v608 = vld [vmem:[#allocation6 + $0x78] sm:$0xff]
        %v609 = vld [vmem:[#allocation8] sm:$0x3]
        %v611 = vperm.slane %v609, 0
        %v612 = vperm.slane %v609, 1
        %v647 = vunpack.c.l.b16 %v561
        %v648 = vunpack.c.l.b16 %v562
        %v649 = vunpack.c.l.b16 %v563
        %v650 = vunpack.c.l.b16 %v564
        %v651 = vunpack.c.l.b16 %v565
        %v652 = vunpack.c.l.b16 %v566
        %v653 = vunpack.c.l.b16 %v567
        %v654 = vunpack.c.l.b16 %v568
        %v655 = vunpack.c.l.b16 %v569
        %v656 = vunpack.c.l.b16 %v570
        %v657 = vunpack.c.l.b16 %v571
        %v658 = vunpack.c.l.b16 %v572
        %v659 = vunpack.c.l.b16 %v573
        %v660 = vunpack.c.l.b16 %v574
        %v661 = vunpack.c.l.b16 %v575
        %v662 = vunpack.c.l.b16 %v576
        %v663 = vunpack.c.l.b16 %v577
        %v664 = vunpack.c.l.b16 %v578
        %v665 = vunpack.c.l.b16 %v579
        %v666 = vunpack.c.l.b16 %v580
        %v667 = vunpack.c.l.b16 %v581
        %v668 = vunpack.c.l.b16 %v582
        %v669 = vunpack.c.l.b16 %v583
        %v670 = vunpack.c.l.b16 %v584
        %v671 = vunpack.c.l.b16 %v585
        %v672 = vunpack.c.l.b16 %v586
        %v673 = vunpack.c.l.b16 %v587
        %v674 = vunpack.c.l.b16 %v588
        %v675 = vunpack.c.l.b16 %v589
        %v676 = vunpack.c.l.b16 %v590
        %v677 = vunpack.c.l.b16 %v591
        %v678 = vunpack.c.l.b16 %v592
        %v679 = vpack.c.b16 %v648, %v647
        %v680 = vpack.c.b16 %v650, %v649
        %v681 = vpack.c.b16 %v652, %v651
        %v682 = vpack.c.b16 %v654, %v653
        %v683 = vpack.c.b16 %v656, %v655
        %v684 = vpack.c.b16 %v658, %v657
        %v685 = vpack.c.b16 %v660, %v659
        %v686 = vpack.c.b16 %v662, %v661
        %v687 = vpack.c.b16 %v664, %v663
        %v688 = vpack.c.b16 %v666, %v665
        %v689 = vpack.c.b16 %v668, %v667
        %v690 = vpack.c.b16 %v670, %v669
        %v691 = vpack.c.b16 %v672, %v671
        %v692 = vpack.c.b16 %v674, %v673
        %v693 = vpack.c.b16 %v676, %v675
        %v694 = vpack.c.b16 %v678, %v677
        %v727 = vunpack.c.l.b16 %v593
        %v728 = vunpack.c.h.b16 %v593
        %v729 = vunpack.c.l.b16 %v594
        %v730 = vunpack.c.h.b16 %v594
        %v731 = vunpack.c.l.b16 %v595
        %v732 = vunpack.c.h.b16 %v595
        %v733 = vunpack.c.l.b16 %v596
        %v734 = vunpack.c.h.b16 %v596
        %v735 = vunpack.c.l.b16 %v597
        %v736 = vunpack.c.h.b16 %v597
        %v737 = vunpack.c.l.b16 %v598
        %v738 = vunpack.c.h.b16 %v598
        %v739 = vunpack.c.l.b16 %v599
        %v740 = vunpack.c.h.b16 %v599
        %v741 = vunpack.c.l.b16 %v600
        %v742 = vunpack.c.h.b16 %v600
        %v743 = vunpack.c.l.b16 %v601
        %v744 = vunpack.c.h.b16 %v601
        %v745 = vunpack.c.l.b16 %v602
        %v746 = vunpack.c.h.b16 %v602
        %v747 = vunpack.c.l.b16 %v603
        %v748 = vunpack.c.h.b16 %v603
        %v749 = vunpack.c.l.b16 %v604
        %v750 = vunpack.c.h.b16 %v604
        %v751 = vunpack.c.l.b16 %v605
        %v752 = vunpack.c.h.b16 %v605
        %v753 = vunpack.c.l.b16 %v606
        %v754 = vunpack.c.h.b16 %v606
        %v755 = vunpack.c.l.b16 %v607
        %v756 = vunpack.c.h.b16 %v607
        %v757 = vunpack.c.l.b16 %v608
        %v758 = vunpack.c.h.b16 %v608
        %v759 = vpack.c.b16 %v729, %v727
        %v760 = vpack.c.b16 %v730, %v728
        %v761 = vpack.c.b16 %v733, %v731
        %v762 = vpack.c.b16 %v734, %v732
        %v763 = vpack.c.b16 %v737, %v735
        %v764 = vpack.c.b16 %v738, %v736
        %v765 = vpack.c.b16 %v741, %v739
        %v766 = vpack.c.b16 %v742, %v740
        %v767 = vpack.c.b16 %v745, %v743
        %v768 = vpack.c.b16 %v746, %v744
        %v769 = vpack.c.b16 %v749, %v747
        %v770 = vpack.c.b16 %v750, %v748
        %v771 = vpack.c.b16 %v753, %v751
        %v772 = vpack.c.b16 %v754, %v752
        %v773 = vpack.c.b16 %v757, %v755
        %v774 = vpack.c.b16 %v758, %v756
        %791 = vmatpush.bf16.msra.mxu0 %v773
        %792 = vmatpush.bf16.msra.mxu0 %v771
        %793 = vmatpush.bf16.msra.mxu0 %v769
        %794 = vmatpush.bf16.msra.mxu0 %v767
        %795 = vmatpush.bf16.msra.mxu0 %v765
        %796 = vmatpush.bf16.msra.mxu0 %v763
        %797 = vmatpush.bf16.msra.mxu0 %v761
        %798 = vmatpush.bf16.msra.mxu0 %v759
        %799 = vmatmul.bf16.gmra.mxu0 %v679
        %v800 = vpop.f32.mrf.mxu0
        %v801 = vadd.f32 %v611, %v800
        %v802 = vpop.f32.mrf.mxu0
        %v803 = vadd.f32 %v611, %v802
        %804 = vmatmul.bf16.gmra.mxu0 %v680
        %v805 = vpop.f32.mrf.mxu0
        %v806 = vadd.f32 %v611, %v805
        %v807 = vpop.f32.mrf.mxu0
        %v808 = vadd.f32 %v611, %v807
        %809 = vmatmul.bf16.gmra.mxu0 %v681
        %v810 = vpop.f32.mrf.mxu0
        %v811 = vadd.f32 %v611, %v810
        %v812 = vpop.f32.mrf.mxu0
        %v813 = vadd.f32 %v611, %v812
        %814 = vmatmul.bf16.gmra.mxu0 %v682
        %v815 = vpop.f32.mrf.mxu0
        %v816 = vadd.f32 %v611, %v815
        %v817 = vpop.f32.mrf.mxu0
        %v818 = vadd.f32 %v611, %v817
        %819 = vmatmul.bf16.gmra.mxu0 %v683
        %v820 = vpop.f32.mrf.mxu0
        %v821 = vadd.f32 %v611, %v820
        %v822 = vpop.f32.mrf.mxu0
        %v823 = vadd.f32 %v611, %v822
        %824 = vmatmul.bf16.gmra.mxu0 %v684
        %v825 = vpop.f32.mrf.mxu0
        %v826 = vadd.f32 %v611, %v825
        %v827 = vpop.f32.mrf.mxu0
        %v828 = vadd.f32 %v611, %v827
        %829 = vmatmul.bf16.gmra.mxu0 %v685
        %v830 = vpop.f32.mrf.mxu0
        %v831 = vadd.f32 %v611, %v830
        %v832 = vpop.f32.mrf.mxu0
        %v833 = vadd.f32 %v611, %v832
        %834 = vmatmul.bf16.gmra.mxu0 %v686
        %v835 = vpop.f32.mrf.mxu0
        %v836 = vadd.f32 %v611, %v835
        %v837 = vpop.f32.mrf.mxu0
        %v838 = vadd.f32 %v611, %v837
        %839 = vmatmul.bf16.gmra.mxu0 %v687
        %v840 = vpop.f32.mrf.mxu0
        %v841 = vadd.f32 %v611, %v840
        %v842 = vpop.f32.mrf.mxu0
        %v843 = vadd.f32 %v611, %v842
        %844 = vmatmul.bf16.gmra.mxu0 %v688
        %v845 = vpop.f32.mrf.mxu0
        %v846 = vadd.f32 %v611, %v845
        %v847 = vpop.f32.mrf.mxu0
        %v848 = vadd.f32 %v611, %v847
        %849 = vmatmul.bf16.gmra.mxu0 %v689
        %v850 = vpop.f32.mrf.mxu0
        %v851 = vadd.f32 %v611, %v850
        %v852 = vpop.f32.mrf.mxu0
        %v853 = vadd.f32 %v611, %v852
        %854 = vmatmul.bf16.gmra.mxu0 %v690
        %v855 = vpop.f32.mrf.mxu0
        %v856 = vadd.f32 %v611, %v855
        %v857 = vpop.f32.mrf.mxu0
        %v858 = vadd.f32 %v611, %v857
        %859 = vmatmul.bf16.gmra.mxu0 %v691
        %v860 = vpop.f32.mrf.mxu0
        %v861 = vadd.f32 %v611, %v860
        %v862 = vpop.f32.mrf.mxu0
        %v863 = vadd.f32 %v611, %v862
        %864 = vmatmul.bf16.gmra.mxu0 %v692
        %v865 = vpop.f32.mrf.mxu0
        %v866 = vadd.f32 %v611, %v865
        %v867 = vpop.f32.mrf.mxu0
        %v868 = vadd.f32 %v611, %v867
        %869 = vmatmul.bf16.gmra.mxu0 %v693
        %v870 = vpop.f32.mrf.mxu0
        %v871 = vadd.f32 %v611, %v870
        %v872 = vpop.f32.mrf.mxu0
        %v873 = vadd.f32 %v611, %v872
        %874 = vmatmul.bf16.gmra.mxu0 %v694
        %v875 = vpop.f32.mrf.mxu0
        %v876 = vadd.f32 %v611, %v875
        %v877 = vpop.f32.mrf.mxu0
        %v878 = vadd.f32 %v611, %v877
        %879 = vdwg.mxu0
        %880 = vmatpush.bf16.msra.mxu0 %v774
        %881 = vmatpush.bf16.msra.mxu0 %v772
        %882 = vmatpush.bf16.msra.mxu0 %v770
        %883 = vmatpush.bf16.msra.mxu0 %v768
        %884 = vmatpush.bf16.msra.mxu0 %v766
        %885 = vmatpush.bf16.msra.mxu0 %v764
        %886 = vmatpush.bf16.msra.mxu0 %v762
        %887 = vmatpush.bf16.msra.mxu0 %v760
        %888 = vmatmul.bf16.gmra.mxu0 %v679
        %v889 = vpop.f32.mrf.mxu0
        %v890 = vadd.f32 %v612, %v889
        %v891 = vpop.f32.mrf.mxu0
        %v892 = vadd.f32 %v612, %v891
        %893 = vmatmul.bf16.gmra.mxu0 %v680
        %v894 = vpop.f32.mrf.mxu0
        %v895 = vadd.f32 %v612, %v894
        %v896 = vpop.f32.mrf.mxu0
        %v897 = vadd.f32 %v612, %v896
        %898 = vmatmul.bf16.gmra.mxu0 %v681
        %v899 = vpop.f32.mrf.mxu0
        %v900 = vadd.f32 %v612, %v899
        %v901 = vpop.f32.mrf.mxu0
        %v902 = vadd.f32 %v612, %v901
        %903 = vmatmul.bf16.gmra.mxu0 %v682
        %v904 = vpop.f32.mrf.mxu0
        %v905 = vadd.f32 %v612, %v904
        %v906 = vpop.f32.mrf.mxu0
        %v907 = vadd.f32 %v612, %v906
        %908 = vmatmul.bf16.gmra.mxu0 %v683
        %v909 = vpop.f32.mrf.mxu0
        %v910 = vadd.f32 %v612, %v909
        %v911 = vpop.f32.mrf.mxu0
        %v912 = vadd.f32 %v612, %v911
        %913 = vmatmul.bf16.gmra.mxu0 %v684
        %v914 = vpop.f32.mrf.mxu0
        %v915 = vadd.f32 %v612, %v914
        %v916 = vpop.f32.mrf.mxu0
        %v917 = vadd.f32 %v612, %v916
        %918 = vmatmul.bf16.gmra.mxu0 %v685
        %v919 = vpop.f32.mrf.mxu0
        %v920 = vadd.f32 %v612, %v919
        %v921 = vpop.f32.mrf.mxu0
        %v922 = vadd.f32 %v612, %v921
        %923 = vmatmul.bf16.gmra.mxu0 %v686
        %v924 = vpop.f32.mrf.mxu0
        %v925 = vadd.f32 %v612, %v924
        %v926 = vpop.f32.mrf.mxu0
        %v927 = vadd.f32 %v612, %v926
        %928 = vmatmul.bf16.gmra.mxu0 %v687
        %v929 = vpop.f32.mrf.mxu0
        %v930 = vadd.f32 %v612, %v929
        %v931 = vpop.f32.mrf.mxu0
        %v932 = vadd.f32 %v612, %v931
        %933 = vmatmul.bf16.gmra.mxu0 %v688
        %v934 = vpop.f32.mrf.mxu0
        %v935 = vadd.f32 %v612, %v934
        %v936 = vpop.f32.mrf.mxu0
        %v937 = vadd.f32 %v612, %v936
        %938 = vmatmul.bf16.gmra.mxu0 %v689
        %v939 = vpop.f32.mrf.mxu0
        %v940 = vadd.f32 %v612, %v939
        %v941 = vpop.f32.mrf.mxu0
        %v942 = vadd.f32 %v612, %v941
        %943 = vmatmul.bf16.gmra.mxu0 %v690
        %v944 = vpop.f32.mrf.mxu0
        %v945 = vadd.f32 %v612, %v944
        %v946 = vpop.f32.mrf.mxu0
        %v947 = vadd.f32 %v612, %v946
        %948 = vmatmul.bf16.gmra.mxu0 %v691
        %v949 = vpop.f32.mrf.mxu0
        %v950 = vadd.f32 %v612, %v949
        %v951 = vpop.f32.mrf.mxu0
        %v952 = vadd.f32 %v612, %v951
        %953 = vmatmul.bf16.gmra.mxu0 %v692
        %v954 = vpop.f32.mrf.mxu0
        %v955 = vadd.f32 %v612, %v954
        %v956 = vpop.f32.mrf.mxu0
        %v957 = vadd.f32 %v612, %v956
        %958 = vmatmul.bf16.gmra.mxu0 %v693
        %v959 = vpop.f32.mrf.mxu0
        %v960 = vadd.f32 %v612, %v959
        %v961 = vpop.f32.mrf.mxu0
        %v962 = vadd.f32 %v612, %v961
        %963 = vmatmul.bf16.gmra.mxu0 %v694
        %v964 = vpop.f32.mrf.mxu0
        %v965 = vadd.f32 %v612, %v964
        %v966 = vpop.f32.mrf.mxu0
        %v967 = vadd.f32 %v612, %v966
        %968 = vdwg.mxu0
        %v969 = vmax.f32 %v801, 0.0
        %v970 = vmax.f32 %v890, 0.0
        %v971 = vmax.f32 %v803, 0.0
        %v972 = vmax.f32 %v892, 0.0
        %v973 = vmax.f32 %v806, 0.0
        %v974 = vmax.f32 %v895, 0.0
        %v975 = vmax.f32 %v808, 0.0
        %v976 = vmax.f32 %v897, 0.0
        %v977 = vmax.f32 %v811, 0.0
        %v978 = vmax.f32 %v900, 0.0
        %v979 = vmax.f32 %v813, 0.0
        %v980 = vmax.f32 %v902, 0.0
        %v981 = vmax.f32 %v816, 0.0
        %v982 = vmax.f32 %v905, 0.0
        %v983 = vmax.f32 %v818, 0.0
        %v984 = vmax.f32 %v907, 0.0
        %v985 = vmax.f32 %v821, 0.0
        %v986 = vmax.f32 %v910, 0.0
        %v987 = vmax.f32 %v823, 0.0
        %v988 = vmax.f32 %v912, 0.0
        %v989 = vmax.f32 %v826, 0.0
        %v990 = vmax.f32 %v915, 0.0
        %v991 = vmax.f32 %v828, 0.0
        %v992 = vmax.f32 %v917, 0.0
        %v993 = vmax.f32 %v831, 0.0
        %v994 = vmax.f32 %v920, 0.0
        %v995 = vmax.f32 %v833, 0.0
        %v996 = vmax.f32 %v922, 0.0
        %v997 = vmax.f32 %v836, 0.0
        %v998 = vmax.f32 %v925, 0.0
        %v999 = vmax.f32 %v838, 0.0
        %v1000 = vmax.f32 %v927, 0.0
        %v1001 = vmax.f32 %v841, 0.0
        %v1002 = vmax.f32 %v930, 0.0
        %v1003 = vmax.f32 %v843, 0.0
        %v1004 = vmax.f32 %v932, 0.0
        %v1005 = vmax.f32 %v846, 0.0
        %v1006 = vmax.f32 %v935, 0.0
        %v1007 = vmax.f32 %v848, 0.0
        %v1008 = vmax.f32 %v937, 0.0
        %v1009 = vmax.f32 %v851, 0.0
        %v1010 = vmax.f32 %v940, 0.0
        %v1011 = vmax.f32 %v853, 0.0
        %v1012 = vmax.f32 %v942, 0.0
        %v1013 = vmax.f32 %v856, 0.0
        %v1014 = vmax.f32 %v945, 0.0
        %v1015 = vmax.f32 %v858, 0.0
        %v1016 = vmax.f32 %v947, 0.0
        %v1017 = vmax.f32 %v861, 0.0
        %v1018 = vmax.f32 %v950, 0.0
        %v1019 = vmax.f32 %v863, 0.0
        %v1020 = vmax.f32 %v952, 0.0
        %v1021 = vmax.f32 %v866, 0.0
        %v1022 = vmax.f32 %v955, 0.0
        %v1023 = vmax.f32 %v868, 0.0
        %v1024 = vmax.f32 %v957, 0.0
        %v1025 = vmax.f32 %v871, 0.0
        %v1026 = vmax.f32 %v960, 0.0
        %v1027 = vmax.f32 %v873, 0.0
        %v1028 = vmax.f32 %v962, 0.0
        %v1029 = vmax.f32 %v876, 0.0
        %v1030 = vmax.f32 %v965, 0.0
        %v1031 = vmax.f32 %v878, 0.0
        %v1032 = vmax.f32 %v967, 0.0
        %v1033 = vmin.f32 %v969, 6.0
        %v1034 = vmin.f32 %v970, 6.0
        %v1035 = vmin.f32 %v971, 6.0
        %v1036 = vmin.f32 %v972, 6.0
        %v1037 = vmin.f32 %v973, 6.0
        %v1038 = vmin.f32 %v974, 6.0
        %v1039 = vmin.f32 %v975, 6.0
        %v1040 = vmin.f32 %v976, 6.0
        %v1041 = vmin.f32 %v977, 6.0
        %v1042 = vmin.f32 %v978, 6.0
        %v1043 = vmin.f32 %v979, 6.0
        %v1044 = vmin.f32 %v980, 6.0
        %v1045 = vmin.f32 %v981, 6.0
        %v1046 = vmin.f32 %v982, 6.0
        %v1047 = vmin.f32 %v983, 6.0
        %v1048 = vmin.f32 %v984, 6.0
        %v1049 = vmin.f32 %v985, 6.0
        %v1050 = vmin.f32 %v986, 6.0
        %v1051 = vmin.f32 %v987, 6.0
        %v1052 = vmin.f32 %v988, 6.0
        %v1053 = vmin.f32 %v989, 6.0
        %v1054 = vmin.f32 %v990, 6.0
        %v1055 = vmin.f32 %v991, 6.0
        %v1056 = vmin.f32 %v992, 6.0
        %v1057 = vmin.f32 %v993, 6.0
        %v1058 = vmin.f32 %v994, 6.0
        %v1059 = vmin.f32 %v995, 6.0
        %v1060 = vmin.f32 %v996, 6.0
        %v1061 = vmin.f32 %v997, 6.0
        %v1062 = vmin.f32 %v998, 6.0
        %v1063 = vmin.f32 %v999, 6.0
        %v1064 = vmin.f32 %v1000, 6.0
        %v1065 = vmin.f32 %v1001, 6.0
        %v1066 = vmin.f32 %v1002, 6.0
        %v1067 = vmin.f32 %v1003, 6.0
        %v1068 = vmin.f32 %v1004, 6.0
        %v1069 = vmin.f32 %v1005, 6.0
        %v1070 = vmin.f32 %v1006, 6.0
        %v1071 = vmin.f32 %v1007, 6.0
        %v1072 = vmin.f32 %v1008, 6.0
        %v1073 = vmin.f32 %v1009, 6.0
        %v1074 = vmin.f32 %v1010, 6.0
        %v1075 = vmin.f32 %v1011, 6.0
        %v1076 = vmin.f32 %v1012, 6.0
        %v1077 = vmin.f32 %v1013, 6.0
        %v1078 = vmin.f32 %v1014, 6.0
        %v1079 = vmin.f32 %v1015, 6.0
        %v1080 = vmin.f32 %v1016, 6.0
        %v1081 = vmin.f32 %v1017, 6.0
        %v1082 = vmin.f32 %v1018, 6.0
        %v1083 = vmin.f32 %v1019, 6.0
        %v1084 = vmin.f32 %v1020, 6.0
        %v1085 = vmin.f32 %v1021, 6.0
        %v1086 = vmin.f32 %v1022, 6.0
        %v1087 = vmin.f32 %v1023, 6.0
        %v1088 = vmin.f32 %v1024, 6.0
        %v1089 = vmin.f32 %v1025, 6.0
        %v1090 = vmin.f32 %v1026, 6.0
        %v1091 = vmin.f32 %v1027, 6.0
        %v1092 = vmin.f32 %v1028, 6.0
        %v1093 = vmin.f32 %v1029, 6.0
        %v1094 = vmin.f32 %v1030, 6.0
        %v1095 = vmin.f32 %v1031, 6.0
        %v1096 = vmin.f32 %v1032, 6.0
        %v1097 = vpack.c.bf16 %v1034, %v1033
        %v1098 = vpack.c.bf16 %v1036, %v1035
        %v1099 = vpack.c.bf16 %v1038, %v1037
        %v1100 = vpack.c.bf16 %v1040, %v1039
        %v1101 = vpack.c.bf16 %v1042, %v1041
        %v1102 = vpack.c.bf16 %v1044, %v1043
        %v1103 = vpack.c.bf16 %v1046, %v1045
        %v1104 = vpack.c.bf16 %v1048, %v1047
        %v1105 = vpack.c.bf16 %v1050, %v1049
        %v1106 = vpack.c.bf16 %v1052, %v1051
        %v1107 = vpack.c.bf16 %v1054, %v1053
        %v1108 = vpack.c.bf16 %v1056, %v1055
        %v1109 = vpack.c.bf16 %v1058, %v1057
        %v1110 = vpack.c.bf16 %v1060, %v1059
        %v1111 = vpack.c.bf16 %v1062, %v1061
        %v1112 = vpack.c.bf16 %v1064, %v1063
        %v1113 = vpack.c.bf16 %v1066, %v1065
        %v1114 = vpack.c.bf16 %v1068, %v1067
        %v1115 = vpack.c.bf16 %v1070, %v1069
        %v1116 = vpack.c.bf16 %v1072, %v1071
        %v1117 = vpack.c.bf16 %v1074, %v1073
        %v1118 = vpack.c.bf16 %v1076, %v1075
        %v1119 = vpack.c.bf16 %v1078, %v1077
        %v1120 = vpack.c.bf16 %v1080, %v1079
        %v1121 = vpack.c.bf16 %v1082, %v1081
        %v1122 = vpack.c.bf16 %v1084, %v1083
        %v1123 = vpack.c.bf16 %v1086, %v1085
        %v1124 = vpack.c.bf16 %v1088, %v1087
        %v1125 = vpack.c.bf16 %v1090, %v1089
        %v1126 = vpack.c.bf16 %v1092, %v1091
        %v1127 = vpack.c.bf16 %v1094, %v1093
        %v1128 = vpack.c.bf16 %v1096, %v1095
        %vm1129 = vsmask.f32 256
        %vm1130 = vsmask.f32 4368
        %vm1131 = vmor %vm1129, %vm1130
        %v1133 = vshrl.u32 %v1097, 16
        %v1135 = vrot.slane %v1133, 7
        %v1136 = vshll.u32 %v1097, 16
        %v1138 = vor.u32 %v1135, %v1136
        %v1139 = vrot.slane %v1135, 4
        %v1141 = vshrl.u32 %v1098, 16
        %v1143 = vrot.slane %v1141, 7
        %v1144 = vshll.u32 %v1098, 16
        %v1146 = vor.u32 %v1143, %v1144
        %v1147 = vsel %vm1131, %v1139, %v1146
        %v1148 = vrot.slane %v1143, 4
        %v1150 = vshrl.u32 %v1099, 16
        %v1152 = vrot.slane %v1150, 7
        %v1153 = vshll.u32 %v1099, 16
        %v1155 = vor.u32 %v1152, %v1153
        %v1156 = vrot.slane %v1152, 4
        %v1158 = vshrl.u32 %v1100, 16
        %v1160 = vrot.slane %v1158, 7
        %v1161 = vshll.u32 %v1100, 16
        %v1163 = vor.u32 %v1160, %v1161
        %v1164 = vsel %vm1131, %v1156, %v1163
        %v1165 = vrot.slane %v1160, 4
        %v1167 = vshrl.u32 %v1101, 16
        %v1169 = vrot.slane %v1167, 7
        %v1170 = vshll.u32 %v1101, 16
        %v1172 = vor.u32 %v1169, %v1170
        %v1173 = vrot.slane %v1169, 4
        %v1175 = vshrl.u32 %v1102, 16
        %v1177 = vrot.slane %v1175, 7
        %v1178 = vshll.u32 %v1102, 16
        %v1180 = vor.u32 %v1177, %v1178
        %v1181 = vsel %vm1131, %v1173, %v1180
        %v1182 = vrot.slane %v1177, 4
        %v1184 = vshrl.u32 %v1103, 16
        %v1186 = vrot.slane %v1184, 7
        %v1187 = vshll.u32 %v1103, 16
        %v1189 = vor.u32 %v1186, %v1187
        %v1190 = vrot.slane %v1186, 4
        %v1192 = vshrl.u32 %v1104, 16
        %v1194 = vrot.slane %v1192, 7
        %v1195 = vshll.u32 %v1104, 16
        %v1197 = vor.u32 %v1194, %v1195
        %v1198 = vsel %vm1131, %v1190, %v1197
        %v1199 = vrot.slane %v1194, 4
        %v1201 = vshrl.u32 %v1105, 16
        %v1203 = vrot.slane %v1201, 7
        %v1204 = vshll.u32 %v1105, 16
        %v1206 = vor.u32 %v1203, %v1204
        %v1207 = vrot.slane %v1203, 4
        %v1209 = vshrl.u32 %v1106, 16
        %v1211 = vrot.slane %v1209, 7
        %v1212 = vshll.u32 %v1106, 16
        %v1214 = vor.u32 %v1211, %v1212
        %v1215 = vsel %vm1131, %v1207, %v1214
        %v1216 = vrot.slane %v1211, 4
        %v1218 = vshrl.u32 %v1107, 16
        %v1220 = vrot.slane %v1218, 7
        %v1221 = vshll.u32 %v1107, 16
        %v1223 = vor.u32 %v1220, %v1221
        %v1224 = vrot.slane %v1220, 4
        %v1226 = vshrl.u32 %v1108, 16
        %v1228 = vrot.slane %v1226, 7
        %v1229 = vshll.u32 %v1108, 16
        %v1231 = vor.u32 %v1228, %v1229
        %v1232 = vsel %vm1131, %v1224, %v1231
        %v1233 = vrot.slane %v1228, 4
        %v1235 = vshrl.u32 %v1109, 16
        %v1237 = vrot.slane %v1235, 7
        %v1238 = vshll.u32 %v1109, 16
        %v1240 = vor.u32 %v1237, %v1238
        %v1241 = vrot.slane %v1237, 4
        %v1243 = vshrl.u32 %v1110, 16
        %v1245 = vrot.slane %v1243, 7
        %v1246 = vshll.u32 %v1110, 16
        %v1248 = vor.u32 %v1245, %v1246
        %v1249 = vsel %vm1131, %v1241, %v1248
        %v1250 = vrot.slane %v1245, 4
        %v1252 = vshrl.u32 %v1111, 16
        %v1254 = vrot.slane %v1252, 7
        %v1255 = vshll.u32 %v1111, 16
        %v1257 = vor.u32 %v1254, %v1255
        %v1258 = vrot.slane %v1254, 4
        %v1260 = vshrl.u32 %v1112, 16
        %v1262 = vrot.slane %v1260, 7
        %v1263 = vshll.u32 %v1112, 16
        %v1265 = vor.u32 %v1262, %v1263
        %v1266 = vsel %vm1131, %v1258, %v1265
        %v1267 = vrot.slane %v1262, 4
        %v1269 = vshrl.u32 %v1113, 16
        %v1271 = vrot.slane %v1269, 7
        %v1272 = vshll.u32 %v1113, 16
        %v1274 = vor.u32 %v1271, %v1272
        %v1275 = vrot.slane %v1271, 4
        %v1277 = vshrl.u32 %v1114, 16
        %v1279 = vrot.slane %v1277, 7
        %v1280 = vshll.u32 %v1114, 16
        %v1282 = vor.u32 %v1279, %v1280
        %v1283 = vsel %vm1131, %v1275, %v1282
        %v1284 = vrot.slane %v1279, 4
        %v1286 = vshrl.u32 %v1115, 16
        %v1288 = vrot.slane %v1286, 7
        %v1289 = vshll.u32 %v1115, 16
        %v1291 = vor.u32 %v1288, %v1289
        %v1292 = vrot.slane %v1288, 4
        %v1294 = vshrl.u32 %v1116, 16
        %v1296 = vrot.slane %v1294, 7
        %v1297 = vshll.u32 %v1116, 16
        %v1299 = vor.u32 %v1296, %v1297
        %v1300 = vsel %vm1131, %v1292, %v1299
        %v1301 = vrot.slane %v1296, 4
        %v1303 = vshrl.u32 %v1117, 16
        %v1305 = vrot.slane %v1303, 7
        %v1306 = vshll.u32 %v1117, 16
        %v1308 = vor.u32 %v1305, %v1306
        %v1309 = vrot.slane %v1305, 4
        %v1311 = vshrl.u32 %v1118, 16
        %v1313 = vrot.slane %v1311, 7
        %v1314 = vshll.u32 %v1118, 16
        %v1316 = vor.u32 %v1313, %v1314
        %v1317 = vsel %vm1131, %v1309, %v1316
        %v1318 = vrot.slane %v1313, 4
        %v1320 = vshrl.u32 %v1119, 16
        %v1322 = vrot.slane %v1320, 7
        %v1323 = vshll.u32 %v1119, 16
        %v1325 = vor.u32 %v1322, %v1323
        %v1326 = vrot.slane %v1322, 4
        %v1328 = vshrl.u32 %v1120, 16
        %v1330 = vrot.slane %v1328, 7
        %v1331 = vshll.u32 %v1120, 16
        %v1333 = vor.u32 %v1330, %v1331
        %v1334 = vsel %vm1131, %v1326, %v1333
        %v1335 = vrot.slane %v1330, 4
        %v1337 = vshrl.u32 %v1121, 16
        %v1339 = vrot.slane %v1337, 7
        %v1340 = vshll.u32 %v1121, 16
        %v1342 = vor.u32 %v1339, %v1340
        %v1343 = vrot.slane %v1339, 4
        %v1345 = vshrl.u32 %v1122, 16
        %v1347 = vrot.slane %v1345, 7
        %v1348 = vshll.u32 %v1122, 16
        %v1350 = vor.u32 %v1347, %v1348
        %v1351 = vsel %vm1131, %v1343, %v1350
        %v1352 = vrot.slane %v1347, 4
        %v1354 = vshrl.u32 %v1123, 16
        %v1356 = vrot.slane %v1354, 7
        %v1357 = vshll.u32 %v1123, 16
        %v1359 = vor.u32 %v1356, %v1357
        %v1360 = vrot.slane %v1356, 4
        %v1362 = vshrl.u32 %v1124, 16
        %v1364 = vrot.slane %v1362, 7
        %v1365 = vshll.u32 %v1124, 16
        %v1367 = vor.u32 %v1364, %v1365
        %v1368 = vsel %vm1131, %v1360, %v1367
        %v1369 = vrot.slane %v1364, 4
        %v1371 = vshrl.u32 %v1125, 16
        %v1373 = vrot.slane %v1371, 7
        %v1374 = vshll.u32 %v1125, 16
        %v1376 = vor.u32 %v1373, %v1374
        %v1377 = vrot.slane %v1373, 4
        %v1379 = vshrl.u32 %v1126, 16
        %v1381 = vrot.slane %v1379, 7
        %v1382 = vshll.u32 %v1126, 16
        %v1384 = vor.u32 %v1381, %v1382
        %v1385 = vsel %vm1131, %v1377, %v1384
        %v1386 = vrot.slane %v1381, 4
        %v1388 = vshrl.u32 %v1127, 16
        %v1390 = vrot.slane %v1388, 7
        %v1391 = vshll.u32 %v1127, 16
        %v1393 = vor.u32 %v1390, %v1391
        %v1394 = vrot.slane %v1390, 4
        %v1396 = vshrl.u32 %v1128, 16
        %v1398 = vrot.slane %v1396, 7
        %v1399 = vshll.u32 %v1128, 16
        %v1401 = vor.u32 %v1398, %v1399
        %v1402 = vsel %vm1131, %v1394, %v1401
        %v1403 = vrot.slane %v1398, 4
        %s1452 = scalar_lea.vmem [#allocation2], 24
        %vm1453 = vcmask 1043456
        %vm1454 = vsmask.f32 7938
        %vm1455 = vmand %vm1453, %vm1454
        %vm1456 = vcmask 1047556
        %vm1457 = vsmask.f32 7954
        %vm1458 = vmand %vm1456, %vm1457
        %vm1459 = vmor %vm1458, %vm1455
        %v1460 = vld [vmem:[%s1452] sm:$0xff]
        %v1461 = vsel %vm1459, %v1138, %v1460
        %1462 = vst [vmem:[%s1452] sm:$0xff] %v1461
        %1463 = vst [vmem:[%s1452 + $0x8] sm:$0xff] %v1147
        %vm1464 = vcmask 1040384
        %vm1465 = vmand %vm1464, %vm1129
        %vm1466 = vcmask 1044484
        %vm1467 = vsmask.f32 4352
        %vm1468 = vmand %vm1466, %vm1467
        %vm1469 = vmor %vm1468, %vm1465
        %v1470 = vld [vmem:[%s1452 + $0x10] sm:$0x11]
        %v1471 = vsel %vm1469, %v1148, %v1470
        %1472 = vst [vmem:[%s1452 + $0x10] sm:$0x11] %v1471
        %v1473 = vld [vmem:[%s1452 + $0x18] sm:$0xff]
        %v1474 = vsel %vm1459, %v1155, %v1473
        %1475 = vst [vmem:[%s1452 + $0x18] sm:$0xff] %v1474
        %1476 = vst [vmem:[%s1452 + $0x20] sm:$0xff] %v1164
        %v1477 = vld [vmem:[%s1452 + $0x28] sm:$0x11]
        %v1478 = vsel %vm1469, %v1165, %v1477
        %1479 = vst [vmem:[%s1452 + $0x28] sm:$0x11] %v1478
        %v1480 = vld [vmem:[%s1452 + $0x30] sm:$0xff]
        %v1481 = vsel %vm1459, %v1172, %v1480
        %1482 = vst [vmem:[%s1452 + $0x30] sm:$0xff] %v1481
        %1483 = vst [vmem:[%s1452 + $0x38] sm:$0xff] %v1181
        %v1484 = vld [vmem:[%s1452 + $0x40] sm:$0x11]
        %v1485 = vsel %vm1469, %v1182, %v1484
        %1486 = vst [vmem:[%s1452 + $0x40] sm:$0x11] %v1485
        %v1487 = vld [vmem:[%s1452 + $0x48] sm:$0xff]
        %v1488 = vsel %vm1459, %v1189, %v1487
        %1489 = vst [vmem:[%s1452 + $0x48] sm:$0xff] %v1488
        %1490 = vst [vmem:[%s1452 + $0x50] sm:$0xff] %v1198
        %v1491 = vld [vmem:[%s1452 + $0x58] sm:$0x11]
        %v1492 = vsel %vm1469, %v1199, %v1491
        %1493 = vst [vmem:[%s1452 + $0x58] sm:$0x11] %v1492
        %v1494 = vld [vmem:[%s1452 + $0x60] sm:$0xff]
        %v1495 = vsel %vm1459, %v1206, %v1494
        %1496 = vst [vmem:[%s1452 + $0x60] sm:$0xff] %v1495
        %1497 = vst [vmem:[%s1452 + $0x68] sm:$0xff] %v1215
        %v1498 = vld [vmem:[%s1452 + $0x70] sm:$0x11]
        %v1499 = vsel %vm1469, %v1216, %v1498
        %1500 = vst [vmem:[%s1452 + $0x70] sm:$0x11] %v1499
        %v1501 = vld [vmem:[%s1452 + $0x78] sm:$0xff]
        %v1502 = vsel %vm1459, %v1223, %v1501
        %1503 = vst [vmem:[%s1452 + $0x78] sm:$0xff] %v1502
        %1504 = vst [vmem:[%s1452 + $0x80] sm:$0xff] %v1232
        %v1505 = vld [vmem:[%s1452 + $0x88] sm:$0x11]
        %v1506 = vsel %vm1469, %v1233, %v1505
        %1507 = vst [vmem:[%s1452 + $0x88] sm:$0x11] %v1506
        %v1508 = vld [vmem:[%s1452 + $0x90] sm:$0xff]
        %v1509 = vsel %vm1459, %v1240, %v1508
        %1510 = vst [vmem:[%s1452 + $0x90] sm:$0xff] %v1509
        %1511 = vst [vmem:[%s1452 + $0x98] sm:$0xff] %v1249
        %v1512 = vld [vmem:[%s1452 + $0xa0] sm:$0x11]
        %v1513 = vsel %vm1469, %v1250, %v1512
        %1514 = vst [vmem:[%s1452 + $0xa0] sm:$0x11] %v1513
        %v1515 = vld [vmem:[%s1452 + $0xa8] sm:$0xff]
        %v1516 = vsel %vm1459, %v1257, %v1515
        %1517 = vst [vmem:[%s1452 + $0xa8] sm:$0xff] %v1516
        %1518 = vst [vmem:[%s1452 + $0xb0] sm:$0xff] %v1266
        %v1519 = vld [vmem:[%s1452 + $0xb8] sm:$0x11]
        %v1520 = vsel %vm1469, %v1267, %v1519
        %1521 = vst [vmem:[%s1452 + $0xb8] sm:$0x11] %v1520
        %v1522 = vld [vmem:[%s1452 + $0xc0] sm:$0xff]
        %v1523 = vsel %vm1459, %v1274, %v1522
        %1524 = vst [vmem:[%s1452 + $0xc0] sm:$0xff] %v1523
        %1525 = vst [vmem:[%s1452 + $0xc8] sm:$0xff] %v1283
        %v1526 = vld [vmem:[%s1452 + $0xd0] sm:$0x11]
        %v1527 = vsel %vm1469, %v1284, %v1526
        %1528 = vst [vmem:[%s1452 + $0xd0] sm:$0x11] %v1527
        %v1529 = vld [vmem:[%s1452 + $0xd8] sm:$0xff]
        %v1530 = vsel %vm1459, %v1291, %v1529
        %1531 = vst [vmem:[%s1452 + $0xd8] sm:$0xff] %v1530
        %1532 = vst [vmem:[%s1452 + $0xe0] sm:$0xff] %v1300
        %v1533 = vld [vmem:[%s1452 + $0xe8] sm:$0x11]
        %v1534 = vsel %vm1469, %v1301, %v1533
        %1535 = vst [vmem:[%s1452 + $0xe8] sm:$0x11] %v1534
        %v1536 = vld [vmem:[%s1452 + $0xf0] sm:$0xff]
        %v1537 = vsel %vm1459, %v1308, %v1536
        %1538 = vst [vmem:[%s1452 + $0xf0] sm:$0xff] %v1537
        %1539 = vst [vmem:[%s1452 + $0xf8] sm:$0xff] %v1317
        %v1540 = vld [vmem:[%s1452 + $0x100] sm:$0x11]
        %v1541 = vsel %vm1469, %v1318, %v1540
        %1542 = vst [vmem:[%s1452 + $0x100] sm:$0x11] %v1541
        %v1543 = vld [vmem:[%s1452 + $0x108] sm:$0xff]
        %v1544 = vsel %vm1459, %v1325, %v1543
        %1545 = vst [vmem:[%s1452 + $0x108] sm:$0xff] %v1544
        %1546 = vst [vmem:[%s1452 + $0x110] sm:$0xff] %v1334
        %v1547 = vld [vmem:[%s1452 + $0x118] sm:$0x11]
        %v1548 = vsel %vm1469, %v1335, %v1547
        %1549 = vst [vmem:[%s1452 + $0x118] sm:$0x11] %v1548
        %v1550 = vld [vmem:[%s1452 + $0x120] sm:$0xff]
        %v1551 = vsel %vm1459, %v1342, %v1550
        %1552 = vst [vmem:[%s1452 + $0x120] sm:$0xff] %v1551
        %1553 = vst [vmem:[%s1452 + $0x128] sm:$0xff] %v1351
        %v1554 = vld [vmem:[%s1452 + $0x130] sm:$0x11]
        %v1555 = vsel %vm1469, %v1352, %v1554
        %1556 = vst [vmem:[%s1452 + $0x130] sm:$0x11] %v1555
        %v1557 = vld [vmem:[%s1452 + $0x138] sm:$0xff]
        %v1558 = vsel %vm1459, %v1359, %v1557
        %1559 = vst [vmem:[%s1452 + $0x138] sm:$0xff] %v1558
        %1560 = vst [vmem:[%s1452 + $0x140] sm:$0xff] %v1368
        %v1561 = vld [vmem:[%s1452 + $0x148] sm:$0x11]
        %v1562 = vsel %vm1469, %v1369, %v1561
        %1563 = vst [vmem:[%s1452 + $0x148] sm:$0x11] %v1562
        %v1564 = vld [vmem:[%s1452 + $0x150] sm:$0xff]
        %v1565 = vsel %vm1459, %v1376, %v1564
        %1566 = vst [vmem:[%s1452 + $0x150] sm:$0xff] %v1565
        %1567 = vst [vmem:[%s1452 + $0x158] sm:$0xff] %v1385
        %v1568 = vld [vmem:[%s1452 + $0x160] sm:$0x11]
        %v1569 = vsel %vm1469, %v1386, %v1568
        %1570 = vst [vmem:[%s1452 + $0x160] sm:$0x11] %v1569
        %v1571 = vld [vmem:[%s1452 + $0x168] sm:$0xff]
        %v1572 = vsel %vm1459, %v1393, %v1571
        %1573 = vst [vmem:[%s1452 + $0x168] sm:$0xff] %v1572
        %1574 = vst [vmem:[%s1452 + $0x170] sm:$0xff] %v1402
        %v1575 = vld [vmem:[%s1452 + $0x178] sm:$0x11]
        %v1576 = vsel %vm1469, %v1403, %v1575
        %1577 = vst [vmem:[%s1452 + $0x178] sm:$0x11] %v1576
        %v1578 = vld [vmem:[#allocation9] sm:$0x77]
        %v1579 = vld [vmem:[#allocation9 + $0x8] sm:$0x77]
        %v1580 = vld [vmem:[#allocation9 + $0x10] sm:$0x77]
        %v1581 = vld [vmem:[%s426] sm:$0x3]
        %v1582 = vld [vmem:[#allocation2] sm:$0xff]
        %v1583 = vld [vmem:[#allocation2 + $0x8] sm:$0xff]
        %v1584 = vld [vmem:[#allocation2 + $0x18] sm:$0xff]
        %v1585 = vld [vmem:[#allocation2 + $0x20] sm:$0xff]
        %v1586 = vld [vmem:[#allocation2 + $0x30] sm:$0xff]
        %v1587 = vld [vmem:[#allocation2 + $0x38] sm:$0xff]
        %v1588 = vld [vmem:[#allocation2 + $0x48] sm:$0xff]
        %v1589 = vld [vmem:[#allocation2 + $0x50] sm:$0xff]
        %v1590 = vld [vmem:[#allocation2 + $0x60] sm:$0xff]
        %v1591 = vld [vmem:[#allocation2 + $0x68] sm:$0xff]
        %v1592 = vld [vmem:[#allocation2 + $0x78] sm:$0xff]
        %v1593 = vld [vmem:[#allocation2 + $0x80] sm:$0xff]
        %v1594 = vld [vmem:[#allocation2 + $0x90] sm:$0xff]
        %v1595 = vld [vmem:[#allocation2 + $0x98] sm:$0xff]
        %v1596 = vld [vmem:[#allocation2 + $0xa8] sm:$0xff]
        %v1597 = vld [vmem:[#allocation2 + $0xb0] sm:$0xff]
        %v1598 = vld [vmem:[#allocation2 + $0xc0] sm:$0xff]
        %v1599 = vld [vmem:[#allocation2 + $0xc8] sm:$0xff]
        %v1600 = vld [vmem:[#allocation2 + $0xd8] sm:$0xff]
        %v1601 = vld [vmem:[#allocation2 + $0xe0] sm:$0xff]
        %v1602 = vld [vmem:[#allocation2 + $0xf0] sm:$0xff]
        %v1603 = vld [vmem:[#allocation2 + $0xf8] sm:$0xff]
        %v1604 = vld [vmem:[#allocation2 + $0x108] sm:$0xff]
        %v1605 = vld [vmem:[#allocation2 + $0x110] sm:$0xff]
        %v1606 = vld [vmem:[#allocation2 + $0x120] sm:$0xff]
        %v1607 = vld [vmem:[#allocation2 + $0x128] sm:$0xff]
        %v1608 = vld [vmem:[#allocation2 + $0x138] sm:$0xff]
        %v1609 = vld [vmem:[#allocation2 + $0x140] sm:$0xff]
        %v1610 = vld [vmem:[#allocation2 + $0x150] sm:$0xff]
        %v1611 = vld [vmem:[#allocation2 + $0x158] sm:$0xff]
        %v1612 = vld [vmem:[#allocation2 + $0x168] sm:$0xff]
        %v1613 = vld [vmem:[#allocation2 + $0x170] sm:$0xff]
        %v1614 = vunpack.c.l.bf16 %v1582
        %v1615 = vunpack.c.h.bf16 %v1582
        %v1616 = vunpack.c.l.bf16 %v1583
        %v1617 = vunpack.c.h.bf16 %v1583
        %v1618 = vunpack.c.l.bf16 %v1584
        %v1619 = vunpack.c.h.bf16 %v1584
        %v1620 = vunpack.c.l.bf16 %v1585
        %v1621 = vunpack.c.h.bf16 %v1585
        %v1622 = vunpack.c.l.bf16 %v1586
        %v1623 = vunpack.c.h.bf16 %v1586
        %v1624 = vunpack.c.l.bf16 %v1587
        %v1625 = vunpack.c.h.bf16 %v1587
        %v1626 = vunpack.c.l.bf16 %v1588
        %v1627 = vunpack.c.h.bf16 %v1588
        %v1628 = vunpack.c.l.bf16 %v1589
        %v1629 = vunpack.c.h.bf16 %v1589
        %v1630 = vunpack.c.l.bf16 %v1590
        %v1631 = vunpack.c.h.bf16 %v1590
        %v1632 = vunpack.c.l.bf16 %v1591
        %v1633 = vunpack.c.h.bf16 %v1591
        %v1634 = vunpack.c.l.bf16 %v1592
        %v1635 = vunpack.c.h.bf16 %v1592
        %v1636 = vunpack.c.l.bf16 %v1593
        %v1637 = vunpack.c.h.bf16 %v1593
        %v1638 = vunpack.c.l.bf16 %v1594
        %v1639 = vunpack.c.h.bf16 %v1594
        %v1640 = vunpack.c.l.bf16 %v1595
        %v1641 = vunpack.c.h.bf16 %v1595
        %v1642 = vunpack.c.l.bf16 %v1596
        %v1643 = vunpack.c.h.bf16 %v1596
        %v1644 = vunpack.c.l.bf16 %v1597
        %v1645 = vunpack.c.h.bf16 %v1597
        %v1646 = vunpack.c.l.bf16 %v1598
        %v1647 = vunpack.c.h.bf16 %v1598
        %v1648 = vunpack.c.l.bf16 %v1599
        %v1649 = vunpack.c.h.bf16 %v1599
        %v1650 = vunpack.c.l.bf16 %v1600
        %v1651 = vunpack.c.h.bf16 %v1600
        %v1652 = vunpack.c.l.bf16 %v1601
        %v1653 = vunpack.c.h.bf16 %v1601
        %v1654 = vunpack.c.l.bf16 %v1602
        %v1655 = vunpack.c.h.bf16 %v1602
        %v1656 = vunpack.c.l.bf16 %v1603
        %v1657 = vunpack.c.h.bf16 %v1603
        %v1658 = vunpack.c.l.bf16 %v1604
        %v1659 = vunpack.c.h.bf16 %v1604
        %v1660 = vunpack.c.l.bf16 %v1605
        %v1661 = vunpack.c.h.bf16 %v1605
        %v1662 = vunpack.c.l.bf16 %v1606
        %v1663 = vunpack.c.h.bf16 %v1606
        %v1664 = vunpack.c.l.bf16 %v1607
        %v1665 = vunpack.c.h.bf16 %v1607
        %v1666 = vunpack.c.l.bf16 %v1608
        %v1667 = vunpack.c.h.bf16 %v1608
        %v1668 = vunpack.c.l.bf16 %v1609
        %v1669 = vunpack.c.h.bf16 %v1609
        %v1670 = vunpack.c.l.bf16 %v1610
        %v1671 = vunpack.c.h.bf16 %v1610
        %v1672 = vunpack.c.l.bf16 %v1611
        %v1673 = vunpack.c.h.bf16 %v1611
        %v1674 = vunpack.c.l.bf16 %v1612
        %v1675 = vunpack.c.h.bf16 %v1612
        %v1676 = vunpack.c.l.bf16 %v1613
        %v1677 = vunpack.c.h.bf16 %v1613
        %v1679 = vperm.slane %v1578, 0
        %v1680 = vperm.slane %v1578, 4
        %v1683 = vperm.slane %v1679, 0
        %v1684 = vperm.slane %v1680, 0
        %v1685 = vmul.f32 %v1614, %v1683
        %v1686 = vmul.f32 %v1615, %v1684
        %v1687 = vmul.f32 %v1616, %v1683
        %v1688 = vmul.f32 %v1617, %v1684
        %v1689 = vmul.f32 %v1618, %v1683
        %v1690 = vmul.f32 %v1619, %v1684
        %v1691 = vmul.f32 %v1620, %v1683
        %v1692 = vmul.f32 %v1621, %v1684
        %v1693 = vmul.f32 %v1622, %v1683
        %v1694 = vmul.f32 %v1623, %v1684
        %v1695 = vmul.f32 %v1624, %v1683
        %v1696 = vmul.f32 %v1625, %v1684
        %v1697 = vmul.f32 %v1626, %v1683
        %v1698 = vmul.f32 %v1627, %v1684
        %v1699 = vmul.f32 %v1628, %v1683
        %v1700 = vmul.f32 %v1629, %v1684
        %v1701 = vmul.f32 %v1630, %v1683
        %v1702 = vmul.f32 %v1631, %v1684
        %v1703 = vmul.f32 %v1632, %v1683
        %v1704 = vmul.f32 %v1633, %v1684
        %v1705 = vmul.f32 %v1634, %v1683
        %v1706 = vmul.f32 %v1635, %v1684
        %v1707 = vmul.f32 %v1636, %v1683
        %v1708 = vmul.f32 %v1637, %v1684
        %v1709 = vmul.f32 %v1638, %v1683
        %v1710 = vmul.f32 %v1639, %v1684
        %v1711 = vmul.f32 %v1640, %v1683
        %v1712 = vmul.f32 %v1641, %v1684
        %v1713 = vmul.f32 %v1642, %v1683
        %v1714 = vmul.f32 %v1643, %v1684
        %v1715 = vmul.f32 %v1644, %v1683
        %v1716 = vmul.f32 %v1645, %v1684
        %v1717 = vmul.f32 %v1646, %v1683
        %v1718 = vmul.f32 %v1647, %v1684
        %v1719 = vmul.f32 %v1648, %v1683
        %v1720 = vmul.f32 %v1649, %v1684
        %v1721 = vmul.f32 %v1650, %v1683
        %v1722 = vmul.f32 %v1651, %v1684
        %v1723 = vmul.f32 %v1652, %v1683
        %v1724 = vmul.f32 %v1653, %v1684
        %v1725 = vmul.f32 %v1654, %v1683
        %v1726 = vmul.f32 %v1655, %v1684
        %v1727 = vmul.f32 %v1656, %v1683
        %v1728 = vmul.f32 %v1657, %v1684
        %v1729 = vmul.f32 %v1658, %v1683
        %v1730 = vmul.f32 %v1659, %v1684
        %v1731 = vmul.f32 %v1660, %v1683
        %v1732 = vmul.f32 %v1661, %v1684
        %v1733 = vmul.f32 %v1662, %v1683
        %v1734 = vmul.f32 %v1663, %v1684
        %v1735 = vmul.f32 %v1664, %v1683
        %v1736 = vmul.f32 %v1665, %v1684
        %v1737 = vmul.f32 %v1666, %v1683
        %v1738 = vmul.f32 %v1667, %v1684
        %v1739 = vmul.f32 %v1668, %v1683
        %v1740 = vmul.f32 %v1669, %v1684
        %v1741 = vmul.f32 %v1670, %v1683
        %v1742 = vmul.f32 %v1671, %v1684
        %v1743 = vmul.f32 %v1672, %v1683
        %v1744 = vmul.f32 %v1673, %v1684
        %v1745 = vmul.f32 %v1674, %v1683
        %v1746 = vmul.f32 %v1675, %v1684
        %v1747 = vmul.f32 %v1676, %v1683
        %v1748 = vmul.f32 %v1677, %v1684
        %v1749 = vadd.f32 %v1685, 0.0
        %v1750 = vadd.f32 %v1686, 0.0
        %v1751 = vadd.f32 %v1687, 0.0
        %v1752 = vadd.f32 %v1688, 0.0
        %v1753 = vadd.f32 %v1689, 0.0
        %v1754 = vadd.f32 %v1690, 0.0
        %v1755 = vadd.f32 %v1691, 0.0
        %v1756 = vadd.f32 %v1692, 0.0
        %v1757 = vadd.f32 %v1693, 0.0
        %v1758 = vadd.f32 %v1694, 0.0
        %v1759 = vadd.f32 %v1695, 0.0
        %v1760 = vadd.f32 %v1696, 0.0
        %v1761 = vadd.f32 %v1697, 0.0
        %v1762 = vadd.f32 %v1698, 0.0
        %v1763 = vadd.f32 %v1699, 0.0
        %v1764 = vadd.f32 %v1700, 0.0
        %v1765 = vadd.f32 %v1701, 0.0
        %v1766 = vadd.f32 %v1702, 0.0
        %v1767 = vadd.f32 %v1703, 0.0
        %v1768 = vadd.f32 %v1704, 0.0
        %v1769 = vadd.f32 %v1705, 0.0
        %v1770 = vadd.f32 %v1706, 0.0
        %v1771 = vadd.f32 %v1707, 0.0
        %v1772 = vadd.f32 %v1708, 0.0
        %v1773 = vadd.f32 %v1709, 0.0
        %v1774 = vadd.f32 %v1710, 0.0
        %v1775 = vadd.f32 %v1711, 0.0
        %v1776 = vadd.f32 %v1712, 0.0
        %v1777 = vadd.f32 %v1713, 0.0
        %v1778 = vadd.f32 %v1714, 0.0
        %v1779 = vadd.f32 %v1715, 0.0
        %v1780 = vadd.f32 %v1716, 0.0
        %v1781 = vadd.f32 %v1717, 0.0
        %v1782 = vadd.f32 %v1718, 0.0
        %v1783 = vadd.f32 %v1719, 0.0
        %v1784 = vadd.f32 %v1720, 0.0
        %v1785 = vadd.f32 %v1721, 0.0
        %v1786 = vadd.f32 %v1722, 0.0
        %v1787 = vadd.f32 %v1723, 0.0
        %v1788 = vadd.f32 %v1724, 0.0
        %v1789 = vadd.f32 %v1725, 0.0
        %v1790 = vadd.f32 %v1726, 0.0
        %v1791 = vadd.f32 %v1727, 0.0
        %v1792 = vadd.f32 %v1728, 0.0
        %v1793 = vadd.f32 %v1729, 0.0
        %v1794 = vadd.f32 %v1730, 0.0
        %v1795 = vadd.f32 %v1731, 0.0
        %v1796 = vadd.f32 %v1732, 0.0
        %v1797 = vadd.f32 %v1733, 0.0
        %v1798 = vadd.f32 %v1734, 0.0
        %v1799 = vadd.f32 %v1735, 0.0
        %v1800 = vadd.f32 %v1736, 0.0
        %v1801 = vadd.f32 %v1737, 0.0
        %v1802 = vadd.f32 %v1738, 0.0
        %v1803 = vadd.f32 %v1739, 0.0
        %v1804 = vadd.f32 %v1740, 0.0
        %v1805 = vadd.f32 %v1741, 0.0
        %v1806 = vadd.f32 %v1742, 0.0
        %v1807 = vadd.f32 %v1743, 0.0
        %v1808 = vadd.f32 %v1744, 0.0
        %v1809 = vadd.f32 %v1745, 0.0
        %v1810 = vadd.f32 %v1746, 0.0
        %v1811 = vadd.f32 %v1747, 0.0
        %v1812 = vadd.f32 %v1748, 0.0
        %v1813 = vld [vmem:[#allocation2 + $0x10] sm:$0x11]
        %v1814 = vld [vmem:[#allocation2 + $0x28] sm:$0x11]
        %v1815 = vld [vmem:[#allocation2 + $0x40] sm:$0x11]
        %v1816 = vld [vmem:[#allocation2 + $0x58] sm:$0x11]
        %v1817 = vld [vmem:[#allocation2 + $0x70] sm:$0x11]
        %v1818 = vld [vmem:[#allocation2 + $0x88] sm:$0x11]
        %v1819 = vld [vmem:[#allocation2 + $0xa0] sm:$0x11]
        %v1820 = vld [vmem:[#allocation2 + $0xb8] sm:$0x11]
        %v1821 = vld [vmem:[#allocation2 + $0xd0] sm:$0x11]
        %v1822 = vld [vmem:[#allocation2 + $0xe8] sm:$0x11]
        %v1823 = vld [vmem:[#allocation2 + $0x100] sm:$0x11]
        %v1824 = vld [vmem:[#allocation2 + $0x118] sm:$0x11]
        %v1825 = vld [vmem:[#allocation2 + $0x130] sm:$0x11]
        %v1826 = vld [vmem:[#allocation2 + $0x148] sm:$0x11]
        %v1827 = vld [vmem:[#allocation2 + $0x160] sm:$0x11]
        %v1828 = vld [vmem:[#allocation2 + $0x178] sm:$0x11]
        %v1829 = vunpack.c.l.bf16 %v1813
        %v1830 = vunpack.c.h.bf16 %v1813
        %v1831 = vunpack.c.l.bf16 %v1814
        %v1832 = vunpack.c.h.bf16 %v1814
        %v1833 = vunpack.c.l.bf16 %v1815
        %v1834 = vunpack.c.h.bf16 %v1815
        %v1835 = vunpack.c.l.bf16 %v1816
        %v1836 = vunpack.c.h.bf16 %v1816
        %v1837 = vunpack.c.l.bf16 %v1817
        %v1838 = vunpack.c.h.bf16 %v1817
        %v1839 = vunpack.c.l.bf16 %v1818
        %v1840 = vunpack.c.h.bf16 %v1818
        %v1841 = vunpack.c.l.bf16 %v1819
        %v1842 = vunpack.c.h.bf16 %v1819
        %v1843 = vunpack.c.l.bf16 %v1820
        %v1844 = vunpack.c.h.bf16 %v1820
        %v1845 = vunpack.c.l.bf16 %v1821
        %v1846 = vunpack.c.h.bf16 %v1821
        %v1847 = vunpack.c.l.bf16 %v1822
        %v1848 = vunpack.c.h.bf16 %v1822
        %v1849 = vunpack.c.l.bf16 %v1823
        %v1850 = vunpack.c.h.bf16 %v1823
        %v1851 = vunpack.c.l.bf16 %v1824
        %v1852 = vunpack.c.h.bf16 %v1824
        %v1853 = vunpack.c.l.bf16 %v1825
        %v1854 = vunpack.c.h.bf16 %v1825
        %v1855 = vunpack.c.l.bf16 %v1826
        %v1856 = vunpack.c.h.bf16 %v1826
        %v1857 = vunpack.c.l.bf16 %v1827
        %v1858 = vunpack.c.h.bf16 %v1827
        %v1859 = vunpack.c.l.bf16 %v1828
        %v1860 = vunpack.c.h.bf16 %v1828
        %v1861 = vperm.slane %v1578, 1
        %v1862 = vperm.slane %v1578, 5
        %v1865 = vperm.slane %v1861, 1
        %v1866 = vperm.slane %v1862, 1
        %v1867 = vmul.f32 %v1614, %v1865
        %v1868 = vmul.f32 %v1615, %v1866
        %v1869 = vmul.f32 %v1616, %v1865
        %v1870 = vmul.f32 %v1617, %v1866
        %v1871 = vmul.f32 %v1829, %v1865
        %v1872 = vmul.f32 %v1830, %v1866
        %v1873 = vmul.f32 %v1618, %v1865
        %v1874 = vmul.f32 %v1619, %v1866
        %v1875 = vmul.f32 %v1620, %v1865
        %v1876 = vmul.f32 %v1621, %v1866
        %v1877 = vmul.f32 %v1831, %v1865
        %v1878 = vmul.f32 %v1832, %v1866
        %v1879 = vmul.f32 %v1622, %v1865
        %v1880 = vmul.f32 %v1623, %v1866
        %v1881 = vmul.f32 %v1624, %v1865
        %v1882 = vmul.f32 %v1625, %v1866
        %v1883 = vmul.f32 %v1833, %v1865
        %v1884 = vmul.f32 %v1834, %v1866
        %v1885 = vmul.f32 %v1626, %v1865
        %v1886 = vmul.f32 %v1627, %v1866
        %v1887 = vmul.f32 %v1628, %v1865
        %v1888 = vmul.f32 %v1629, %v1866
        %v1889 = vmul.f32 %v1835, %v1865
        %v1890 = vmul.f32 %v1836, %v1866
        %v1891 = vmul.f32 %v1630, %v1865
        %v1892 = vmul.f32 %v1631, %v1866
        %v1893 = vmul.f32 %v1632, %v1865
        %v1894 = vmul.f32 %v1633, %v1866
        %v1895 = vmul.f32 %v1837, %v1865
        %v1896 = vmul.f32 %v1838, %v1866
        %v1897 = vmul.f32 %v1634, %v1865
        %v1898 = vmul.f32 %v1635, %v1866
        %v1899 = vmul.f32 %v1636, %v1865
        %v1900 = vmul.f32 %v1637, %v1866
        %v1901 = vmul.f32 %v1839, %v1865
        %v1902 = vmul.f32 %v1840, %v1866
        %v1903 = vmul.f32 %v1638, %v1865
        %v1904 = vmul.f32 %v1639, %v1866
        %v1905 = vmul.f32 %v1640, %v1865
        %v1906 = vmul.f32 %v1641, %v1866
        %v1907 = vmul.f32 %v1841, %v1865
        %v1908 = vmul.f32 %v1842, %v1866
        %v1909 = vmul.f32 %v1642, %v1865
        %v1910 = vmul.f32 %v1643, %v1866
        %v1911 = vmul.f32 %v1644, %v1865
        %v1912 = vmul.f32 %v1645, %v1866
        %v1913 = vmul.f32 %v1843, %v1865
        %v1914 = vmul.f32 %v1844, %v1866
        %v1915 = vmul.f32 %v1646, %v1865
        %v1916 = vmul.f32 %v1647, %v1866
        %v1917 = vmul.f32 %v1648, %v1865
        %v1918 = vmul.f32 %v1649, %v1866
        %v1919 = vmul.f32 %v1845, %v1865
        %v1920 = vmul.f32 %v1846, %v1866
        %v1921 = vmul.f32 %v1650, %v1865
        %v1922 = vmul.f32 %v1651, %v1866
        %v1923 = vmul.f32 %v1652, %v1865
        %v1924 = vmul.f32 %v1653, %v1866
        %v1925 = vmul.f32 %v1847, %v1865
        %v1926 = vmul.f32 %v1848, %v1866
        %v1927 = vmul.f32 %v1654, %v1865
        %v1928 = vmul.f32 %v1655, %v1866
        %v1929 = vmul.f32 %v1656, %v1865
        %v1930 = vmul.f32 %v1657, %v1866
        %v1931 = vmul.f32 %v1849, %v1865
        %v1932 = vmul.f32 %v1850, %v1866
        %v1933 = vmul.f32 %v1658, %v1865
        %v1934 = vmul.f32 %v1659, %v1866
        %v1935 = vmul.f32 %v1660, %v1865
        %v1936 = vmul.f32 %v1661, %v1866
        %v1937 = vmul.f32 %v1851, %v1865
        %v1938 = vmul.f32 %v1852, %v1866
        %v1939 = vmul.f32 %v1662, %v1865
        %v1940 = vmul.f32 %v1663, %v1866
        %v1941 = vmul.f32 %v1664, %v1865
        %v1942 = vmul.f32 %v1665, %v1866
        %v1943 = vmul.f32 %v1853, %v1865
        %v1944 = vmul.f32 %v1854, %v1866
        %v1945 = vmul.f32 %v1666, %v1865
        %v1946 = vmul.f32 %v1667, %v1866
        %v1947 = vmul.f32 %v1668, %v1865
        %v1948 = vmul.f32 %v1669, %v1866
        %v1949 = vmul.f32 %v1855, %v1865
        %v1950 = vmul.f32 %v1856, %v1866
        %v1951 = vmul.f32 %v1670, %v1865
        %v1952 = vmul.f32 %v1671, %v1866
        %v1953 = vmul.f32 %v1672, %v1865
        %v1954 = vmul.f32 %v1673, %v1866
        %v1955 = vmul.f32 %v1857, %v1865
        %v1956 = vmul.f32 %v1858, %v1866
        %v1957 = vmul.f32 %v1674, %v1865
        %v1958 = vmul.f32 %v1675, %v1866
        %v1959 = vmul.f32 %v1676, %v1865
        %v1960 = vmul.f32 %v1677, %v1866
        %v1961 = vmul.f32 %v1859, %v1865
        %v1962 = vmul.f32 %v1860, %v1866
        %vm2059 = vcmask 1046528
        %v2060 = vrot.slane %v1867, 1
        %v2061 = vrot.slane %v1869, 1
        %v2062 = vsel %vm2059, %v2060, %v2061
        %v2063 = vrot.slane %v1868, 1
        %v2064 = vrot.slane %v1870, 1
        %v2065 = vsel %vm2059, %v2063, %v2064
        %v2066 = vrot.slane %v1871, 1
        %v2067 = vsel %vm2059, %v2061, %v2066
        %v2068 = vrot.slane %v1872, 1
        %v2069 = vsel %vm2059, %v2064, %v2068
        %v2070 = vrot.slane %v1873, 1
        %v2071 = vrot.slane %v1875, 1
        %v2072 = vsel %vm2059, %v2070, %v2071
        %v2073 = vrot.slane %v1874, 1
        %v2074 = vrot.slane %v1876, 1
        %v2075 = vsel %vm2059, %v2073, %v2074
        %v2076 = vrot.slane %v1877, 1
        %v2077 = vsel %vm2059, %v2071, %v2076
        %v2078 = vrot.slane %v1878, 1
        %v2079 = vsel %vm2059, %v2074, %v2078
        %v2080 = vrot.slane %v1879, 1
        %v2081 = vrot.slane %v1881, 1
        %v2082 = vsel %vm2059, %v2080, %v2081
        %v2083 = vrot.slane %v1880, 1
        %v2084 = vrot.slane %v1882, 1
        %v2085 = vsel %vm2059, %v2083, %v2084
        %v2086 = vrot.slane %v1883, 1
        %v2087 = vsel %vm2059, %v2081, %v2086
        %v2088 = vrot.slane %v1884, 1
        %v2089 = vsel %vm2059, %v2084, %v2088
        %v2090 = vrot.slane %v1885, 1
        %v2091 = vrot.slane %v1887, 1
        %v2092 = vsel %vm2059, %v2090, %v2091
        %v2093 = vrot.slane %v1886, 1
        %v2094 = vrot.slane %v1888, 1
        %v2095 = vsel %vm2059, %v2093, %v2094
        %v2096 = vrot.slane %v1889, 1
        %v2097 = vsel %vm2059, %v2091, %v2096
        %v2098 = vrot.slane %v1890, 1
        %v2099 = vsel %vm2059, %v2094, %v2098
        %v2100 = vrot.slane %v1891, 1
        %v2101 = vrot.slane %v1893, 1
        %v2102 = vsel %vm2059, %v2100, %v2101
        %v2103 = vrot.slane %v1892, 1
        %v2104 = vrot.slane %v1894, 1
        %v2105 = vsel %vm2059, %v2103, %v2104
        %v2106 = vrot.slane %v1895, 1
        %v2107 = vsel %vm2059, %v2101, %v2106
        %v2108 = vrot.slane %v1896, 1
        %v2109 = vsel %vm2059, %v2104, %v2108
        %v2110 = vrot.slane %v1897, 1
        %v2111 = vrot.slane %v1899, 1
        %v2112 = vsel %vm2059, %v2110, %v2111
        %v2113 = vrot.slane %v1898, 1
        %v2114 = vrot.slane %v1900, 1
        %v2115 = vsel %vm2059, %v2113, %v2114
        %v2116 = vrot.slane %v1901, 1
        %v2117 = vsel %vm2059, %v2111, %v2116
        %v2118 = vrot.slane %v1902, 1
        %v2119 = vsel %vm2059, %v2114, %v2118
        %v2120 = vrot.slane %v1903, 1
        %v2121 = vrot.slane %v1905, 1
        %v2122 = vsel %vm2059, %v2120, %v2121
        %v2123 = vrot.slane %v1904, 1
        %v2124 = vrot.slane %v1906, 1
        %v2125 = vsel %vm2059, %v2123, %v2124
        %v2126 = vrot.slane %v1907, 1
        %v2127 = vsel %vm2059, %v2121, %v2126
        %v2128 = vrot.slane %v1908, 1
        %v2129 = vsel %vm2059, %v2124, %v2128
        %v2130 = vrot.slane %v1909, 1
        %v2131 = vrot.slane %v1911, 1
        %v2132 = vsel %vm2059, %v2130, %v2131
        %v2133 = vrot.slane %v1910, 1
        %v2134 = vrot.slane %v1912, 1
        %v2135 = vsel %vm2059, %v2133, %v2134
        %v2136 = vrot.slane %v1913, 1
        %v2137 = vsel %vm2059, %v2131, %v2136
        %v2138 = vrot.slane %v1914, 1
        %v2139 = vsel %vm2059, %v2134, %v2138
        %v2140 = vrot.slane %v1915, 1
        %v2141 = vrot.slane %v1917, 1
        %v2142 = vsel %vm2059, %v2140, %v2141
        %v2143 = vrot.slane %v1916, 1
        %v2144 = vrot.slane %v1918, 1
        %v2145 = vsel %vm2059, %v2143, %v2144
        %v2146 = vrot.slane %v1919, 1
        %v2147 = vsel %vm2059, %v2141, %v2146
        %v2148 = vrot.slane %v1920, 1
        %v2149 = vsel %vm2059, %v2144, %v2148
        %v2150 = vrot.slane %v1921, 1
        %v2151 = vrot.slane %v1923, 1
        %v2152 = vsel %vm2059, %v2150, %v2151
        %v2153 = vrot.slane %v1922, 1
        %v2154 = vrot.slane %v1924, 1
        %v2155 = vsel %vm2059, %v2153, %v2154
        %v2156 = vrot.slane %v1925, 1
        %v2157 = vsel %vm2059, %v2151, %v2156
        %v2158 = vrot.slane %v1926, 1
        %v2159 = vsel %vm2059, %v2154, %v2158
        %v2160 = vrot.slane %v1927, 1
        %v2161 = vrot.slane %v1929, 1
        %v2162 = vsel %vm2059, %v2160, %v2161
        %v2163 = vrot.slane %v1928, 1
        %v2164 = vrot.slane %v1930, 1
        %v2165 = vsel %vm2059, %v2163, %v2164
        %v2166 = vrot.slane %v1931, 1
        %v2167 = vsel %vm2059, %v2161, %v2166
        %v2168 = vrot.slane %v1932, 1
        %v2169 = vsel %vm2059, %v2164, %v2168
        %v2170 = vrot.slane %v1933, 1
        %v2171 = vrot.slane %v1935, 1
        %v2172 = vsel %vm2059, %v2170, %v2171
        %v2173 = vrot.slane %v1934, 1
        %v2174 = vrot.slane %v1936, 1
        %v2175 = vsel %vm2059, %v2173, %v2174
        %v2176 = vrot.slane %v1937, 1
        %v2177 = vsel %vm2059, %v2171, %v2176
        %v2178 = vrot.slane %v1938, 1
        %v2179 = vsel %vm2059, %v2174, %v2178
        %v2180 = vrot.slane %v1939, 1
        %v2181 = vrot.slane %v1941, 1
        %v2182 = vsel %vm2059, %v2180, %v2181
        %v2183 = vrot.slane %v1940, 1
        %v2184 = vrot.slane %v1942, 1
        %v2185 = vsel %vm2059, %v2183, %v2184
        %v2186 = vrot.slane %v1943, 1
        %v2187 = vsel %vm2059, %v2181, %v2186
        %v2188 = vrot.slane %v1944, 1
        %v2189 = vsel %vm2059, %v2184, %v2188
        %v2190 = vrot.slane %v1945, 1
        %v2191 = vrot.slane %v1947, 1
        %v2192 = vsel %vm2059, %v2190, %v2191
        %v2193 = vrot.slane %v1946, 1
        %v2194 = vrot.slane %v1948, 1
        %v2195 = vsel %vm2059, %v2193, %v2194
        %v2196 = vrot.slane %v1949, 1
        %v2197 = vsel %vm2059, %v2191, %v2196
        %v2198 = vrot.slane %v1950, 1
        %v2199 = vsel %vm2059, %v2194, %v2198
        %v2200 = vrot.slane %v1951, 1
        %v2201 = vrot.slane %v1953, 1
        %v2202 = vsel %vm2059, %v2200, %v2201
        %v2203 = vrot.slane %v1952, 1
        %v2204 = vrot.slane %v1954, 1
        %v2205 = vsel %vm2059, %v2203, %v2204
        %v2206 = vrot.slane %v1955, 1
        %v2207 = vsel %vm2059, %v2201, %v2206
        %v2208 = vrot.slane %v1956, 1
        %v2209 = vsel %vm2059, %v2204, %v2208
        %v2210 = vrot.slane %v1957, 1
        %v2211 = vrot.slane %v1959, 1
        %v2212 = vsel %vm2059, %v2210, %v2211
        %v2213 = vrot.slane %v1958, 1
        %v2214 = vrot.slane %v1960, 1
        %v2215 = vsel %vm2059, %v2213, %v2214
        %v2216 = vrot.slane %v1961, 1
        %v2217 = vsel %vm2059, %v2211, %v2216
        %v2218 = vrot.slane %v1962, 1
        %v2219 = vsel %vm2059, %v2214, %v2218
        %v2284 = vadd.f32 %v1749, %v2062
        %v2285 = vadd.f32 %v1750, %v2065
        %v2286 = vadd.f32 %v1751, %v2067
        %v2287 = vadd.f32 %v1752, %v2069
        %v2288 = vadd.f32 %v1753, %v2072
        %v2289 = vadd.f32 %v1754, %v2075
        %v2290 = vadd.f32 %v1755, %v2077
        %v2291 = vadd.f32 %v1756, %v2079
        %v2292 = vadd.f32 %v1757, %v2082
        %v2293 = vadd.f32 %v1758, %v2085
        %v2294 = vadd.f32 %v1759, %v2087
        %v2295 = vadd.f32 %v1760, %v2089
        %v2296 = vadd.f32 %v1761, %v2092
        %v2297 = vadd.f32 %v1762, %v2095
        %v2298 = vadd.f32 %v1763, %v2097
        %v2299 = vadd.f32 %v1764, %v2099
        %v2300 = vadd.f32 %v1765, %v2102
        %v2301 = vadd.f32 %v1766, %v2105
        %v2302 = vadd.f32 %v1767, %v2107
        %v2303 = vadd.f32 %v1768, %v2109
        %v2304 = vadd.f32 %v1769, %v2112
        %v2305 = vadd.f32 %v1770, %v2115
        %v2306 = vadd.f32 %v1771, %v2117
        %v2307 = vadd.f32 %v1772, %v2119
        %v2308 = vadd.f32 %v1773, %v2122
        %v2309 = vadd.f32 %v1774, %v2125
        %v2310 = vadd.f32 %v1775, %v2127
        %v2311 = vadd.f32 %v1776, %v2129
        %v2312 = vadd.f32 %v1777, %v2132
        %v2313 = vadd.f32 %v1778, %v2135
        %v2314 = vadd.f32 %v1779, %v2137
        %v2315 = vadd.f32 %v1780, %v2139
        %v2316 = vadd.f32 %v1781, %v2142
        %v2317 = vadd.f32 %v1782, %v2145
        %v2318 = vadd.f32 %v1783, %v2147
        %v2319 = vadd.f32 %v1784, %v2149
        %v2320 = vadd.f32 %v1785, %v2152
        %v2321 = vadd.f32 %v1786, %v2155
        %v2322 = vadd.f32 %v1787, %v2157
        %v2323 = vadd.f32 %v1788, %v2159
        %v2324 = vadd.f32 %v1789, %v2162
        %v2325 = vadd.f32 %v1790, %v2165
        %v2326 = vadd.f32 %v1791, %v2167
        %v2327 = vadd.f32 %v1792, %v2169
        %v2328 = vadd.f32 %v1793, %v2172
        %v2329 = vadd.f32 %v1794, %v2175
        %v2330 = vadd.f32 %v1795, %v2177
        %v2331 = vadd.f32 %v1796, %v2179
        %v2332 = vadd.f32 %v1797, %v2182
        %v2333 = vadd.f32 %v1798, %v2185
        %v2334 = vadd.f32 %v1799, %v2187
        %v2335 = vadd.f32 %v1800, %v2189
        %v2336 = vadd.f32 %v1801, %v2192
        %v2337 = vadd.f32 %v1802, %v2195
        %v2338 = vadd.f32 %v1803, %v2197
        %v2339 = vadd.f32 %v1804, %v2199
        %v2340 = vadd.f32 %v1805, %v2202
        %v2341 = vadd.f32 %v1806, %v2205
        %v2342 = vadd.f32 %v1807, %v2207
        %v2343 = vadd.f32 %v1808, %v2209
        %v2344 = vadd.f32 %v1809, %v2212
        %v2345 = vadd.f32 %v1810, %v2215
        %v2346 = vadd.f32 %v1811, %v2217
        %v2347 = vadd.f32 %v1812, %v2219
        %v2348 = vld [vmem:[#allocation2] sm:$0xee]
        %v2349 = vld [vmem:[#allocation2 + $0x18] sm:$0xee]
        %v2350 = vld [vmem:[#allocation2 + $0x30] sm:$0xee]
        %v2351 = vld [vmem:[#allocation2 + $0x48] sm:$0xee]
        %v2352 = vld [vmem:[#allocation2 + $0x60] sm:$0xee]
        %v2353 = vld [vmem:[#allocation2 + $0x78] sm:$0xee]
        %v2354 = vld [vmem:[#allocation2 + $0x90] sm:$0xee]
        %v2355 = vld [vmem:[#allocation2 + $0xa8] sm:$0xee]
        %v2356 = vld [vmem:[#allocation2 + $0xc0] sm:$0xee]
        %v2357 = vld [vmem:[#allocation2 + $0xd8] sm:$0xee]
        %v2358 = vld [vmem:[#allocation2 + $0xf0] sm:$0xee]
        %v2359 = vld [vmem:[#allocation2 + $0x108] sm:$0xee]
        %v2360 = vld [vmem:[#allocation2 + $0x120] sm:$0xee]
        %v2361 = vld [vmem:[#allocation2 + $0x138] sm:$0xee]
        %v2362 = vld [vmem:[#allocation2 + $0x150] sm:$0xee]
        %v2363 = vld [vmem:[#allocation2 + $0x168] sm:$0xee]
        %v2364 = vunpack.c.l.bf16 %v2348
        %v2365 = vunpack.c.h.bf16 %v2348
        %v2366 = vunpack.c.l.bf16 %v2349
        %v2367 = vunpack.c.h.bf16 %v2349
        %v2368 = vunpack.c.l.bf16 %v2350
        %v2369 = vunpack.c.h.bf16 %v2350
        %v2370 = vunpack.c.l.bf16 %v2351
        %v2371 = vunpack.c.h.bf16 %v2351
        %v2372 = vunpack.c.l.bf16 %v2352
        %v2373 = vunpack.c.h.bf16 %v2352
        %v2374 = vunpack.c.l.bf16 %v2353
        %v2375 = vunpack.c.h.bf16 %v2353
        %v2376 = vunpack.c.l.bf16 %v2354
        %v2377 = vunpack.c.h.bf16 %v2354
        %v2378 = vunpack.c.l.bf16 %v2355
        %v2379 = vunpack.c.h.bf16 %v2355
        %v2380 = vunpack.c.l.bf16 %v2356
        %v2381 = vunpack.c.h.bf16 %v2356
        %v2382 = vunpack.c.l.bf16 %v2357
        %v2383 = vunpack.c.h.bf16 %v2357
        %v2384 = vunpack.c.l.bf16 %v2358
        %v2385 = vunpack.c.h.bf16 %v2358
        %v2386 = vunpack.c.l.bf16 %v2359
        %v2387 = vunpack.c.h.bf16 %v2359
        %v2388 = vunpack.c.l.bf16 %v2360
        %v2389 = vunpack.c.h.bf16 %v2360
        %v2390 = vunpack.c.l.bf16 %v2361
        %v2391 = vunpack.c.h.bf16 %v2361
        %v2392 = vunpack.c.l.bf16 %v2362
        %v2393 = vunpack.c.h.bf16 %v2362
        %v2394 = vunpack.c.l.bf16 %v2363
        %v2395 = vunpack.c.h.bf16 %v2363
        %v2396 = vperm.slane %v1578, 2
        %v2397 = vperm.slane %v1578, 6
        %v2400 = vperm.slane %v2396, 2
        %v2401 = vperm.slane %v2397, 2
        %v2402 = vmul.f32 %v2364, %v2400
        %v2403 = vmul.f32 %v2365, %v2401
        %v2404 = vmul.f32 %v1616, %v2400
        %v2405 = vmul.f32 %v1617, %v2401
        %v2406 = vmul.f32 %v1829, %v2400
        %v2407 = vmul.f32 %v1830, %v2401
        %v2408 = vmul.f32 %v2366, %v2400
        %v2409 = vmul.f32 %v2367, %v2401
        %v2410 = vmul.f32 %v1620, %v2400
        %v2411 = vmul.f32 %v1621, %v2401
        %v2412 = vmul.f32 %v1831, %v2400
        %v2413 = vmul.f32 %v1832, %v2401
        %v2414 = vmul.f32 %v2368, %v2400
        %v2415 = vmul.f32 %v2369, %v2401
        %v2416 = vmul.f32 %v1624, %v2400
        %v2417 = vmul.f32 %v1625, %v2401
        %v2418 = vmul.f32 %v1833, %v2400
        %v2419 = vmul.f32 %v1834, %v2401
        %v2420 = vmul.f32 %v2370, %v2400
        %v2421 = vmul.f32 %v2371, %v2401
        %v2422 = vmul.f32 %v1628, %v2400
        %v2423 = vmul.f32 %v1629, %v2401
        %v2424 = vmul.f32 %v1835, %v2400
        %v2425 = vmul.f32 %v1836, %v2401
        %v2426 = vmul.f32 %v2372, %v2400
        %v2427 = vmul.f32 %v2373, %v2401
        %v2428 = vmul.f32 %v1632, %v2400
        %v2429 = vmul.f32 %v1633, %v2401
        %v2430 = vmul.f32 %v1837, %v2400
        %v2431 = vmul.f32 %v1838, %v2401
        %v2432 = vmul.f32 %v2374, %v2400
        %v2433 = vmul.f32 %v2375, %v2401
        %v2434 = vmul.f32 %v1636, %v2400
        %v2435 = vmul.f32 %v1637, %v2401
        %v2436 = vmul.f32 %v1839, %v2400
        %v2437 = vmul.f32 %v1840, %v2401
        %v2438 = vmul.f32 %v2376, %v2400
        %v2439 = vmul.f32 %v2377, %v2401
        %v2440 = vmul.f32 %v1640, %v2400
        %v2441 = vmul.f32 %v1641, %v2401
        %v2442 = vmul.f32 %v1841, %v2400
        %v2443 = vmul.f32 %v1842, %v2401
        %v2444 = vmul.f32 %v2378, %v2400
        %v2445 = vmul.f32 %v2379, %v2401
        %v2446 = vmul.f32 %v1644, %v2400
        %v2447 = vmul.f32 %v1645, %v2401
        %v2448 = vmul.f32 %v1843, %v2400
        %v2449 = vmul.f32 %v1844, %v2401
        %v2450 = vmul.f32 %v2380, %v2400
        %v2451 = vmul.f32 %v2381, %v2401
        %v2452 = vmul.f32 %v1648, %v2400
        %v2453 = vmul.f32 %v1649, %v2401
        %v2454 = vmul.f32 %v1845, %v2400
        %v2455 = vmul.f32 %v1846, %v2401
        %v2456 = vmul.f32 %v2382, %v2400
        %v2457 = vmul.f32 %v2383, %v2401
        %v2458 = vmul.f32 %v1652, %v2400
        %v2459 = vmul.f32 %v1653, %v2401
        %v2460 = vmul.f32 %v1847, %v2400
        %v2461 = vmul.f32 %v1848, %v2401
        %v2462 = vmul.f32 %v2384, %v2400
        %v2463 = vmul.f32 %v2385, %v2401
        %v2464 = vmul.f32 %v1656, %v2400
        %v2465 = vmul.f32 %v1657, %v2401
        %v2466 = vmul.f32 %v1849, %v2400
        %v2467 = vmul.f32 %v1850, %v2401
        %v2468 = vmul.f32 %v2386, %v2400
        %v2469 = vmul.f32 %v2387, %v2401
        %v2470 = vmul.f32 %v1660, %v2400
        %v2471 = vmul.f32 %v1661, %v2401
        %v2472 = vmul.f32 %v1851, %v2400
        %v2473 = vmul.f32 %v1852, %v2401
        %v2474 = vmul.f32 %v2388, %v2400
        %v2475 = vmul.f32 %v2389, %v2401
        %v2476 = vmul.f32 %v1664, %v2400
        %v2477 = vmul.f32 %v1665, %v2401
        %v2478 = vmul.f32 %v1853, %v2400
        %v2479 = vmul.f32 %v1854, %v2401
        %v2480 = vmul.f32 %v2390, %v2400
        %v2481 = vmul.f32 %v2391, %v2401
        %v2482 = vmul.f32 %v1668, %v2400
        %v2483 = vmul.f32 %v1669, %v2401
        %v2484 = vmul.f32 %v1855, %v2400
        %v2485 = vmul.f32 %v1856, %v2401
        %v2486 = vmul.f32 %v2392, %v2400
        %v2487 = vmul.f32 %v2393, %v2401
        %v2488 = vmul.f32 %v1672, %v2400
        %v2489 = vmul.f32 %v1673, %v2401
        %v2490 = vmul.f32 %v1857, %v2400
        %v2491 = vmul.f32 %v1858, %v2401
        %v2492 = vmul.f32 %v2394, %v2400
        %v2493 = vmul.f32 %v2395, %v2401
        %v2494 = vmul.f32 %v1676, %v2400
        %v2495 = vmul.f32 %v1677, %v2401
        %v2496 = vmul.f32 %v1859, %v2400
        %v2497 = vmul.f32 %v1860, %v2401
        %vm2594 = vcmask 1045504
        %v2595 = vrot.slane %v2402, 2
        %v2596 = vrot.slane %v2404, 2
        %v2597 = vsel %vm2594, %v2595, %v2596
        %v2598 = vrot.slane %v2403, 2
        %v2599 = vrot.slane %v2405, 2
        %v2600 = vsel %vm2594, %v2598, %v2599
        %v2601 = vrot.slane %v2406, 2
        %v2602 = vsel %vm2594, %v2596, %v2601
        %v2603 = vrot.slane %v2407, 2
        %v2604 = vsel %vm2594, %v2599, %v2603
        %v2605 = vrot.slane %v2408, 2
        %v2606 = vrot.slane %v2410, 2
        %v2607 = vsel %vm2594, %v2605, %v2606
        %v2608 = vrot.slane %v2409, 2
        %v2609 = vrot.slane %v2411, 2
        %v2610 = vsel %vm2594, %v2608, %v2609
        %v2611 = vrot.slane %v2412, 2
        %v2612 = vsel %vm2594, %v2606, %v2611
        %v2613 = vrot.slane %v2413, 2
        %v2614 = vsel %vm2594, %v2609, %v2613
        %v2615 = vrot.slane %v2414, 2
        %v2616 = vrot.slane %v2416, 2
        %v2617 = vsel %vm2594, %v2615, %v2616
        %v2618 = vrot.slane %v2415, 2
        %v2619 = vrot.slane %v2417, 2
        %v2620 = vsel %vm2594, %v2618, %v2619
        %v2621 = vrot.slane %v2418, 2
        %v2622 = vsel %vm2594, %v2616, %v2621
        %v2623 = vrot.slane %v2419, 2
        %v2624 = vsel %vm2594, %v2619, %v2623
        %v2625 = vrot.slane %v2420, 2
        %v2626 = vrot.slane %v2422, 2
        %v2627 = vsel %vm2594, %v2625, %v2626
        %v2628 = vrot.slane %v2421, 2
        %v2629 = vrot.slane %v2423, 2
        %v2630 = vsel %vm2594, %v2628, %v2629
        %v2631 = vrot.slane %v2424, 2
        %v2632 = vsel %vm2594, %v2626, %v2631
        %v2633 = vrot.slane %v2425, 2
        %v2634 = vsel %vm2594, %v2629, %v2633
        %v2635 = vrot.slane %v2426, 2
        %v2636 = vrot.slane %v2428, 2
        %v2637 = vsel %vm2594, %v2635, %v2636
        %v2638 = vrot.slane %v2427, 2
        %v2639 = vrot.slane %v2429, 2
        %v2640 = vsel %vm2594, %v2638, %v2639
        %v2641 = vrot.slane %v2430, 2
        %v2642 = vsel %vm2594, %v2636, %v2641
        %v2643 = vrot.slane %v2431, 2
        %v2644 = vsel %vm2594, %v2639, %v2643
        %v2645 = vrot.slane %v2432, 2
        %v2646 = vrot.slane %v2434, 2
        %v2647 = vsel %vm2594, %v2645, %v2646
        %v2648 = vrot.slane %v2433, 2
        %v2649 = vrot.slane %v2435, 2
        %v2650 = vsel %vm2594, %v2648, %v2649
        %v2651 = vrot.slane %v2436, 2
        %v2652 = vsel %vm2594, %v2646, %v2651
        %v2653 = vrot.slane %v2437, 2
        %v2654 = vsel %vm2594, %v2649, %v2653
        %v2655 = vrot.slane %v2438, 2
        %v2656 = vrot.slane %v2440, 2
        %v2657 = vsel %vm2594, %v2655, %v2656
        %v2658 = vrot.slane %v2439, 2
        %v2659 = vrot.slane %v2441, 2
        %v2660 = vsel %vm2594, %v2658, %v2659
        %v2661 = vrot.slane %v2442, 2
        %v2662 = vsel %vm2594, %v2656, %v2661
        %v2663 = vrot.slane %v2443, 2
        %v2664 = vsel %vm2594, %v2659, %v2663
        %v2665 = vrot.slane %v2444, 2
        %v2666 = vrot.slane %v2446, 2
        %v2667 = vsel %vm2594, %v2665, %v2666
        %v2668 = vrot.slane %v2445, 2
        %v2669 = vrot.slane %v2447, 2
        %v2670 = vsel %vm2594, %v2668, %v2669
        %v2671 = vrot.slane %v2448, 2
        %v2672 = vsel %vm2594, %v2666, %v2671
        %v2673 = vrot.slane %v2449, 2
        %v2674 = vsel %vm2594, %v2669, %v2673
        %v2675 = vrot.slane %v2450, 2
        %v2676 = vrot.slane %v2452, 2
        %v2677 = vsel %vm2594, %v2675, %v2676
        %v2678 = vrot.slane %v2451, 2
        %v2679 = vrot.slane %v2453, 2
        %v2680 = vsel %vm2594, %v2678, %v2679
        %v2681 = vrot.slane %v2454, 2
        %v2682 = vsel %vm2594, %v2676, %v2681
        %v2683 = vrot.slane %v2455, 2
        %v2684 = vsel %vm2594, %v2679, %v2683
        %v2685 = vrot.slane %v2456, 2
        %v2686 = vrot.slane %v2458, 2
        %v2687 = vsel %vm2594, %v2685, %v2686
        %v2688 = vrot.slane %v2457, 2
        %v2689 = vrot.slane %v2459, 2
        %v2690 = vsel %vm2594, %v2688, %v2689
        %v2691 = vrot.slane %v2460, 2
        %v2692 = vsel %vm2594, %v2686, %v2691
        %v2693 = vrot.slane %v2461, 2
        %v2694 = vsel %vm2594, %v2689, %v2693
        %v2695 = vrot.slane %v2462, 2
        %v2696 = vrot.slane %v2464, 2
        %v2697 = vsel %vm2594, %v2695, %v2696
        %v2698 = vrot.slane %v2463, 2
        %v2699 = vrot.slane %v2465, 2
        %v2700 = vsel %vm2594, %v2698, %v2699
        %v2701 = vrot.slane %v2466, 2
        %v2702 = vsel %vm2594, %v2696, %v2701
        %v2703 = vrot.slane %v2467, 2
        %v2704 = vsel %vm2594, %v2699, %v2703
        %v2705 = vrot.slane %v2468, 2
        %v2706 = vrot.slane %v2470, 2
        %v2707 = vsel %vm2594, %v2705, %v2706
        %v2708 = vrot.slane %v2469, 2
        %v2709 = vrot.slane %v2471, 2
        %v2710 = vsel %vm2594, %v2708, %v2709
        %v2711 = vrot.slane %v2472, 2
        %v2712 = vsel %vm2594, %v2706, %v2711
        %v2713 = vrot.slane %v2473, 2
        %v2714 = vsel %vm2594, %v2709, %v2713
        %v2715 = vrot.slane %v2474, 2
        %v2716 = vrot.slane %v2476, 2
        %v2717 = vsel %vm2594, %v2715, %v2716
        %v2718 = vrot.slane %v2475, 2
        %v2719 = vrot.slane %v2477, 2
        %v2720 = vsel %vm2594, %v2718, %v2719
        %v2721 = vrot.slane %v2478, 2
        %v2722 = vsel %vm2594, %v2716, %v2721
        %v2723 = vrot.slane %v2479, 2
        %v2724 = vsel %vm2594, %v2719, %v2723
        %v2725 = vrot.slane %v2480, 2
        %v2726 = vrot.slane %v2482, 2
        %v2727 = vsel %vm2594, %v2725, %v2726
        %v2728 = vrot.slane %v2481, 2
        %v2729 = vrot.slane %v2483, 2
        %v2730 = vsel %vm2594, %v2728, %v2729
        %v2731 = vrot.slane %v2484, 2
        %v2732 = vsel %vm2594, %v2726, %v2731
        %v2733 = vrot.slane %v2485, 2
        %v2734 = vsel %vm2594, %v2729, %v2733
        %v2735 = vrot.slane %v2486, 2
        %v2736 = vrot.slane %v2488, 2
        %v2737 = vsel %vm2594, %v2735, %v2736
        %v2738 = vrot.slane %v2487, 2
        %v2739 = vrot.slane %v2489, 2
        %v2740 = vsel %vm2594, %v2738, %v2739
        %v2741 = vrot.slane %v2490, 2
        %v2742 = vsel %vm2594, %v2736, %v2741
        %v2743 = vrot.slane %v2491, 2
        %v2744 = vsel %vm2594, %v2739, %v2743
        %v2745 = vrot.slane %v2492, 2
        %v2746 = vrot.slane %v2494, 2
        %v2747 = vsel %vm2594, %v2745, %v2746
        %v2748 = vrot.slane %v2493, 2
        %v2749 = vrot.slane %v2495, 2
        %v2750 = vsel %vm2594, %v2748, %v2749
        %v2751 = vrot.slane %v2496, 2
        %v2752 = vsel %vm2594, %v2746, %v2751
        %v2753 = vrot.slane %v2497, 2
        %v2754 = vsel %vm2594, %v2749, %v2753
        %v2819 = vadd.f32 %v2284, %v2597
        %v2820 = vadd.f32 %v2285, %v2600
        %v2821 = vadd.f32 %v2286, %v2602
        %v2822 = vadd.f32 %v2287, %v2604
        %v2823 = vadd.f32 %v2288, %v2607
        %v2824 = vadd.f32 %v2289, %v2610
        %v2825 = vadd.f32 %v2290, %v2612
        %v2826 = vadd.f32 %v2291, %v2614
        %v2827 = vadd.f32 %v2292, %v2617
        %v2828 = vadd.f32 %v2293, %v2620
        %v2829 = vadd.f32 %v2294, %v2622
        %v2830 = vadd.f32 %v2295, %v2624
        %v2831 = vadd.f32 %v2296, %v2627
        %v2832 = vadd.f32 %v2297, %v2630
        %v2833 = vadd.f32 %v2298, %v2632
        %v2834 = vadd.f32 %v2299, %v2634
        %v2835 = vadd.f32 %v2300, %v2637
        %v2836 = vadd.f32 %v2301, %v2640
        %v2837 = vadd.f32 %v2302, %v2642
        %v2838 = vadd.f32 %v2303, %v2644
        %v2839 = vadd.f32 %v2304, %v2647
        %v2840 = vadd.f32 %v2305, %v2650
        %v2841 = vadd.f32 %v2306, %v2652
        %v2842 = vadd.f32 %v2307, %v2654
        %v2843 = vadd.f32 %v2308, %v2657
        %v2844 = vadd.f32 %v2309, %v2660
        %v2845 = vadd.f32 %v2310, %v2662
        %v2846 = vadd.f32 %v2311, %v2664
        %v2847 = vadd.f32 %v2312, %v2667
        %v2848 = vadd.f32 %v2313, %v2670
        %v2849 = vadd.f32 %v2314, %v2672
        %v2850 = vadd.f32 %v2315, %v2674
        %v2851 = vadd.f32 %v2316, %v2677
        %v2852 = vadd.f32 %v2317, %v2680
        %v2853 = vadd.f32 %v2318, %v2682
        %v2854 = vadd.f32 %v2319, %v2684
        %v2855 = vadd.f32 %v2320, %v2687
        %v2856 = vadd.f32 %v2321, %v2690
        %v2857 = vadd.f32 %v2322, %v2692
        %v2858 = vadd.f32 %v2323, %v2694
        %v2859 = vadd.f32 %v2324, %v2697
        %v2860 = vadd.f32 %v2325, %v2700
        %v2861 = vadd.f32 %v2326, %v2702
        %v2862 = vadd.f32 %v2327, %v2704
        %v2863 = vadd.f32 %v2328, %v2707
        %v2864 = vadd.f32 %v2329, %v2710
        %v2865 = vadd.f32 %v2330, %v2712
        %v2866 = vadd.f32 %v2331, %v2714
        %v2867 = vadd.f32 %v2332, %v2717
        %v2868 = vadd.f32 %v2333, %v2720
        %v2869 = vadd.f32 %v2334, %v2722
        %v2870 = vadd.f32 %v2335, %v2724
        %v2871 = vadd.f32 %v2336, %v2727
        %v2872 = vadd.f32 %v2337, %v2730
        %v2873 = vadd.f32 %v2338, %v2732
        %v2874 = vadd.f32 %v2339, %v2734
        %v2875 = vadd.f32 %v2340, %v2737
        %v2876 = vadd.f32 %v2341, %v2740
        %v2877 = vadd.f32 %v2342, %v2742
        %v2878 = vadd.f32 %v2343, %v2744
        %v2879 = vadd.f32 %v2344, %v2747
        %v2880 = vadd.f32 %v2345, %v2750
        %v2881 = vadd.f32 %v2346, %v2752
        %v2882 = vadd.f32 %v2347, %v2754
        %v2883 = vld [vmem:[%s1452] sm:$0xff]
        %v2884 = vld [vmem:[%s1452 + $0x8] sm:$0xff]
        %v2885 = vld [vmem:[%s1452 + $0x18] sm:$0xff]
        %v2886 = vld [vmem:[%s1452 + $0x20] sm:$0xff]
        %v2887 = vld [vmem:[%s1452 + $0x30] sm:$0xff]
        %v2888 = vld [vmem:[%s1452 + $0x38] sm:$0xff]
        %v2889 = vld [vmem:[%s1452 + $0x48] sm:$0xff]
        %v2890 = vld [vmem:[%s1452 + $0x50] sm:$0xff]
        %v2891 = vld [vmem:[%s1452 + $0x60] sm:$0xff]
        %v2892 = vld [vmem:[%s1452 + $0x68] sm:$0xff]
        %v2893 = vld [vmem:[%s1452 + $0x78] sm:$0xff]
        %v2894 = vld [vmem:[%s1452 + $0x80] sm:$0xff]
        %v2895 = vld [vmem:[%s1452 + $0x90] sm:$0xff]
        %v2896 = vld [vmem:[%s1452 + $0x98] sm:$0xff]
        %v2897 = vld [vmem:[%s1452 + $0xa8] sm:$0xff]
        %v2898 = vld [vmem:[%s1452 + $0xb0] sm:$0xff]
        %v2899 = vld [vmem:[%s1452 + $0xc0] sm:$0xff]
        %v2900 = vld [vmem:[%s1452 + $0xc8] sm:$0xff]
        %v2901 = vld [vmem:[%s1452 + $0xd8] sm:$0xff]
        %v2902 = vld [vmem:[%s1452 + $0xe0] sm:$0xff]
        %v2903 = vld [vmem:[%s1452 + $0xf0] sm:$0xff]
        %v2904 = vld [vmem:[%s1452 + $0xf8] sm:$0xff]
        %v2905 = vld [vmem:[%s1452 + $0x108] sm:$0xff]
        %v2906 = vld [vmem:[%s1452 + $0x110] sm:$0xff]
        %v2907 = vld [vmem:[%s1452 + $0x120] sm:$0xff]
        %v2908 = vld [vmem:[%s1452 + $0x128] sm:$0xff]
        %v2909 = vld [vmem:[%s1452 + $0x138] sm:$0xff]
        %v2910 = vld [vmem:[%s1452 + $0x140] sm:$0xff]
        %v2911 = vld [vmem:[%s1452 + $0x150] sm:$0xff]
        %v2912 = vld [vmem:[%s1452 + $0x158] sm:$0xff]
        %v2913 = vld [vmem:[%s1452 + $0x168] sm:$0xff]
        %v2914 = vld [vmem:[%s1452 + $0x170] sm:$0xff]
        %v2915 = vunpack.c.l.bf16 %v2883
        %v2916 = vunpack.c.h.bf16 %v2883
        %v2917 = vunpack.c.l.bf16 %v2884
        %v2918 = vunpack.c.h.bf16 %v2884
        %v2919 = vunpack.c.l.bf16 %v2885
        %v2920 = vunpack.c.h.bf16 %v2885
        %v2921 = vunpack.c.l.bf16 %v2886
        %v2922 = vunpack.c.h.bf16 %v2886
        %v2923 = vunpack.c.l.bf16 %v2887
        %v2924 = vunpack.c.h.bf16 %v2887
        %v2925 = vunpack.c.l.bf16 %v2888
        %v2926 = vunpack.c.h.bf16 %v2888
        %v2927 = vunpack.c.l.bf16 %v2889
        %v2928 = vunpack.c.h.bf16 %v2889
        %v2929 = vunpack.c.l.bf16 %v2890
        %v2930 = vunpack.c.h.bf16 %v2890
        %v2931 = vunpack.c.l.bf16 %v2891
        %v2932 = vunpack.c.h.bf16 %v2891
        %v2933 = vunpack.c.l.bf16 %v2892
        %v2934 = vunpack.c.h.bf16 %v2892
        %v2935 = vunpack.c.l.bf16 %v2893
        %v2936 = vunpack.c.h.bf16 %v2893
        %v2937 = vunpack.c.l.bf16 %v2894
        %v2938 = vunpack.c.h.bf16 %v2894
        %v2939 = vunpack.c.l.bf16 %v2895
        %v2940 = vunpack.c.h.bf16 %v2895
        %v2941 = vunpack.c.l.bf16 %v2896
        %v2942 = vunpack.c.h.bf16 %v2896
        %v2943 = vunpack.c.l.bf16 %v2897
        %v2944 = vunpack.c.h.bf16 %v2897
        %v2945 = vunpack.c.l.bf16 %v2898
        %v2946 = vunpack.c.h.bf16 %v2898
        %v2947 = vunpack.c.l.bf16 %v2899
        %v2948 = vunpack.c.h.bf16 %v2899
        %v2949 = vunpack.c.l.bf16 %v2900
        %v2950 = vunpack.c.h.bf16 %v2900
        %v2951 = vunpack.c.l.bf16 %v2901
        %v2952 = vunpack.c.h.bf16 %v2901
        %v2953 = vunpack.c.l.bf16 %v2902
        %v2954 = vunpack.c.h.bf16 %v2902
        %v2955 = vunpack.c.l.bf16 %v2903
        %v2956 = vunpack.c.h.bf16 %v2903
        %v2957 = vunpack.c.l.bf16 %v2904
        %v2958 = vunpack.c.h.bf16 %v2904
        %v2959 = vunpack.c.l.bf16 %v2905
        %v2960 = vunpack.c.h.bf16 %v2905
        %v2961 = vunpack.c.l.bf16 %v2906
        %v2962 = vunpack.c.h.bf16 %v2906
        %v2963 = vunpack.c.l.bf16 %v2907
        %v2964 = vunpack.c.h.bf16 %v2907
        %v2965 = vunpack.c.l.bf16 %v2908
        %v2966 = vunpack.c.h.bf16 %v2908
        %v2967 = vunpack.c.l.bf16 %v2909
        %v2968 = vunpack.c.h.bf16 %v2909
        %v2969 = vunpack.c.l.bf16 %v2910
        %v2970 = vunpack.c.h.bf16 %v2910
        %v2971 = vunpack.c.l.bf16 %v2911
        %v2972 = vunpack.c.h.bf16 %v2911
        %v2973 = vunpack.c.l.bf16 %v2912
        %v2974 = vunpack.c.h.bf16 %v2912
        %v2975 = vunpack.c.l.bf16 %v2913
        %v2976 = vunpack.c.h.bf16 %v2913
        %v2977 = vunpack.c.l.bf16 %v2914
        %v2978 = vunpack.c.h.bf16 %v2914
        %v2980 = vperm.slane %v1579, 0
        %v2981 = vperm.slane %v1579, 4
        %v2984 = vperm.slane %v2980, 0
        %v2985 = vperm.slane %v2981, 0
        %v2986 = vmul.f32 %v2915, %v2984
        %v2987 = vmul.f32 %v2916, %v2985
        %v2988 = vmul.f32 %v2917, %v2984
        %v2989 = vmul.f32 %v2918, %v2985
        %v2990 = vmul.f32 %v2919, %v2984
        %v2991 = vmul.f32 %v2920, %v2985
        %v2992 = vmul.f32 %v2921, %v2984
        %v2993 = vmul.f32 %v2922, %v2985
        %v2994 = vmul.f32 %v2923, %v2984
        %v2995 = vmul.f32 %v2924, %v2985
        %v2996 = vmul.f32 %v2925, %v2984
        %v2997 = vmul.f32 %v2926, %v2985
        %v2998 = vmul.f32 %v2927, %v2984
        %v2999 = vmul.f32 %v2928, %v2985
        %v3000 = vmul.f32 %v2929, %v2984
        %v3001 = vmul.f32 %v2930, %v2985
        %v3002 = vmul.f32 %v2931, %v2984
        %v3003 = vmul.f32 %v2932, %v2985
        %v3004 = vmul.f32 %v2933, %v2984
        %v3005 = vmul.f32 %v2934, %v2985
        %v3006 = vmul.f32 %v2935, %v2984
        %v3007 = vmul.f32 %v2936, %v2985
        %v3008 = vmul.f32 %v2937, %v2984
        %v3009 = vmul.f32 %v2938, %v2985
        %v3010 = vmul.f32 %v2939, %v2984
        %v3011 = vmul.f32 %v2940, %v2985
        %v3012 = vmul.f32 %v2941, %v2984
        %v3013 = vmul.f32 %v2942, %v2985
        %v3014 = vmul.f32 %v2943, %v2984
        %v3015 = vmul.f32 %v2944, %v2985
        %v3016 = vmul.f32 %v2945, %v2984
        %v3017 = vmul.f32 %v2946, %v2985
        %v3018 = vmul.f32 %v2947, %v2984
        %v3019 = vmul.f32 %v2948, %v2985
        %v3020 = vmul.f32 %v2949, %v2984
        %v3021 = vmul.f32 %v2950, %v2985
        %v3022 = vmul.f32 %v2951, %v2984
        %v3023 = vmul.f32 %v2952, %v2985
        %v3024 = vmul.f32 %v2953, %v2984
        %v3025 = vmul.f32 %v2954, %v2985
        %v3026 = vmul.f32 %v2955, %v2984
        %v3027 = vmul.f32 %v2956, %v2985
        %v3028 = vmul.f32 %v2957, %v2984
        %v3029 = vmul.f32 %v2958, %v2985
        %v3030 = vmul.f32 %v2959, %v2984
        %v3031 = vmul.f32 %v2960, %v2985
        %v3032 = vmul.f32 %v2961, %v2984
        %v3033 = vmul.f32 %v2962, %v2985
        %v3034 = vmul.f32 %v2963, %v2984
        %v3035 = vmul.f32 %v2964, %v2985
        %v3036 = vmul.f32 %v2965, %v2984
        %v3037 = vmul.f32 %v2966, %v2985
        %v3038 = vmul.f32 %v2967, %v2984
        %v3039 = vmul.f32 %v2968, %v2985
        %v3040 = vmul.f32 %v2969, %v2984
        %v3041 = vmul.f32 %v2970, %v2985
        %v3042 = vmul.f32 %v2971, %v2984
        %v3043 = vmul.f32 %v2972, %v2985
        %v3044 = vmul.f32 %v2973, %v2984
        %v3045 = vmul.f32 %v2974, %v2985
        %v3046 = vmul.f32 %v2975, %v2984
        %v3047 = vmul.f32 %v2976, %v2985
        %v3048 = vmul.f32 %v2977, %v2984
        %v3049 = vmul.f32 %v2978, %v2985
        %v3050 = vadd.f32 %v2819, %v2986
        %v3051 = vadd.f32 %v2820, %v2987
        %v3052 = vadd.f32 %v2821, %v2988
        %v3053 = vadd.f32 %v2822, %v2989
        %v3054 = vadd.f32 %v2823, %v2990
        %v3055 = vadd.f32 %v2824, %v2991
        %v3056 = vadd.f32 %v2825, %v2992
        %v3057 = vadd.f32 %v2826, %v2993
        %v3058 = vadd.f32 %v2827, %v2994
        %v3059 = vadd.f32 %v2828, %v2995
        %v3060 = vadd.f32 %v2829, %v2996
        %v3061 = vadd.f32 %v2830, %v2997
        %v3062 = vadd.f32 %v2831, %v2998
        %v3063 = vadd.f32 %v2832, %v2999
        %v3064 = vadd.f32 %v2833, %v3000
        %v3065 = vadd.f32 %v2834, %v3001
        %v3066 = vadd.f32 %v2835, %v3002
        %v3067 = vadd.f32 %v2836, %v3003
        %v3068 = vadd.f32 %v2837, %v3004
        %v3069 = vadd.f32 %v2838, %v3005
        %v3070 = vadd.f32 %v2839, %v3006
        %v3071 = vadd.f32 %v2840, %v3007
        %v3072 = vadd.f32 %v2841, %v3008
        %v3073 = vadd.f32 %v2842, %v3009
        %v3074 = vadd.f32 %v2843, %v3010
        %v3075 = vadd.f32 %v2844, %v3011
        %v3076 = vadd.f32 %v2845, %v3012
        %v3077 = vadd.f32 %v2846, %v3013
        %v3078 = vadd.f32 %v2847, %v3014
        %v3079 = vadd.f32 %v2848, %v3015
        %v3080 = vadd.f32 %v2849, %v3016
        %v3081 = vadd.f32 %v2850, %v3017
        %v3082 = vadd.f32 %v2851, %v3018
        %v3083 = vadd.f32 %v2852, %v3019
        %v3084 = vadd.f32 %v2853, %v3020
        %v3085 = vadd.f32 %v2854, %v3021
        %v3086 = vadd.f32 %v2855, %v3022
        %v3087 = vadd.f32 %v2856, %v3023
        %v3088 = vadd.f32 %v2857, %v3024
        %v3089 = vadd.f32 %v2858, %v3025
        %v3090 = vadd.f32 %v2859, %v3026
        %v3091 = vadd.f32 %v2860, %v3027
        %v3092 = vadd.f32 %v2861, %v3028
        %v3093 = vadd.f32 %v2862, %v3029
        %v3094 = vadd.f32 %v2863, %v3030
        %v3095 = vadd.f32 %v2864, %v3031
        %v3096 = vadd.f32 %v2865, %v3032
        %v3097 = vadd.f32 %v2866, %v3033
        %v3098 = vadd.f32 %v2867, %v3034
        %v3099 = vadd.f32 %v2868, %v3035
        %v3100 = vadd.f32 %v2869, %v3036
        %v3101 = vadd.f32 %v2870, %v3037
        %v3102 = vadd.f32 %v2871, %v3038
        %v3103 = vadd.f32 %v2872, %v3039
        %v3104 = vadd.f32 %v2873, %v3040
        %v3105 = vadd.f32 %v2874, %v3041
        %v3106 = vadd.f32 %v2875, %v3042
        %v3107 = vadd.f32 %v2876, %v3043
        %v3108 = vadd.f32 %v2877, %v3044
        %v3109 = vadd.f32 %v2878, %v3045
        %v3110 = vadd.f32 %v2879, %v3046
        %v3111 = vadd.f32 %v2880, %v3047
        %v3112 = vadd.f32 %v2881, %v3048
        %v3113 = vadd.f32 %v2882, %v3049
        %v3114 = vld [vmem:[%s1452 + $0x10] sm:$0x11]
        %v3115 = vld [vmem:[%s1452 + $0x28] sm:$0x11]
        %v3116 = vld [vmem:[%s1452 + $0x40] sm:$0x11]
        %v3117 = vld [vmem:[%s1452 + $0x58] sm:$0x11]
        %v3118 = vld [vmem:[%s1452 + $0x70] sm:$0x11]
        %v3119 = vld [vmem:[%s1452 + $0x88] sm:$0x11]
        %v3120 = vld [vmem:[%s1452 + $0xa0] sm:$0x11]
        %v3121 = vld [vmem:[%s1452 + $0xb8] sm:$0x11]
        %v3122 = vld [vmem:[%s1452 + $0xd0] sm:$0x11]
        %v3123 = vld [vmem:[%s1452 + $0xe8] sm:$0x11]
        %v3124 = vld [vmem:[%s1452 + $0x100] sm:$0x11]
        %v3125 = vld [vmem:[%s1452 + $0x118] sm:$0x11]
        %v3126 = vld [vmem:[%s1452 + $0x130] sm:$0x11]
        %v3127 = vld [vmem:[%s1452 + $0x148] sm:$0x11]
        %v3128 = vld [vmem:[%s1452 + $0x160] sm:$0x11]
        %v3129 = vld [vmem:[%s1452 + $0x178] sm:$0x11]
        %v3130 = vunpack.c.l.bf16 %v3114
        %v3131 = vunpack.c.h.bf16 %v3114
        %v3132 = vunpack.c.l.bf16 %v3115
        %v3133 = vunpack.c.h.bf16 %v3115
        %v3134 = vunpack.c.l.bf16 %v3116
        %v3135 = vunpack.c.h.bf16 %v3116
        %v3136 = vunpack.c.l.bf16 %v3117
        %v3137 = vunpack.c.h.bf16 %v3117
        %v3138 = vunpack.c.l.bf16 %v3118
        %v3139 = vunpack.c.h.bf16 %v3118
        %v3140 = vunpack.c.l.bf16 %v3119
        %v3141 = vunpack.c.h.bf16 %v3119
        %v3142 = vunpack.c.l.bf16 %v3120
        %v3143 = vunpack.c.h.bf16 %v3120
        %v3144 = vunpack.c.l.bf16 %v3121
        %v3145 = vunpack.c.h.bf16 %v3121
        %v3146 = vunpack.c.l.bf16 %v3122
        %v3147 = vunpack.c.h.bf16 %v3122
        %v3148 = vunpack.c.l.bf16 %v3123
        %v3149 = vunpack.c.h.bf16 %v3123
        %v3150 = vunpack.c.l.bf16 %v3124
        %v3151 = vunpack.c.h.bf16 %v3124
        %v3152 = vunpack.c.l.bf16 %v3125
        %v3153 = vunpack.c.h.bf16 %v3125
        %v3154 = vunpack.c.l.bf16 %v3126
        %v3155 = vunpack.c.h.bf16 %v3126
        %v3156 = vunpack.c.l.bf16 %v3127
        %v3157 = vunpack.c.h.bf16 %v3127
        %v3158 = vunpack.c.l.bf16 %v3128
        %v3159 = vunpack.c.h.bf16 %v3128
        %v3160 = vunpack.c.l.bf16 %v3129
        %v3161 = vunpack.c.h.bf16 %v3129
        %v3162 = vperm.slane %v1579, 1
        %v3163 = vperm.slane %v1579, 5
        %v3166 = vperm.slane %v3162, 1
        %v3167 = vperm.slane %v3163, 1
        %v3168 = vmul.f32 %v2915, %v3166
        %v3169 = vmul.f32 %v2916, %v3167
        %v3170 = vmul.f32 %v2917, %v3166
        %v3171 = vmul.f32 %v2918, %v3167
        %v3172 = vmul.f32 %v3130, %v3166
        %v3173 = vmul.f32 %v3131, %v3167
        %v3174 = vmul.f32 %v2919, %v3166
        %v3175 = vmul.f32 %v2920, %v3167
        %v3176 = vmul.f32 %v2921, %v3166
        %v3177 = vmul.f32 %v2922, %v3167
        %v3178 = vmul.f32 %v3132, %v3166
        %v3179 = vmul.f32 %v3133, %v3167
        %v3180 = vmul.f32 %v2923, %v3166
        %v3181 = vmul.f32 %v2924, %v3167
        %v3182 = vmul.f32 %v2925, %v3166
        %v3183 = vmul.f32 %v2926, %v3167
        %v3184 = vmul.f32 %v3134, %v3166
        %v3185 = vmul.f32 %v3135, %v3167
        %v3186 = vmul.f32 %v2927, %v3166
        %v3187 = vmul.f32 %v2928, %v3167
        %v3188 = vmul.f32 %v2929, %v3166
        %v3189 = vmul.f32 %v2930, %v3167
        %v3190 = vmul.f32 %v3136, %v3166
        %v3191 = vmul.f32 %v3137, %v3167
        %v3192 = vmul.f32 %v2931, %v3166
        %v3193 = vmul.f32 %v2932, %v3167
        %v3194 = vmul.f32 %v2933, %v3166
        %v3195 = vmul.f32 %v2934, %v3167
        %v3196 = vmul.f32 %v3138, %v3166
        %v3197 = vmul.f32 %v3139, %v3167
        %v3198 = vmul.f32 %v2935, %v3166
        %v3199 = vmul.f32 %v2936, %v3167
        %v3200 = vmul.f32 %v2937, %v3166
        %v3201 = vmul.f32 %v2938, %v3167
        %v3202 = vmul.f32 %v3140, %v3166
        %v3203 = vmul.f32 %v3141, %v3167
        %v3204 = vmul.f32 %v2939, %v3166
        %v3205 = vmul.f32 %v2940, %v3167
        %v3206 = vmul.f32 %v2941, %v3166
        %v3207 = vmul.f32 %v2942, %v3167
        %v3208 = vmul.f32 %v3142, %v3166
        %v3209 = vmul.f32 %v3143, %v3167
        %v3210 = vmul.f32 %v2943, %v3166
        %v3211 = vmul.f32 %v2944, %v3167
        %v3212 = vmul.f32 %v2945, %v3166
        %v3213 = vmul.f32 %v2946, %v3167
        %v3214 = vmul.f32 %v3144, %v3166
        %v3215 = vmul.f32 %v3145, %v3167
        %v3216 = vmul.f32 %v2947, %v3166
        %v3217 = vmul.f32 %v2948, %v3167
        %v3218 = vmul.f32 %v2949, %v3166
        %v3219 = vmul.f32 %v2950, %v3167
        %v3220 = vmul.f32 %v3146, %v3166
        %v3221 = vmul.f32 %v3147, %v3167
        %v3222 = vmul.f32 %v2951, %v3166
        %v3223 = vmul.f32 %v2952, %v3167
        %v3224 = vmul.f32 %v2953, %v3166
        %v3225 = vmul.f32 %v2954, %v3167
        %v3226 = vmul.f32 %v3148, %v3166
        %v3227 = vmul.f32 %v3149, %v3167
        %v3228 = vmul.f32 %v2955, %v3166
        %v3229 = vmul.f32 %v2956, %v3167
        %v3230 = vmul.f32 %v2957, %v3166
        %v3231 = vmul.f32 %v2958, %v3167
        %v3232 = vmul.f32 %v3150, %v3166
        %v3233 = vmul.f32 %v3151, %v3167
        %v3234 = vmul.f32 %v2959, %v3166
        %v3235 = vmul.f32 %v2960, %v3167
        %v3236 = vmul.f32 %v2961, %v3166
        %v3237 = vmul.f32 %v2962, %v3167
        %v3238 = vmul.f32 %v3152, %v3166
        %v3239 = vmul.f32 %v3153, %v3167
        %v3240 = vmul.f32 %v2963, %v3166
        %v3241 = vmul.f32 %v2964, %v3167
        %v3242 = vmul.f32 %v2965, %v3166
        %v3243 = vmul.f32 %v2966, %v3167
        %v3244 = vmul.f32 %v3154, %v3166
        %v3245 = vmul.f32 %v3155, %v3167
        %v3246 = vmul.f32 %v2967, %v3166
        %v3247 = vmul.f32 %v2968, %v3167
        %v3248 = vmul.f32 %v2969, %v3166
        %v3249 = vmul.f32 %v2970, %v3167
        %v3250 = vmul.f32 %v3156, %v3166
        %v3251 = vmul.f32 %v3157, %v3167
        %v3252 = vmul.f32 %v2971, %v3166
        %v3253 = vmul.f32 %v2972, %v3167
        %v3254 = vmul.f32 %v2973, %v3166
        %v3255 = vmul.f32 %v2974, %v3167
        %v3256 = vmul.f32 %v3158, %v3166
        %v3257 = vmul.f32 %v3159, %v3167
        %v3258 = vmul.f32 %v2975, %v3166
        %v3259 = vmul.f32 %v2976, %v3167
        %v3260 = vmul.f32 %v2977, %v3166
        %v3261 = vmul.f32 %v2978, %v3167
        %v3262 = vmul.f32 %v3160, %v3166
        %v3263 = vmul.f32 %v3161, %v3167
        %v3360 = vrot.slane %v3168, 1
        %v3361 = vrot.slane %v3170, 1
        %v3362 = vsel %vm2059, %v3360, %v3361
        %v3363 = vrot.slane %v3169, 1
        %v3364 = vrot.slane %v3171, 1
        %v3365 = vsel %vm2059, %v3363, %v3364
        %v3366 = vrot.slane %v3172, 1
        %v3367 = vsel %vm2059, %v3361, %v3366
        %v3368 = vrot.slane %v3173, 1
        %v3369 = vsel %vm2059, %v3364, %v3368
        %v3370 = vrot.slane %v3174, 1
        %v3371 = vrot.slane %v3176, 1
        %v3372 = vsel %vm2059, %v3370, %v3371
        %v3373 = vrot.slane %v3175, 1
        %v3374 = vrot.slane %v3177, 1
        %v3375 = vsel %vm2059, %v3373, %v3374
        %v3376 = vrot.slane %v3178, 1
        %v3377 = vsel %vm2059, %v3371, %v3376
        %v3378 = vrot.slane %v3179, 1
        %v3379 = vsel %vm2059, %v3374, %v3378
        %v3380 = vrot.slane %v3180, 1
        %v3381 = vrot.slane %v3182, 1
        %v3382 = vsel %vm2059, %v3380, %v3381
        %v3383 = vrot.slane %v3181, 1
        %v3384 = vrot.slane %v3183, 1
        %v3385 = vsel %vm2059, %v3383, %v3384
        %v3386 = vrot.slane %v3184, 1
        %v3387 = vsel %vm2059, %v3381, %v3386
        %v3388 = vrot.slane %v3185, 1
        %v3389 = vsel %vm2059, %v3384, %v3388
        %v3390 = vrot.slane %v3186, 1
        %v3391 = vrot.slane %v3188, 1
        %v3392 = vsel %vm2059, %v3390, %v3391
        %v3393 = vrot.slane %v3187, 1
        %v3394 = vrot.slane %v3189, 1
        %v3395 = vsel %vm2059, %v3393, %v3394
        %v3396 = vrot.slane %v3190, 1
        %v3397 = vsel %vm2059, %v3391, %v3396
        %v3398 = vrot.slane %v3191, 1
        %v3399 = vsel %vm2059, %v3394, %v3398
        %v3400 = vrot.slane %v3192, 1
        %v3401 = vrot.slane %v3194, 1
        %v3402 = vsel %vm2059, %v3400, %v3401
        %v3403 = vrot.slane %v3193, 1
        %v3404 = vrot.slane %v3195, 1
        %v3405 = vsel %vm2059, %v3403, %v3404
        %v3406 = vrot.slane %v3196, 1
        %v3407 = vsel %vm2059, %v3401, %v3406
        %v3408 = vrot.slane %v3197, 1
        %v3409 = vsel %vm2059, %v3404, %v3408
        %v3410 = vrot.slane %v3198, 1
        %v3411 = vrot.slane %v3200, 1
        %v3412 = vsel %vm2059, %v3410, %v3411
        %v3413 = vrot.slane %v3199, 1
        %v3414 = vrot.slane %v3201, 1
        %v3415 = vsel %vm2059, %v3413, %v3414
        %v3416 = vrot.slane %v3202, 1
        %v3417 = vsel %vm2059, %v3411, %v3416
        %v3418 = vrot.slane %v3203, 1
        %v3419 = vsel %vm2059, %v3414, %v3418
        %v3420 = vrot.slane %v3204, 1
        %v3421 = vrot.slane %v3206, 1
        %v3422 = vsel %vm2059, %v3420, %v3421
        %v3423 = vrot.slane %v3205, 1
        %v3424 = vrot.slane %v3207, 1
        %v3425 = vsel %vm2059, %v3423, %v3424
        %v3426 = vrot.slane %v3208, 1
        %v3427 = vsel %vm2059, %v3421, %v3426
        %v3428 = vrot.slane %v3209, 1
        %v3429 = vsel %vm2059, %v3424, %v3428
        %v3430 = vrot.slane %v3210, 1
        %v3431 = vrot.slane %v3212, 1
        %v3432 = vsel %vm2059, %v3430, %v3431
        %v3433 = vrot.slane %v3211, 1
        %v3434 = vrot.slane %v3213, 1
        %v3435 = vsel %vm2059, %v3433, %v3434
        %v3436 = vrot.slane %v3214, 1
        %v3437 = vsel %vm2059, %v3431, %v3436
        %v3438 = vrot.slane %v3215, 1
        %v3439 = vsel %vm2059, %v3434, %v3438
        %v3440 = vrot.slane %v3216, 1
        %v3441 = vrot.slane %v3218, 1
        %v3442 = vsel %vm2059, %v3440, %v3441
        %v3443 = vrot.slane %v3217, 1
        %v3444 = vrot.slane %v3219, 1
        %v3445 = vsel %vm2059, %v3443, %v3444
        %v3446 = vrot.slane %v3220, 1
        %v3447 = vsel %vm2059, %v3441, %v3446
        %v3448 = vrot.slane %v3221, 1
        %v3449 = vsel %vm2059, %v3444, %v3448
        %v3450 = vrot.slane %v3222, 1
        %v3451 = vrot.slane %v3224, 1
        %v3452 = vsel %vm2059, %v3450, %v3451
        %v3453 = vrot.slane %v3223, 1
        %v3454 = vrot.slane %v3225, 1
        %v3455 = vsel %vm2059, %v3453, %v3454
        %v3456 = vrot.slane %v3226, 1
        %v3457 = vsel %vm2059, %v3451, %v3456
        %v3458 = vrot.slane %v3227, 1
        %v3459 = vsel %vm2059, %v3454, %v3458
        %v3460 = vrot.slane %v3228, 1
        %v3461 = vrot.slane %v3230, 1
        %v3462 = vsel %vm2059, %v3460, %v3461
        %v3463 = vrot.slane %v3229, 1
        %v3464 = vrot.slane %v3231, 1
        %v3465 = vsel %vm2059, %v3463, %v3464
        %v3466 = vrot.slane %v3232, 1
        %v3467 = vsel %vm2059, %v3461, %v3466
        %v3468 = vrot.slane %v3233, 1
        %v3469 = vsel %vm2059, %v3464, %v3468
        %v3470 = vrot.slane %v3234, 1
        %v3471 = vrot.slane %v3236, 1
        %v3472 = vsel %vm2059, %v3470, %v3471
        %v3473 = vrot.slane %v3235, 1
        %v3474 = vrot.slane %v3237, 1
        %v3475 = vsel %vm2059, %v3473, %v3474
        %v3476 = vrot.slane %v3238, 1
        %v3477 = vsel %vm2059, %v3471, %v3476
        %v3478 = vrot.slane %v3239, 1
        %v3479 = vsel %vm2059, %v3474, %v3478
        %v3480 = vrot.slane %v3240, 1
        %v3481 = vrot.slane %v3242, 1
        %v3482 = vsel %vm2059, %v3480, %v3481
        %v3483 = vrot.slane %v3241, 1
        %v3484 = vrot.slane %v3243, 1
        %v3485 = vsel %vm2059, %v3483, %v3484
        %v3486 = vrot.slane %v3244, 1
        %v3487 = vsel %vm2059, %v3481, %v3486
        %v3488 = vrot.slane %v3245, 1
        %v3489 = vsel %vm2059, %v3484, %v3488
        %v3490 = vrot.slane %v3246, 1
        %v3491 = vrot.slane %v3248, 1
        %v3492 = vsel %vm2059, %v3490, %v3491
        %v3493 = vrot.slane %v3247, 1
        %v3494 = vrot.slane %v3249, 1
        %v3495 = vsel %vm2059, %v3493, %v3494
        %v3496 = vrot.slane %v3250, 1
        %v3497 = vsel %vm2059, %v3491, %v3496
        %v3498 = vrot.slane %v3251, 1
        %v3499 = vsel %vm2059, %v3494, %v3498
        %v3500 = vrot.slane %v3252, 1
        %v3501 = vrot.slane %v3254, 1
        %v3502 = vsel %vm2059, %v3500, %v3501
        %v3503 = vrot.slane %v3253, 1
        %v3504 = vrot.slane %v3255, 1
        %v3505 = vsel %vm2059, %v3503, %v3504
        %v3506 = vrot.slane %v3256, 1
        %v3507 = vsel %vm2059, %v3501, %v3506
        %v3508 = vrot.slane %v3257, 1
        %v3509 = vsel %vm2059, %v3504, %v3508
        %v3510 = vrot.slane %v3258, 1
        %v3511 = vrot.slane %v3260, 1
        %v3512 = vsel %vm2059, %v3510, %v3511
        %v3513 = vrot.slane %v3259, 1
        %v3514 = vrot.slane %v3261, 1
        %v3515 = vsel %vm2059, %v3513, %v3514
        %v3516 = vrot.slane %v3262, 1
        %v3517 = vsel %vm2059, %v3511, %v3516
        %v3518 = vrot.slane %v3263, 1
        %v3519 = vsel %vm2059, %v3514, %v3518
        %v3584 = vadd.f32 %v3050, %v3362
        %v3585 = vadd.f32 %v3051, %v3365
        %v3586 = vadd.f32 %v3052, %v3367
        %v3587 = vadd.f32 %v3053, %v3369
        %v3588 = vadd.f32 %v3054, %v3372
        %v3589 = vadd.f32 %v3055, %v3375
        %v3590 = vadd.f32 %v3056, %v3377
        %v3591 = vadd.f32 %v3057, %v3379
        %v3592 = vadd.f32 %v3058, %v3382
        %v3593 = vadd.f32 %v3059, %v3385
        %v3594 = vadd.f32 %v3060, %v3387
        %v3595 = vadd.f32 %v3061, %v3389
        %v3596 = vadd.f32 %v3062, %v3392
        %v3597 = vadd.f32 %v3063, %v3395
        %v3598 = vadd.f32 %v3064, %v3397
        %v3599 = vadd.f32 %v3065, %v3399
        %v3600 = vadd.f32 %v3066, %v3402
        %v3601 = vadd.f32 %v3067, %v3405
        %v3602 = vadd.f32 %v3068, %v3407
        %v3603 = vadd.f32 %v3069, %v3409
        %v3604 = vadd.f32 %v3070, %v3412
        %v3605 = vadd.f32 %v3071, %v3415
        %v3606 = vadd.f32 %v3072, %v3417
        %v3607 = vadd.f32 %v3073, %v3419
        %v3608 = vadd.f32 %v3074, %v3422
        %v3609 = vadd.f32 %v3075, %v3425
        %v3610 = vadd.f32 %v3076, %v3427
        %v3611 = vadd.f32 %v3077, %v3429
        %v3612 = vadd.f32 %v3078, %v3432
        %v3613 = vadd.f32 %v3079, %v3435
        %v3614 = vadd.f32 %v3080, %v3437
        %v3615 = vadd.f32 %v3081, %v3439
        %v3616 = vadd.f32 %v3082, %v3442
        %v3617 = vadd.f32 %v3083, %v3445
        %v3618 = vadd.f32 %v3084, %v3447
        %v3619 = vadd.f32 %v3085, %v3449
        %v3620 = vadd.f32 %v3086, %v3452
        %v3621 = vadd.f32 %v3087, %v3455
        %v3622 = vadd.f32 %v3088, %v3457
        %v3623 = vadd.f32 %v3089, %v3459
        %v3624 = vadd.f32 %v3090, %v3462
        %v3625 = vadd.f32 %v3091, %v3465
        %v3626 = vadd.f32 %v3092, %v3467
        %v3627 = vadd.f32 %v3093, %v3469
        %v3628 = vadd.f32 %v3094, %v3472
        %v3629 = vadd.f32 %v3095, %v3475
        %v3630 = vadd.f32 %v3096, %v3477
        %v3631 = vadd.f32 %v3097, %v3479
        %v3632 = vadd.f32 %v3098, %v3482
        %v3633 = vadd.f32 %v3099, %v3485
        %v3634 = vadd.f32 %v3100, %v3487
        %v3635 = vadd.f32 %v3101, %v3489
        %v3636 = vadd.f32 %v3102, %v3492
        %v3637 = vadd.f32 %v3103, %v3495
        %v3638 = vadd.f32 %v3104, %v3497
        %v3639 = vadd.f32 %v3105, %v3499
        %v3640 = vadd.f32 %v3106, %v3502
        %v3641 = vadd.f32 %v3107, %v3505
        %v3642 = vadd.f32 %v3108, %v3507
        %v3643 = vadd.f32 %v3109, %v3509
        %v3644 = vadd.f32 %v3110, %v3512
        %v3645 = vadd.f32 %v3111, %v3515
        %v3646 = vadd.f32 %v3112, %v3517
        %v3647 = vadd.f32 %v3113, %v3519
        %v3648 = vld [vmem:[%s1452] sm:$0xee]
        %v3649 = vld [vmem:[%s1452 + $0x18] sm:$0xee]
        %v3650 = vld [vmem:[%s1452 + $0x30] sm:$0xee]
        %v3651 = vld [vmem:[%s1452 + $0x48] sm:$0xee]
        %v3652 = vld [vmem:[%s1452 + $0x60] sm:$0xee]
        %v3653 = vld [vmem:[%s1452 + $0x78] sm:$0xee]
        %v3654 = vld [vmem:[%s1452 + $0x90] sm:$0xee]
        %v3655 = vld [vmem:[%s1452 + $0xa8] sm:$0xee]
        %v3656 = vld [vmem:[%s1452 + $0xc0] sm:$0xee]
        %v3657 = vld [vmem:[%s1452 + $0xd8] sm:$0xee]
        %v3658 = vld [vmem:[%s1452 + $0xf0] sm:$0xee]
        %v3659 = vld [vmem:[%s1452 + $0x108] sm:$0xee]
        %v3660 = vld [vmem:[%s1452 + $0x120] sm:$0xee]
        %v3661 = vld [vmem:[%s1452 + $0x138] sm:$0xee]
        %v3662 = vld [vmem:[%s1452 + $0x150] sm:$0xee]
        %v3663 = vld [vmem:[%s1452 + $0x168] sm:$0xee]
        %v3664 = vunpack.c.l.bf16 %v3648
        %v3665 = vunpack.c.h.bf16 %v3648
        %v3666 = vunpack.c.l.bf16 %v3649
        %v3667 = vunpack.c.h.bf16 %v3649
        %v3668 = vunpack.c.l.bf16 %v3650
        %v3669 = vunpack.c.h.bf16 %v3650
        %v3670 = vunpack.c.l.bf16 %v3651
        %v3671 = vunpack.c.h.bf16 %v3651
        %v3672 = vunpack.c.l.bf16 %v3652
        %v3673 = vunpack.c.h.bf16 %v3652
        %v3674 = vunpack.c.l.bf16 %v3653
        %v3675 = vunpack.c.h.bf16 %v3653
        %v3676 = vunpack.c.l.bf16 %v3654
        %v3677 = vunpack.c.h.bf16 %v3654
        %v3678 = vunpack.c.l.bf16 %v3655
        %v3679 = vunpack.c.h.bf16 %v3655
        %v3680 = vunpack.c.l.bf16 %v3656
        %v3681 = vunpack.c.h.bf16 %v3656
        %v3682 = vunpack.c.l.bf16 %v3657
        %v3683 = vunpack.c.h.bf16 %v3657
        %v3684 = vunpack.c.l.bf16 %v3658
        %v3685 = vunpack.c.h.bf16 %v3658
        %v3686 = vunpack.c.l.bf16 %v3659
        %v3687 = vunpack.c.h.bf16 %v3659
        %v3688 = vunpack.c.l.bf16 %v3660
        %v3689 = vunpack.c.h.bf16 %v3660
        %v3690 = vunpack.c.l.bf16 %v3661
        %v3691 = vunpack.c.h.bf16 %v3661
        %v3692 = vunpack.c.l.bf16 %v3662
        %v3693 = vunpack.c.h.bf16 %v3662
        %v3694 = vunpack.c.l.bf16 %v3663
        %v3695 = vunpack.c.h.bf16 %v3663
        %v3696 = vperm.slane %v1579, 2
        %v3697 = vperm.slane %v1579, 6
        %v3700 = vperm.slane %v3696, 2
        %v3701 = vperm.slane %v3697, 2
        %v3702 = vmul.f32 %v3664, %v3700
        %v3703 = vmul.f32 %v3665, %v3701
        %v3704 = vmul.f32 %v2917, %v3700
        %v3705 = vmul.f32 %v2918, %v3701
        %v3706 = vmul.f32 %v3130, %v3700
        %v3707 = vmul.f32 %v3131, %v3701
        %v3708 = vmul.f32 %v3666, %v3700
        %v3709 = vmul.f32 %v3667, %v3701
        %v3710 = vmul.f32 %v2921, %v3700
        %v3711 = vmul.f32 %v2922, %v3701
        %v3712 = vmul.f32 %v3132, %v3700
        %v3713 = vmul.f32 %v3133, %v3701
        %v3714 = vmul.f32 %v3668, %v3700
        %v3715 = vmul.f32 %v3669, %v3701
        %v3716 = vmul.f32 %v2925, %v3700
        %v3717 = vmul.f32 %v2926, %v3701
        %v3718 = vmul.f32 %v3134, %v3700
        %v3719 = vmul.f32 %v3135, %v3701
        %v3720 = vmul.f32 %v3670, %v3700
        %v3721 = vmul.f32 %v3671, %v3701
        %v3722 = vmul.f32 %v2929, %v3700
        %v3723 = vmul.f32 %v2930, %v3701
        %v3724 = vmul.f32 %v3136, %v3700
        %v3725 = vmul.f32 %v3137, %v3701
        %v3726 = vmul.f32 %v3672, %v3700
        %v3727 = vmul.f32 %v3673, %v3701
        %v3728 = vmul.f32 %v2933, %v3700
        %v3729 = vmul.f32 %v2934, %v3701
        %v3730 = vmul.f32 %v3138, %v3700
        %v3731 = vmul.f32 %v3139, %v3701
        %v3732 = vmul.f32 %v3674, %v3700
        %v3733 = vmul.f32 %v3675, %v3701
        %v3734 = vmul.f32 %v2937, %v3700
        %v3735 = vmul.f32 %v2938, %v3701
        %v3736 = vmul.f32 %v3140, %v3700
        %v3737 = vmul.f32 %v3141, %v3701
        %v3738 = vmul.f32 %v3676, %v3700
        %v3739 = vmul.f32 %v3677, %v3701
        %v3740 = vmul.f32 %v2941, %v3700
        %v3741 = vmul.f32 %v2942, %v3701
        %v3742 = vmul.f32 %v3142, %v3700
        %v3743 = vmul.f32 %v3143, %v3701
        %v3744 = vmul.f32 %v3678, %v3700
        %v3745 = vmul.f32 %v3679, %v3701
        %v3746 = vmul.f32 %v2945, %v3700
        %v3747 = vmul.f32 %v2946, %v3701
        %v3748 = vmul.f32 %v3144, %v3700
        %v3749 = vmul.f32 %v3145, %v3701
        %v3750 = vmul.f32 %v3680, %v3700
        %v3751 = vmul.f32 %v3681, %v3701
        %v3752 = vmul.f32 %v2949, %v3700
        %v3753 = vmul.f32 %v2950, %v3701
        %v3754 = vmul.f32 %v3146, %v3700
        %v3755 = vmul.f32 %v3147, %v3701
        %v3756 = vmul.f32 %v3682, %v3700
        %v3757 = vmul.f32 %v3683, %v3701
        %v3758 = vmul.f32 %v2953, %v3700
        %v3759 = vmul.f32 %v2954, %v3701
        %v3760 = vmul.f32 %v3148, %v3700
        %v3761 = vmul.f32 %v3149, %v3701
        %v3762 = vmul.f32 %v3684, %v3700
        %v3763 = vmul.f32 %v3685, %v3701
        %v3764 = vmul.f32 %v2957, %v3700
        %v3765 = vmul.f32 %v2958, %v3701
        %v3766 = vmul.f32 %v3150, %v3700
        %v3767 = vmul.f32 %v3151, %v3701
        %v3768 = vmul.f32 %v3686, %v3700
        %v3769 = vmul.f32 %v3687, %v3701
        %v3770 = vmul.f32 %v2961, %v3700
        %v3771 = vmul.f32 %v2962, %v3701
        %v3772 = vmul.f32 %v3152, %v3700
        %v3773 = vmul.f32 %v3153, %v3701
        %v3774 = vmul.f32 %v3688, %v3700
        %v3775 = vmul.f32 %v3689, %v3701
        %v3776 = vmul.f32 %v2965, %v3700
        %v3777 = vmul.f32 %v2966, %v3701
        %v3778 = vmul.f32 %v3154, %v3700
        %v3779 = vmul.f32 %v3155, %v3701
        %v3780 = vmul.f32 %v3690, %v3700
        %v3781 = vmul.f32 %v3691, %v3701
        %v3782 = vmul.f32 %v2969, %v3700
        %v3783 = vmul.f32 %v2970, %v3701
        %v3784 = vmul.f32 %v3156, %v3700
        %v3785 = vmul.f32 %v3157, %v3701
        %v3786 = vmul.f32 %v3692, %v3700
        %v3787 = vmul.f32 %v3693, %v3701
        %v3788 = vmul.f32 %v2973, %v3700
        %v3789 = vmul.f32 %v2974, %v3701
        %v3790 = vmul.f32 %v3158, %v3700
        %v3791 = vmul.f32 %v3159, %v3701
        %v3792 = vmul.f32 %v3694, %v3700
        %v3793 = vmul.f32 %v3695, %v3701
        %v3794 = vmul.f32 %v2977, %v3700
        %v3795 = vmul.f32 %v2978, %v3701
        %v3796 = vmul.f32 %v3160, %v3700
        %v3797 = vmul.f32 %v3161, %v3701
        %v3894 = vrot.slane %v3702, 2
        %v3895 = vrot.slane %v3704, 2
        %v3896 = vsel %vm2594, %v3894, %v3895
        %v3897 = vrot.slane %v3703, 2
        %v3898 = vrot.slane %v3705, 2
        %v3899 = vsel %vm2594, %v3897, %v3898
        %v3900 = vrot.slane %v3706, 2
        %v3901 = vsel %vm2594, %v3895, %v3900
        %v3902 = vrot.slane %v3707, 2
        %v3903 = vsel %vm2594, %v3898, %v3902
        %v3904 = vrot.slane %v3708, 2
        %v3905 = vrot.slane %v3710, 2
        %v3906 = vsel %vm2594, %v3904, %v3905
        %v3907 = vrot.slane %v3709, 2
        %v3908 = vrot.slane %v3711, 2
        %v3909 = vsel %vm2594, %v3907, %v3908
        %v3910 = vrot.slane %v3712, 2
        %v3911 = vsel %vm2594, %v3905, %v3910
        %v3912 = vrot.slane %v3713, 2
        %v3913 = vsel %vm2594, %v3908, %v3912
        %v3914 = vrot.slane %v3714, 2
        %v3915 = vrot.slane %v3716, 2
        %v3916 = vsel %vm2594, %v3914, %v3915
        %v3917 = vrot.slane %v3715, 2
        %v3918 = vrot.slane %v3717, 2
        %v3919 = vsel %vm2594, %v3917, %v3918
        %v3920 = vrot.slane %v3718, 2
        %v3921 = vsel %vm2594, %v3915, %v3920
        %v3922 = vrot.slane %v3719, 2
        %v3923 = vsel %vm2594, %v3918, %v3922
        %v3924 = vrot.slane %v3720, 2
        %v3925 = vrot.slane %v3722, 2
        %v3926 = vsel %vm2594, %v3924, %v3925
        %v3927 = vrot.slane %v3721, 2
        %v3928 = vrot.slane %v3723, 2
        %v3929 = vsel %vm2594, %v3927, %v3928
        %v3930 = vrot.slane %v3724, 2
        %v3931 = vsel %vm2594, %v3925, %v3930
        %v3932 = vrot.slane %v3725, 2
        %v3933 = vsel %vm2594, %v3928, %v3932
        %v3934 = vrot.slane %v3726, 2
        %v3935 = vrot.slane %v3728, 2
        %v3936 = vsel %vm2594, %v3934, %v3935
        %v3937 = vrot.slane %v3727, 2
        %v3938 = vrot.slane %v3729, 2
        %v3939 = vsel %vm2594, %v3937, %v3938
        %v3940 = vrot.slane %v3730, 2
        %v3941 = vsel %vm2594, %v3935, %v3940
        %v3942 = vrot.slane %v3731, 2
        %v3943 = vsel %vm2594, %v3938, %v3942
        %v3944 = vrot.slane %v3732, 2
        %v3945 = vrot.slane %v3734, 2
        %v3946 = vsel %vm2594, %v3944, %v3945
        %v3947 = vrot.slane %v3733, 2
        %v3948 = vrot.slane %v3735, 2
        %v3949 = vsel %vm2594, %v3947, %v3948
        %v3950 = vrot.slane %v3736, 2
        %v3951 = vsel %vm2594, %v3945, %v3950
        %v3952 = vrot.slane %v3737, 2
        %v3953 = vsel %vm2594, %v3948, %v3952
        %v3954 = vrot.slane %v3738, 2
        %v3955 = vrot.slane %v3740, 2
        %v3956 = vsel %vm2594, %v3954, %v3955
        %v3957 = vrot.slane %v3739, 2
        %v3958 = vrot.slane %v3741, 2
        %v3959 = vsel %vm2594, %v3957, %v3958
        %v3960 = vrot.slane %v3742, 2
        %v3961 = vsel %vm2594, %v3955, %v3960
        %v3962 = vrot.slane %v3743, 2
        %v3963 = vsel %vm2594, %v3958, %v3962
        %v3964 = vrot.slane %v3744, 2
        %v3965 = vrot.slane %v3746, 2
        %v3966 = vsel %vm2594, %v3964, %v3965
        %v3967 = vrot.slane %v3745, 2
        %v3968 = vrot.slane %v3747, 2
        %v3969 = vsel %vm2594, %v3967, %v3968
        %v3970 = vrot.slane %v3748, 2
        %v3971 = vsel %vm2594, %v3965, %v3970
        %v3972 = vrot.slane %v3749, 2
        %v3973 = vsel %vm2594, %v3968, %v3972
        %v3974 = vrot.slane %v3750, 2
        %v3975 = vrot.slane %v3752, 2
        %v3976 = vsel %vm2594, %v3974, %v3975
        %v3977 = vrot.slane %v3751, 2
        %v3978 = vrot.slane %v3753, 2
        %v3979 = vsel %vm2594, %v3977, %v3978
        %v3980 = vrot.slane %v3754, 2
        %v3981 = vsel %vm2594, %v3975, %v3980
        %v3982 = vrot.slane %v3755, 2
        %v3983 = vsel %vm2594, %v3978, %v3982
        %v3984 = vrot.slane %v3756, 2
        %v3985 = vrot.slane %v3758, 2
        %v3986 = vsel %vm2594, %v3984, %v3985
        %v3987 = vrot.slane %v3757, 2
        %v3988 = vrot.slane %v3759, 2
        %v3989 = vsel %vm2594, %v3987, %v3988
        %v3990 = vrot.slane %v3760, 2
        %v3991 = vsel %vm2594, %v3985, %v3990
        %v3992 = vrot.slane %v3761, 2
        %v3993 = vsel %vm2594, %v3988, %v3992
        %v3994 = vrot.slane %v3762, 2
        %v3995 = vrot.slane %v3764, 2
        %v3996 = vsel %vm2594, %v3994, %v3995
        %v3997 = vrot.slane %v3763, 2
        %v3998 = vrot.slane %v3765, 2
        %v3999 = vsel %vm2594, %v3997, %v3998
        %v4000 = vrot.slane %v3766, 2
        %v4001 = vsel %vm2594, %v3995, %v4000
        %v4002 = vrot.slane %v3767, 2
        %v4003 = vsel %vm2594, %v3998, %v4002
        %v4004 = vrot.slane %v3768, 2
        %v4005 = vrot.slane %v3770, 2
        %v4006 = vsel %vm2594, %v4004, %v4005
        %v4007 = vrot.slane %v3769, 2
        %v4008 = vrot.slane %v3771, 2
        %v4009 = vsel %vm2594, %v4007, %v4008
        %v4010 = vrot.slane %v3772, 2
        %v4011 = vsel %vm2594, %v4005, %v4010
        %v4012 = vrot.slane %v3773, 2
        %v4013 = vsel %vm2594, %v4008, %v4012
        %v4014 = vrot.slane %v3774, 2
        %v4015 = vrot.slane %v3776, 2
        %v4016 = vsel %vm2594, %v4014, %v4015
        %v4017 = vrot.slane %v3775, 2
        %v4018 = vrot.slane %v3777, 2
        %v4019 = vsel %vm2594, %v4017, %v4018
        %v4020 = vrot.slane %v3778, 2
        %v4021 = vsel %vm2594, %v4015, %v4020
        %v4022 = vrot.slane %v3779, 2
        %v4023 = vsel %vm2594, %v4018, %v4022
        %v4024 = vrot.slane %v3780, 2
        %v4025 = vrot.slane %v3782, 2
        %v4026 = vsel %vm2594, %v4024, %v4025
        %v4027 = vrot.slane %v3781, 2
        %v4028 = vrot.slane %v3783, 2
        %v4029 = vsel %vm2594, %v4027, %v4028
        %v4030 = vrot.slane %v3784, 2
        %v4031 = vsel %vm2594, %v4025, %v4030
        %v4032 = vrot.slane %v3785, 2
        %v4033 = vsel %vm2594, %v4028, %v4032
        %v4034 = vrot.slane %v3786, 2
        %v4035 = vrot.slane %v3788, 2
        %v4036 = vsel %vm2594, %v4034, %v4035
        %v4037 = vrot.slane %v3787, 2
        %v4038 = vrot.slane %v3789, 2
        %v4039 = vsel %vm2594, %v4037, %v4038
        %v4040 = vrot.slane %v3790, 2
        %v4041 = vsel %vm2594, %v4035, %v4040
        %v4042 = vrot.slane %v3791, 2
        %v4043 = vsel %vm2594, %v4038, %v4042
        %v4044 = vrot.slane %v3792, 2
        %v4045 = vrot.slane %v3794, 2
        %v4046 = vsel %vm2594, %v4044, %v4045
        %v4047 = vrot.slane %v3793, 2
        %v4048 = vrot.slane %v3795, 2
        %v4049 = vsel %vm2594, %v4047, %v4048
        %v4050 = vrot.slane %v3796, 2
        %v4051 = vsel %vm2594, %v4045, %v4050
        %v4052 = vrot.slane %v3797, 2
        %v4053 = vsel %vm2594, %v4048, %v4052
        %v4118 = vadd.f32 %v3584, %v3896
        %v4119 = vadd.f32 %v3585, %v3899
        %v4120 = vadd.f32 %v3586, %v3901
        %v4121 = vadd.f32 %v3587, %v3903
        %v4122 = vadd.f32 %v3588, %v3906
        %v4123 = vadd.f32 %v3589, %v3909
        %v4124 = vadd.f32 %v3590, %v3911
        %v4125 = vadd.f32 %v3591, %v3913
        %v4126 = vadd.f32 %v3592, %v3916
        %v4127 = vadd.f32 %v3593, %v3919
        %v4128 = vadd.f32 %v3594, %v3921
        %v4129 = vadd.f32 %v3595, %v3923
        %v4130 = vadd.f32 %v3596, %v3926
        %v4131 = vadd.f32 %v3597, %v3929
        %v4132 = vadd.f32 %v3598, %v3931
        %v4133 = vadd.f32 %v3599, %v3933
        %v4134 = vadd.f32 %v3600, %v3936
        %v4135 = vadd.f32 %v3601, %v3939
        %v4136 = vadd.f32 %v3602, %v3941
        %v4137 = vadd.f32 %v3603, %v3943
        %v4138 = vadd.f32 %v3604, %v3946
        %v4139 = vadd.f32 %v3605, %v3949
        %v4140 = vadd.f32 %v3606, %v3951
        %v4141 = vadd.f32 %v3607, %v3953
        %v4142 = vadd.f32 %v3608, %v3956
        %v4143 = vadd.f32 %v3609, %v3959
        %v4144 = vadd.f32 %v3610, %v3961
        %v4145 = vadd.f32 %v3611, %v3963
        %v4146 = vadd.f32 %v3612, %v3966
        %v4147 = vadd.f32 %v3613, %v3969
        %v4148 = vadd.f32 %v3614, %v3971
        %v4149 = vadd.f32 %v3615, %v3973
        %v4150 = vadd.f32 %v3616, %v3976
        %v4151 = vadd.f32 %v3617, %v3979
        %v4152 = vadd.f32 %v3618, %v3981
        %v4153 = vadd.f32 %v3619, %v3983
        %v4154 = vadd.f32 %v3620, %v3986
        %v4155 = vadd.f32 %v3621, %v3989
        %v4156 = vadd.f32 %v3622, %v3991
        %v4157 = vadd.f32 %v3623, %v3993
        %v4158 = vadd.f32 %v3624, %v3996
        %v4159 = vadd.f32 %v3625, %v3999
        %v4160 = vadd.f32 %v3626, %v4001
        %v4161 = vadd.f32 %v3627, %v4003
        %v4162 = vadd.f32 %v3628, %v4006
        %v4163 = vadd.f32 %v3629, %v4009
        %v4164 = vadd.f32 %v3630, %v4011
        %v4165 = vadd.f32 %v3631, %v4013
        %v4166 = vadd.f32 %v3632, %v4016
        %v4167 = vadd.f32 %v3633, %v4019
        %v4168 = vadd.f32 %v3634, %v4021
        %v4169 = vadd.f32 %v3635, %v4023
        %v4170 = vadd.f32 %v3636, %v4026
        %v4171 = vadd.f32 %v3637, %v4029
        %v4172 = vadd.f32 %v3638, %v4031
        %v4173 = vadd.f32 %v3639, %v4033
        %v4174 = vadd.f32 %v3640, %v4036
        %v4175 = vadd.f32 %v3641, %v4039
        %v4176 = vadd.f32 %v3642, %v4041
        %v4177 = vadd.f32 %v3643, %v4043
        %v4178 = vadd.f32 %v3644, %v4046
        %v4179 = vadd.f32 %v3645, %v4049
        %v4180 = vadd.f32 %v3646, %v4051
        %v4181 = vadd.f32 %v3647, %v4053
        %s4182 = scalar_lea.vmem [#allocation2], 48
        %v4183 = vld [vmem:[%s4182] sm:$0xff]
        %v4184 = vld [vmem:[%s4182 + $0x8] sm:$0xff]
        %v4185 = vld [vmem:[%s4182 + $0x18] sm:$0xff]
        %v4186 = vld [vmem:[%s4182 + $0x20] sm:$0xff]
        %v4187 = vld [vmem:[%s4182 + $0x30] sm:$0xff]
        %v4188 = vld [vmem:[%s4182 + $0x38] sm:$0xff]
        %v4189 = vld [vmem:[%s4182 + $0x48] sm:$0xff]
        %v4190 = vld [vmem:[%s4182 + $0x50] sm:$0xff]
        %v4191 = vld [vmem:[%s4182 + $0x60] sm:$0xff]
        %v4192 = vld [vmem:[%s4182 + $0x68] sm:$0xff]
        %v4193 = vld [vmem:[%s4182 + $0x78] sm:$0xff]
        %v4194 = vld [vmem:[%s4182 + $0x80] sm:$0xff]
        %v4195 = vld [vmem:[%s4182 + $0x90] sm:$0xff]
        %v4196 = vld [vmem:[%s4182 + $0x98] sm:$0xff]
        %v4197 = vld [vmem:[%s4182 + $0xa8] sm:$0xff]
        %v4198 = vld [vmem:[%s4182 + $0xb0] sm:$0xff]
        %v4199 = vld [vmem:[%s4182 + $0xc0] sm:$0xff]
        %v4200 = vld [vmem:[%s4182 + $0xc8] sm:$0xff]
        %v4201 = vld [vmem:[%s4182 + $0xd8] sm:$0xff]
        %v4202 = vld [vmem:[%s4182 + $0xe0] sm:$0xff]
        %v4203 = vld [vmem:[%s4182 + $0xf0] sm:$0xff]
        %v4204 = vld [vmem:[%s4182 + $0xf8] sm:$0xff]
        %v4205 = vld [vmem:[%s4182 + $0x108] sm:$0xff]
        %v4206 = vld [vmem:[%s4182 + $0x110] sm:$0xff]
        %v4207 = vld [vmem:[%s4182 + $0x120] sm:$0xff]
        %v4208 = vld [vmem:[%s4182 + $0x128] sm:$0xff]
        %v4209 = vld [vmem:[%s4182 + $0x138] sm:$0xff]
        %v4210 = vld [vmem:[%s4182 + $0x140] sm:$0xff]
        %v4211 = vld [vmem:[%s4182 + $0x150] sm:$0xff]
        %v4212 = vld [vmem:[%s4182 + $0x158] sm:$0xff]
        %v4213 = vld [vmem:[%s4182 + $0x168] sm:$0xff]
        %v4214 = vld [vmem:[%s4182 + $0x170] sm:$0xff]
        %v4215 = vunpack.c.l.bf16 %v4183
        %v4216 = vunpack.c.h.bf16 %v4183
        %v4217 = vunpack.c.l.bf16 %v4184
        %v4218 = vunpack.c.h.bf16 %v4184
        %v4219 = vunpack.c.l.bf16 %v4185
        %v4220 = vunpack.c.h.bf16 %v4185
        %v4221 = vunpack.c.l.bf16 %v4186
        %v4222 = vunpack.c.h.bf16 %v4186
        %v4223 = vunpack.c.l.bf16 %v4187
        %v4224 = vunpack.c.h.bf16 %v4187
        %v4225 = vunpack.c.l.bf16 %v4188
        %v4226 = vunpack.c.h.bf16 %v4188
        %v4227 = vunpack.c.l.bf16 %v4189
        %v4228 = vunpack.c.h.bf16 %v4189
        %v4229 = vunpack.c.l.bf16 %v4190
        %v4230 = vunpack.c.h.bf16 %v4190
        %v4231 = vunpack.c.l.bf16 %v4191
        %v4232 = vunpack.c.h.bf16 %v4191
        %v4233 = vunpack.c.l.bf16 %v4192
        %v4234 = vunpack.c.h.bf16 %v4192
        %v4235 = vunpack.c.l.bf16 %v4193
        %v4236 = vunpack.c.h.bf16 %v4193
        %v4237 = vunpack.c.l.bf16 %v4194
        %v4238 = vunpack.c.h.bf16 %v4194
        %v4239 = vunpack.c.l.bf16 %v4195
        %v4240 = vunpack.c.h.bf16 %v4195
        %v4241 = vunpack.c.l.bf16 %v4196
        %v4242 = vunpack.c.h.bf16 %v4196
        %v4243 = vunpack.c.l.bf16 %v4197
        %v4244 = vunpack.c.h.bf16 %v4197
        %v4245 = vunpack.c.l.bf16 %v4198
        %v4246 = vunpack.c.h.bf16 %v4198
        %v4247 = vunpack.c.l.bf16 %v4199
        %v4248 = vunpack.c.h.bf16 %v4199
        %v4249 = vunpack.c.l.bf16 %v4200
        %v4250 = vunpack.c.h.bf16 %v4200
        %v4251 = vunpack.c.l.bf16 %v4201
        %v4252 = vunpack.c.h.bf16 %v4201
        %v4253 = vunpack.c.l.bf16 %v4202
        %v4254 = vunpack.c.h.bf16 %v4202
        %v4255 = vunpack.c.l.bf16 %v4203
        %v4256 = vunpack.c.h.bf16 %v4203
        %v4257 = vunpack.c.l.bf16 %v4204
        %v4258 = vunpack.c.h.bf16 %v4204
        %v4259 = vunpack.c.l.bf16 %v4205
        %v4260 = vunpack.c.h.bf16 %v4205
        %v4261 = vunpack.c.l.bf16 %v4206
        %v4262 = vunpack.c.h.bf16 %v4206
        %v4263 = vunpack.c.l.bf16 %v4207
        %v4264 = vunpack.c.h.bf16 %v4207
        %v4265 = vunpack.c.l.bf16 %v4208
        %v4266 = vunpack.c.h.bf16 %v4208
        %v4267 = vunpack.c.l.bf16 %v4209
        %v4268 = vunpack.c.h.bf16 %v4209
        %v4269 = vunpack.c.l.bf16 %v4210
        %v4270 = vunpack.c.h.bf16 %v4210
        %v4271 = vunpack.c.l.bf16 %v4211
        %v4272 = vunpack.c.h.bf16 %v4211
        %v4273 = vunpack.c.l.bf16 %v4212
        %v4274 = vunpack.c.h.bf16 %v4212
        %v4275 = vunpack.c.l.bf16 %v4213
        %v4276 = vunpack.c.h.bf16 %v4213
        %v4277 = vunpack.c.l.bf16 %v4214
        %v4278 = vunpack.c.h.bf16 %v4214
        %v4280 = vperm.slane %v1580, 0
        %v4281 = vperm.slane %v1580, 4
        %v4284 = vperm.slane %v4280, 0
        %v4285 = vperm.slane %v4281, 0
        %v4286 = vmul.f32 %v4215, %v4284
        %v4287 = vmul.f32 %v4216, %v4285
        %v4288 = vmul.f32 %v4217, %v4284
        %v4289 = vmul.f32 %v4218, %v4285
        %v4290 = vmul.f32 %v4219, %v4284
        %v4291 = vmul.f32 %v4220, %v4285
        %v4292 = vmul.f32 %v4221, %v4284
        %v4293 = vmul.f32 %v4222, %v4285
        %v4294 = vmul.f32 %v4223, %v4284
        %v4295 = vmul.f32 %v4224, %v4285
        %v4296 = vmul.f32 %v4225, %v4284
        %v4297 = vmul.f32 %v4226, %v4285
        %v4298 = vmul.f32 %v4227, %v4284
        %v4299 = vmul.f32 %v4228, %v4285
        %v4300 = vmul.f32 %v4229, %v4284
        %v4301 = vmul.f32 %v4230, %v4285
        %v4302 = vmul.f32 %v4231, %v4284
        %v4303 = vmul.f32 %v4232, %v4285
        %v4304 = vmul.f32 %v4233, %v4284
        %v4305 = vmul.f32 %v4234, %v4285
        %v4306 = vmul.f32 %v4235, %v4284
        %v4307 = vmul.f32 %v4236, %v4285
        %v4308 = vmul.f32 %v4237, %v4284
        %v4309 = vmul.f32 %v4238, %v4285
        %v4310 = vmul.f32 %v4239, %v4284
        %v4311 = vmul.f32 %v4240, %v4285
        %v4312 = vmul.f32 %v4241, %v4284
        %v4313 = vmul.f32 %v4242, %v4285
        %v4314 = vmul.f32 %v4243, %v4284
        %v4315 = vmul.f32 %v4244, %v4285
        %v4316 = vmul.f32 %v4245, %v4284
        %v4317 = vmul.f32 %v4246, %v4285
        %v4318 = vmul.f32 %v4247, %v4284
        %v4319 = vmul.f32 %v4248, %v4285
        %v4320 = vmul.f32 %v4249, %v4284
        %v4321 = vmul.f32 %v4250, %v4285
        %v4322 = vmul.f32 %v4251, %v4284
        %v4323 = vmul.f32 %v4252, %v4285
        %v4324 = vmul.f32 %v4253, %v4284
        %v4325 = vmul.f32 %v4254, %v4285
        %v4326 = vmul.f32 %v4255, %v4284
        %v4327 = vmul.f32 %v4256, %v4285
        %v4328 = vmul.f32 %v4257, %v4284
        %v4329 = vmul.f32 %v4258, %v4285
        %v4330 = vmul.f32 %v4259, %v4284
        %v4331 = vmul.f32 %v4260, %v4285
        %v4332 = vmul.f32 %v4261, %v4284
        %v4333 = vmul.f32 %v4262, %v4285
        %v4334 = vmul.f32 %v4263, %v4284
        %v4335 = vmul.f32 %v4264, %v4285
        %v4336 = vmul.f32 %v4265, %v4284
        %v4337 = vmul.f32 %v4266, %v4285
        %v4338 = vmul.f32 %v4267, %v4284
        %v4339 = vmul.f32 %v4268, %v4285
        %v4340 = vmul.f32 %v4269, %v4284
        %v4341 = vmul.f32 %v4270, %v4285
        %v4342 = vmul.f32 %v4271, %v4284
        %v4343 = vmul.f32 %v4272, %v4285
        %v4344 = vmul.f32 %v4273, %v4284
        %v4345 = vmul.f32 %v4274, %v4285
        %v4346 = vmul.f32 %v4275, %v4284
        %v4347 = vmul.f32 %v4276, %v4285
        %v4348 = vmul.f32 %v4277, %v4284
        %v4349 = vmul.f32 %v4278, %v4285
        %v4350 = vadd.f32 %v4118, %v4286
        %v4351 = vadd.f32 %v4119, %v4287
        %v4352 = vadd.f32 %v4120, %v4288
        %v4353 = vadd.f32 %v4121, %v4289
        %v4354 = vadd.f32 %v4122, %v4290
        %v4355 = vadd.f32 %v4123, %v4291
        %v4356 = vadd.f32 %v4124, %v4292
        %v4357 = vadd.f32 %v4125, %v4293
        %v4358 = vadd.f32 %v4126, %v4294
        %v4359 = vadd.f32 %v4127, %v4295
        %v4360 = vadd.f32 %v4128, %v4296
        %v4361 = vadd.f32 %v4129, %v4297
        %v4362 = vadd.f32 %v4130, %v4298
        %v4363 = vadd.f32 %v4131, %v4299
        %v4364 = vadd.f32 %v4132, %v4300
        %v4365 = vadd.f32 %v4133, %v4301
        %v4366 = vadd.f32 %v4134, %v4302
        %v4367 = vadd.f32 %v4135, %v4303
        %v4368 = vadd.f32 %v4136, %v4304
        %v4369 = vadd.f32 %v4137, %v4305
        %v4370 = vadd.f32 %v4138, %v4306
        %v4371 = vadd.f32 %v4139, %v4307
        %v4372 = vadd.f32 %v4140, %v4308
        %v4373 = vadd.f32 %v4141, %v4309
        %v4374 = vadd.f32 %v4142, %v4310
        %v4375 = vadd.f32 %v4143, %v4311
        %v4376 = vadd.f32 %v4144, %v4312
        %v4377 = vadd.f32 %v4145, %v4313
        %v4378 = vadd.f32 %v4146, %v4314
        %v4379 = vadd.f32 %v4147, %v4315
        %v4380 = vadd.f32 %v4148, %v4316
        %v4381 = vadd.f32 %v4149, %v4317
        %v4382 = vadd.f32 %v4150, %v4318
        %v4383 = vadd.f32 %v4151, %v4319
        %v4384 = vadd.f32 %v4152, %v4320
        %v4385 = vadd.f32 %v4153, %v4321
        %v4386 = vadd.f32 %v4154, %v4322
        %v4387 = vadd.f32 %v4155, %v4323
        %v4388 = vadd.f32 %v4156, %v4324
        %v4389 = vadd.f32 %v4157, %v4325
        %v4390 = vadd.f32 %v4158, %v4326
        %v4391 = vadd.f32 %v4159, %v4327
        %v4392 = vadd.f32 %v4160, %v4328
        %v4393 = vadd.f32 %v4161, %v4329
        %v4394 = vadd.f32 %v4162, %v4330
        %v4395 = vadd.f32 %v4163, %v4331
        %v4396 = vadd.f32 %v4164, %v4332
        %v4397 = vadd.f32 %v4165, %v4333
        %v4398 = vadd.f32 %v4166, %v4334
        %v4399 = vadd.f32 %v4167, %v4335
        %v4400 = vadd.f32 %v4168, %v4336
        %v4401 = vadd.f32 %v4169, %v4337
        %v4402 = vadd.f32 %v4170, %v4338
        %v4403 = vadd.f32 %v4171, %v4339
        %v4404 = vadd.f32 %v4172, %v4340
        %v4405 = vadd.f32 %v4173, %v4341
        %v4406 = vadd.f32 %v4174, %v4342
        %v4407 = vadd.f32 %v4175, %v4343
        %v4408 = vadd.f32 %v4176, %v4344
        %v4409 = vadd.f32 %v4177, %v4345
        %v4410 = vadd.f32 %v4178, %v4346
        %v4411 = vadd.f32 %v4179, %v4347
        %v4412 = vadd.f32 %v4180, %v4348
        %v4413 = vadd.f32 %v4181, %v4349
        %v4414 = vld [vmem:[%s4182 + $0x10] sm:$0x11]
        %v4415 = vld [vmem:[%s4182 + $0x28] sm:$0x11]
        %v4416 = vld [vmem:[%s4182 + $0x40] sm:$0x11]
        %v4417 = vld [vmem:[%s4182 + $0x58] sm:$0x11]
        %v4418 = vld [vmem:[%s4182 + $0x70] sm:$0x11]
        %v4419 = vld [vmem:[%s4182 + $0x88] sm:$0x11]
        %v4420 = vld [vmem:[%s4182 + $0xa0] sm:$0x11]
        %v4421 = vld [vmem:[%s4182 + $0xb8] sm:$0x11]
        %v4422 = vld [vmem:[%s4182 + $0xd0] sm:$0x11]
        %v4423 = vld [vmem:[%s4182 + $0xe8] sm:$0x11]
        %v4424 = vld [vmem:[%s4182 + $0x100] sm:$0x11]
        %v4425 = vld [vmem:[%s4182 + $0x118] sm:$0x11]
        %v4426 = vld [vmem:[%s4182 + $0x130] sm:$0x11]
        %v4427 = vld [vmem:[%s4182 + $0x148] sm:$0x11]
        %v4428 = vld [vmem:[%s4182 + $0x160] sm:$0x11]
        %v4429 = vld [vmem:[%s4182 + $0x178] sm:$0x11]
        %v4430 = vunpack.c.l.bf16 %v4414
        %v4431 = vunpack.c.h.bf16 %v4414
        %v4432 = vunpack.c.l.bf16 %v4415
        %v4433 = vunpack.c.h.bf16 %v4415
        %v4434 = vunpack.c.l.bf16 %v4416
        %v4435 = vunpack.c.h.bf16 %v4416
        %v4436 = vunpack.c.l.bf16 %v4417
        %v4437 = vunpack.c.h.bf16 %v4417
        %v4438 = vunpack.c.l.bf16 %v4418
        %v4439 = vunpack.c.h.bf16 %v4418
        %v4440 = vunpack.c.l.bf16 %v4419
        %v4441 = vunpack.c.h.bf16 %v4419
        %v4442 = vunpack.c.l.bf16 %v4420
        %v4443 = vunpack.c.h.bf16 %v4420
        %v4444 = vunpack.c.l.bf16 %v4421
        %v4445 = vunpack.c.h.bf16 %v4421
        %v4446 = vunpack.c.l.bf16 %v4422
        %v4447 = vunpack.c.h.bf16 %v4422
        %v4448 = vunpack.c.l.bf16 %v4423
        %v4449 = vunpack.c.h.bf16 %v4423
        %v4450 = vunpack.c.l.bf16 %v4424
        %v4451 = vunpack.c.h.bf16 %v4424
        %v4452 = vunpack.c.l.bf16 %v4425
        %v4453 = vunpack.c.h.bf16 %v4425
        %v4454 = vunpack.c.l.bf16 %v4426
        %v4455 = vunpack.c.h.bf16 %v4426
        %v4456 = vunpack.c.l.bf16 %v4427
        %v4457 = vunpack.c.h.bf16 %v4427
        %v4458 = vunpack.c.l.bf16 %v4428
        %v4459 = vunpack.c.h.bf16 %v4428
        %v4460 = vunpack.c.l.bf16 %v4429
        %v4461 = vunpack.c.h.bf16 %v4429
        %v4462 = vperm.slane %v1580, 1
        %v4463 = vperm.slane %v1580, 5
        %v4466 = vperm.slane %v4462, 1
        %v4467 = vperm.slane %v4463, 1
        %v4468 = vmul.f32 %v4215, %v4466
        %v4469 = vmul.f32 %v4216, %v4467
        %v4470 = vmul.f32 %v4217, %v4466
        %v4471 = vmul.f32 %v4218, %v4467
        %v4472 = vmul.f32 %v4430, %v4466
        %v4473 = vmul.f32 %v4431, %v4467
        %v4474 = vmul.f32 %v4219, %v4466
        %v4475 = vmul.f32 %v4220, %v4467
        %v4476 = vmul.f32 %v4221, %v4466
        %v4477 = vmul.f32 %v4222, %v4467
        %v4478 = vmul.f32 %v4432, %v4466
        %v4479 = vmul.f32 %v4433, %v4467
        %v4480 = vmul.f32 %v4223, %v4466
        %v4481 = vmul.f32 %v4224, %v4467
        %v4482 = vmul.f32 %v4225, %v4466
        %v4483 = vmul.f32 %v4226, %v4467
        %v4484 = vmul.f32 %v4434, %v4466
        %v4485 = vmul.f32 %v4435, %v4467
        %v4486 = vmul.f32 %v4227, %v4466
        %v4487 = vmul.f32 %v4228, %v4467
        %v4488 = vmul.f32 %v4229, %v4466
        %v4489 = vmul.f32 %v4230, %v4467
        %v4490 = vmul.f32 %v4436, %v4466
        %v4491 = vmul.f32 %v4437, %v4467
        %v4492 = vmul.f32 %v4231, %v4466
        %v4493 = vmul.f32 %v4232, %v4467
        %v4494 = vmul.f32 %v4233, %v4466
        %v4495 = vmul.f32 %v4234, %v4467
        %v4496 = vmul.f32 %v4438, %v4466
        %v4497 = vmul.f32 %v4439, %v4467
        %v4498 = vmul.f32 %v4235, %v4466
        %v4499 = vmul.f32 %v4236, %v4467
        %v4500 = vmul.f32 %v4237, %v4466
        %v4501 = vmul.f32 %v4238, %v4467
        %v4502 = vmul.f32 %v4440, %v4466
        %v4503 = vmul.f32 %v4441, %v4467
        %v4504 = vmul.f32 %v4239, %v4466
        %v4505 = vmul.f32 %v4240, %v4467
        %v4506 = vmul.f32 %v4241, %v4466
        %v4507 = vmul.f32 %v4242, %v4467
        %v4508 = vmul.f32 %v4442, %v4466
        %v4509 = vmul.f32 %v4443, %v4467
        %v4510 = vmul.f32 %v4243, %v4466
        %v4511 = vmul.f32 %v4244, %v4467
        %v4512 = vmul.f32 %v4245, %v4466
        %v4513 = vmul.f32 %v4246, %v4467
        %v4514 = vmul.f32 %v4444, %v4466
        %v4515 = vmul.f32 %v4445, %v4467
        %v4516 = vmul.f32 %v4247, %v4466
        %v4517 = vmul.f32 %v4248, %v4467
        %v4518 = vmul.f32 %v4249, %v4466
        %v4519 = vmul.f32 %v4250, %v4467
        %v4520 = vmul.f32 %v4446, %v4466
        %v4521 = vmul.f32 %v4447, %v4467
        %v4522 = vmul.f32 %v4251, %v4466
        %v4523 = vmul.f32 %v4252, %v4467
        %v4524 = vmul.f32 %v4253, %v4466
        %v4525 = vmul.f32 %v4254, %v4467
        %v4526 = vmul.f32 %v4448, %v4466
        %v4527 = vmul.f32 %v4449, %v4467
        %v4528 = vmul.f32 %v4255, %v4466
        %v4529 = vmul.f32 %v4256, %v4467
        %v4530 = vmul.f32 %v4257, %v4466
        %v4531 = vmul.f32 %v4258, %v4467
        %v4532 = vmul.f32 %v4450, %v4466
        %v4533 = vmul.f32 %v4451, %v4467
        %v4534 = vmul.f32 %v4259, %v4466
        %v4535 = vmul.f32 %v4260, %v4467
        %v4536 = vmul.f32 %v4261, %v4466
        %v4537 = vmul.f32 %v4262, %v4467
        %v4538 = vmul.f32 %v4452, %v4466
        %v4539 = vmul.f32 %v4453, %v4467
        %v4540 = vmul.f32 %v4263, %v4466
        %v4541 = vmul.f32 %v4264, %v4467
        %v4542 = vmul.f32 %v4265, %v4466
        %v4543 = vmul.f32 %v4266, %v4467
        %v4544 = vmul.f32 %v4454, %v4466
        %v4545 = vmul.f32 %v4455, %v4467
        %v4546 = vmul.f32 %v4267, %v4466
        %v4547 = vmul.f32 %v4268, %v4467
        %v4548 = vmul.f32 %v4269, %v4466
        %v4549 = vmul.f32 %v4270, %v4467
        %v4550 = vmul.f32 %v4456, %v4466
        %v4551 = vmul.f32 %v4457, %v4467
        %v4552 = vmul.f32 %v4271, %v4466
        %v4553 = vmul.f32 %v4272, %v4467
        %v4554 = vmul.f32 %v4273, %v4466
        %v4555 = vmul.f32 %v4274, %v4467
        %v4556 = vmul.f32 %v4458, %v4466
        %v4557 = vmul.f32 %v4459, %v4467
        %v4558 = vmul.f32 %v4275, %v4466
        %v4559 = vmul.f32 %v4276, %v4467
        %v4560 = vmul.f32 %v4277, %v4466
        %v4561 = vmul.f32 %v4278, %v4467
        %v4562 = vmul.f32 %v4460, %v4466
        %v4563 = vmul.f32 %v4461, %v4467
        %v4660 = vrot.slane %v4468, 1
        %v4661 = vrot.slane %v4470, 1
        %v4662 = vsel %vm2059, %v4660, %v4661
        %v4663 = vrot.slane %v4469, 1
        %v4664 = vrot.slane %v4471, 1
        %v4665 = vsel %vm2059, %v4663, %v4664
        %v4666 = vrot.slane %v4472, 1
        %v4667 = vsel %vm2059, %v4661, %v4666
        %v4668 = vrot.slane %v4473, 1
        %v4669 = vsel %vm2059, %v4664, %v4668
        %v4670 = vrot.slane %v4474, 1
        %v4671 = vrot.slane %v4476, 1
        %v4672 = vsel %vm2059, %v4670, %v4671
        %v4673 = vrot.slane %v4475, 1
        %v4674 = vrot.slane %v4477, 1
        %v4675 = vsel %vm2059, %v4673, %v4674
        %v4676 = vrot.slane %v4478, 1
        %v4677 = vsel %vm2059, %v4671, %v4676
        %v4678 = vrot.slane %v4479, 1
        %v4679 = vsel %vm2059, %v4674, %v4678
        %v4680 = vrot.slane %v4480, 1
        %v4681 = vrot.slane %v4482, 1
        %v4682 = vsel %vm2059, %v4680, %v4681
        %v4683 = vrot.slane %v4481, 1
        %v4684 = vrot.slane %v4483, 1
        %v4685 = vsel %vm2059, %v4683, %v4684
        %v4686 = vrot.slane %v4484, 1
        %v4687 = vsel %vm2059, %v4681, %v4686
        %v4688 = vrot.slane %v4485, 1
        %v4689 = vsel %vm2059, %v4684, %v4688
        %v4690 = vrot.slane %v4486, 1
        %v4691 = vrot.slane %v4488, 1
        %v4692 = vsel %vm2059, %v4690, %v4691
        %v4693 = vrot.slane %v4487, 1
        %v4694 = vrot.slane %v4489, 1
        %v4695 = vsel %vm2059, %v4693, %v4694
        %v4696 = vrot.slane %v4490, 1
        %v4697 = vsel %vm2059, %v4691, %v4696
        %v4698 = vrot.slane %v4491, 1
        %v4699 = vsel %vm2059, %v4694, %v4698
        %v4700 = vrot.slane %v4492, 1
        %v4701 = vrot.slane %v4494, 1
        %v4702 = vsel %vm2059, %v4700, %v4701
        %v4703 = vrot.slane %v4493, 1
        %v4704 = vrot.slane %v4495, 1
        %v4705 = vsel %vm2059, %v4703, %v4704
        %v4706 = vrot.slane %v4496, 1
        %v4707 = vsel %vm2059, %v4701, %v4706
        %v4708 = vrot.slane %v4497, 1
        %v4709 = vsel %vm2059, %v4704, %v4708
        %v4710 = vrot.slane %v4498, 1
        %v4711 = vrot.slane %v4500, 1
        %v4712 = vsel %vm2059, %v4710, %v4711
        %v4713 = vrot.slane %v4499, 1
        %v4714 = vrot.slane %v4501, 1
        %v4715 = vsel %vm2059, %v4713, %v4714
        %v4716 = vrot.slane %v4502, 1
        %v4717 = vsel %vm2059, %v4711, %v4716
        %v4718 = vrot.slane %v4503, 1
        %v4719 = vsel %vm2059, %v4714, %v4718
        %v4720 = vrot.slane %v4504, 1
        %v4721 = vrot.slane %v4506, 1
        %v4722 = vsel %vm2059, %v4720, %v4721
        %v4723 = vrot.slane %v4505, 1
        %v4724 = vrot.slane %v4507, 1
        %v4725 = vsel %vm2059, %v4723, %v4724
        %v4726 = vrot.slane %v4508, 1
        %v4727 = vsel %vm2059, %v4721, %v4726
        %v4728 = vrot.slane %v4509, 1
        %v4729 = vsel %vm2059, %v4724, %v4728
        %v4730 = vrot.slane %v4510, 1
        %v4731 = vrot.slane %v4512, 1
        %v4732 = vsel %vm2059, %v4730, %v4731
        %v4733 = vrot.slane %v4511, 1
        %v4734 = vrot.slane %v4513, 1
        %v4735 = vsel %vm2059, %v4733, %v4734
        %v4736 = vrot.slane %v4514, 1
        %v4737 = vsel %vm2059, %v4731, %v4736
        %v4738 = vrot.slane %v4515, 1
        %v4739 = vsel %vm2059, %v4734, %v4738
        %v4740 = vrot.slane %v4516, 1
        %v4741 = vrot.slane %v4518, 1
        %v4742 = vsel %vm2059, %v4740, %v4741
        %v4743 = vrot.slane %v4517, 1
        %v4744 = vrot.slane %v4519, 1
        %v4745 = vsel %vm2059, %v4743, %v4744
        %v4746 = vrot.slane %v4520, 1
        %v4747 = vsel %vm2059, %v4741, %v4746
        %v4748 = vrot.slane %v4521, 1
        %v4749 = vsel %vm2059, %v4744, %v4748
        %v4750 = vrot.slane %v4522, 1
        %v4751 = vrot.slane %v4524, 1
        %v4752 = vsel %vm2059, %v4750, %v4751
        %v4753 = vrot.slane %v4523, 1
        %v4754 = vrot.slane %v4525, 1
        %v4755 = vsel %vm2059, %v4753, %v4754
        %v4756 = vrot.slane %v4526, 1
        %v4757 = vsel %vm2059, %v4751, %v4756
        %v4758 = vrot.slane %v4527, 1
        %v4759 = vsel %vm2059, %v4754, %v4758
        %v4760 = vrot.slane %v4528, 1
        %v4761 = vrot.slane %v4530, 1
        %v4762 = vsel %vm2059, %v4760, %v4761
        %v4763 = vrot.slane %v4529, 1
        %v4764 = vrot.slane %v4531, 1
        %v4765 = vsel %vm2059, %v4763, %v4764
        %v4766 = vrot.slane %v4532, 1
        %v4767 = vsel %vm2059, %v4761, %v4766
        %v4768 = vrot.slane %v4533, 1
        %v4769 = vsel %vm2059, %v4764, %v4768
        %v4770 = vrot.slane %v4534, 1
        %v4771 = vrot.slane %v4536, 1
        %v4772 = vsel %vm2059, %v4770, %v4771
        %v4773 = vrot.slane %v4535, 1
        %v4774 = vrot.slane %v4537, 1
        %v4775 = vsel %vm2059, %v4773, %v4774
        %v4776 = vrot.slane %v4538, 1
        %v4777 = vsel %vm2059, %v4771, %v4776
        %v4778 = vrot.slane %v4539, 1
        %v4779 = vsel %vm2059, %v4774, %v4778
        %v4780 = vrot.slane %v4540, 1
        %v4781 = vrot.slane %v4542, 1
        %v4782 = vsel %vm2059, %v4780, %v4781
        %v4783 = vrot.slane %v4541, 1
        %v4784 = vrot.slane %v4543, 1
        %v4785 = vsel %vm2059, %v4783, %v4784
        %v4786 = vrot.slane %v4544, 1
        %v4787 = vsel %vm2059, %v4781, %v4786
        %v4788 = vrot.slane %v4545, 1
        %v4789 = vsel %vm2059, %v4784, %v4788
        %v4790 = vrot.slane %v4546, 1
        %v4791 = vrot.slane %v4548, 1
        %v4792 = vsel %vm2059, %v4790, %v4791
        %v4793 = vrot.slane %v4547, 1
        %v4794 = vrot.slane %v4549, 1
        %v4795 = vsel %vm2059, %v4793, %v4794
        %v4796 = vrot.slane %v4550, 1
        %v4797 = vsel %vm2059, %v4791, %v4796
        %v4798 = vrot.slane %v4551, 1
        %v4799 = vsel %vm2059, %v4794, %v4798
        %v4800 = vrot.slane %v4552, 1
        %v4801 = vrot.slane %v4554, 1
        %v4802 = vsel %vm2059, %v4800, %v4801
        %v4803 = vrot.slane %v4553, 1
        %v4804 = vrot.slane %v4555, 1
        %v4805 = vsel %vm2059, %v4803, %v4804
        %v4806 = vrot.slane %v4556, 1
        %v4807 = vsel %vm2059, %v4801, %v4806
        %v4808 = vrot.slane %v4557, 1
        %v4809 = vsel %vm2059, %v4804, %v4808
        %v4810 = vrot.slane %v4558, 1
        %v4811 = vrot.slane %v4560, 1
        %v4812 = vsel %vm2059, %v4810, %v4811
        %v4813 = vrot.slane %v4559, 1
        %v4814 = vrot.slane %v4561, 1
        %v4815 = vsel %vm2059, %v4813, %v4814
        %v4816 = vrot.slane %v4562, 1
        %v4817 = vsel %vm2059, %v4811, %v4816
        %v4818 = vrot.slane %v4563, 1
        %v4819 = vsel %vm2059, %v4814, %v4818
        %v4884 = vadd.f32 %v4350, %v4662
        %v4885 = vadd.f32 %v4351, %v4665
        %v4886 = vadd.f32 %v4352, %v4667
        %v4887 = vadd.f32 %v4353, %v4669
        %v4888 = vadd.f32 %v4354, %v4672
        %v4889 = vadd.f32 %v4355, %v4675
        %v4890 = vadd.f32 %v4356, %v4677
        %v4891 = vadd.f32 %v4357, %v4679
        %v4892 = vadd.f32 %v4358, %v4682
        %v4893 = vadd.f32 %v4359, %v4685
        %v4894 = vadd.f32 %v4360, %v4687
        %v4895 = vadd.f32 %v4361, %v4689
        %v4896 = vadd.f32 %v4362, %v4692
        %v4897 = vadd.f32 %v4363, %v4695
        %v4898 = vadd.f32 %v4364, %v4697
        %v4899 = vadd.f32 %v4365, %v4699
        %v4900 = vadd.f32 %v4366, %v4702
        %v4901 = vadd.f32 %v4367, %v4705
        %v4902 = vadd.f32 %v4368, %v4707
        %v4903 = vadd.f32 %v4369, %v4709
        %v4904 = vadd.f32 %v4370, %v4712
        %v4905 = vadd.f32 %v4371, %v4715
        %v4906 = vadd.f32 %v4372, %v4717
        %v4907 = vadd.f32 %v4373, %v4719
        %v4908 = vadd.f32 %v4374, %v4722
        %v4909 = vadd.f32 %v4375, %v4725
        %v4910 = vadd.f32 %v4376, %v4727
        %v4911 = vadd.f32 %v4377, %v4729
        %v4912 = vadd.f32 %v4378, %v4732
        %v4913 = vadd.f32 %v4379, %v4735
        %v4914 = vadd.f32 %v4380, %v4737
        %v4915 = vadd.f32 %v4381, %v4739
        %v4916 = vadd.f32 %v4382, %v4742
        %v4917 = vadd.f32 %v4383, %v4745
        %v4918 = vadd.f32 %v4384, %v4747
        %v4919 = vadd.f32 %v4385, %v4749
        %v4920 = vadd.f32 %v4386, %v4752
        %v4921 = vadd.f32 %v4387, %v4755
        %v4922 = vadd.f32 %v4388, %v4757
        %v4923 = vadd.f32 %v4389, %v4759
        %v4924 = vadd.f32 %v4390, %v4762
        %v4925 = vadd.f32 %v4391, %v4765
        %v4926 = vadd.f32 %v4392, %v4767
        %v4927 = vadd.f32 %v4393, %v4769
        %v4928 = vadd.f32 %v4394, %v4772
        %v4929 = vadd.f32 %v4395, %v4775
        %v4930 = vadd.f32 %v4396, %v4777
        %v4931 = vadd.f32 %v4397, %v4779
        %v4932 = vadd.f32 %v4398, %v4782
        %v4933 = vadd.f32 %v4399, %v4785
        %v4934 = vadd.f32 %v4400, %v4787
        %v4935 = vadd.f32 %v4401, %v4789
        %v4936 = vadd.f32 %v4402, %v4792
        %v4937 = vadd.f32 %v4403, %v4795
        %v4938 = vadd.f32 %v4404, %v4797
        %v4939 = vadd.f32 %v4405, %v4799
        %v4940 = vadd.f32 %v4406, %v4802
        %v4941 = vadd.f32 %v4407, %v4805
        %v4942 = vadd.f32 %v4408, %v4807
        %v4943 = vadd.f32 %v4409, %v4809
        %v4944 = vadd.f32 %v4410, %v4812
        %v4945 = vadd.f32 %v4411, %v4815
        %v4946 = vadd.f32 %v4412, %v4817
        %v4947 = vadd.f32 %v4413, %v4819
        %v4948 = vld [vmem:[%s4182] sm:$0xee]
        %v4949 = vld [vmem:[%s4182 + $0x18] sm:$0xee]
        %v4950 = vld [vmem:[%s4182 + $0x30] sm:$0xee]
        %v4951 = vld [vmem:[%s4182 + $0x48] sm:$0xee]
        %v4952 = vld [vmem:[%s4182 + $0x60] sm:$0xee]
        %v4953 = vld [vmem:[%s4182 + $0x78] sm:$0xee]
        %v4954 = vld [vmem:[%s4182 + $0x90] sm:$0xee]
        %v4955 = vld [vmem:[%s4182 + $0xa8] sm:$0xee]
        %v4956 = vld [vmem:[%s4182 + $0xc0] sm:$0xee]
        %v4957 = vld [vmem:[%s4182 + $0xd8] sm:$0xee]
        %v4958 = vld [vmem:[%s4182 + $0xf0] sm:$0xee]
        %v4959 = vld [vmem:[%s4182 + $0x108] sm:$0xee]
        %v4960 = vld [vmem:[%s4182 + $0x120] sm:$0xee]
        %v4961 = vld [vmem:[%s4182 + $0x138] sm:$0xee]
        %v4962 = vld [vmem:[%s4182 + $0x150] sm:$0xee]
        %v4963 = vld [vmem:[%s4182 + $0x168] sm:$0xee]
        %v4964 = vunpack.c.l.bf16 %v4948
        %v4965 = vunpack.c.h.bf16 %v4948
        %v4966 = vunpack.c.l.bf16 %v4949
        %v4967 = vunpack.c.h.bf16 %v4949
        %v4968 = vunpack.c.l.bf16 %v4950
        %v4969 = vunpack.c.h.bf16 %v4950
        %v4970 = vunpack.c.l.bf16 %v4951
        %v4971 = vunpack.c.h.bf16 %v4951
        %v4972 = vunpack.c.l.bf16 %v4952
        %v4973 = vunpack.c.h.bf16 %v4952
        %v4974 = vunpack.c.l.bf16 %v4953
        %v4975 = vunpack.c.h.bf16 %v4953
        %v4976 = vunpack.c.l.bf16 %v4954
        %v4977 = vunpack.c.h.bf16 %v4954
        %v4978 = vunpack.c.l.bf16 %v4955
        %v4979 = vunpack.c.h.bf16 %v4955
        %v4980 = vunpack.c.l.bf16 %v4956
        %v4981 = vunpack.c.h.bf16 %v4956
        %v4982 = vunpack.c.l.bf16 %v4957
        %v4983 = vunpack.c.h.bf16 %v4957
        %v4984 = vunpack.c.l.bf16 %v4958
        %v4985 = vunpack.c.h.bf16 %v4958
        %v4986 = vunpack.c.l.bf16 %v4959
        %v4987 = vunpack.c.h.bf16 %v4959
        %v4988 = vunpack.c.l.bf16 %v4960
        %v4989 = vunpack.c.h.bf16 %v4960
        %v4990 = vunpack.c.l.bf16 %v4961
        %v4991 = vunpack.c.h.bf16 %v4961
        %v4992 = vunpack.c.l.bf16 %v4962
        %v4993 = vunpack.c.h.bf16 %v4962
        %v4994 = vunpack.c.l.bf16 %v4963
        %v4995 = vunpack.c.h.bf16 %v4963
        %v4996 = vperm.slane %v1580, 2
        %v4997 = vperm.slane %v1580, 6
        %v5000 = vperm.slane %v4996, 2
        %v5001 = vperm.slane %v4997, 2
        %v5002 = vmul.f32 %v4964, %v5000
        %v5003 = vmul.f32 %v4965, %v5001
        %v5004 = vmul.f32 %v4217, %v5000
        %v5005 = vmul.f32 %v4218, %v5001
        %v5006 = vmul.f32 %v4430, %v5000
        %v5007 = vmul.f32 %v4431, %v5001
        %v5008 = vmul.f32 %v4966, %v5000
        %v5009 = vmul.f32 %v4967, %v5001
        %v5010 = vmul.f32 %v4221, %v5000
        %v5011 = vmul.f32 %v4222, %v5001
        %v5012 = vmul.f32 %v4432, %v5000
        %v5013 = vmul.f32 %v4433, %v5001
        %v5014 = vmul.f32 %v4968, %v5000
        %v5015 = vmul.f32 %v4969, %v5001
        %v5016 = vmul.f32 %v4225, %v5000
        %v5017 = vmul.f32 %v4226, %v5001
        %v5018 = vmul.f32 %v4434, %v5000
        %v5019 = vmul.f32 %v4435, %v5001
        %v5020 = vmul.f32 %v4970, %v5000
        %v5021 = vmul.f32 %v4971, %v5001
        %v5022 = vmul.f32 %v4229, %v5000
        %v5023 = vmul.f32 %v4230, %v5001
        %v5024 = vmul.f32 %v4436, %v5000
        %v5025 = vmul.f32 %v4437, %v5001
        %v5026 = vmul.f32 %v4972, %v5000
        %v5027 = vmul.f32 %v4973, %v5001
        %v5028 = vmul.f32 %v4233, %v5000
        %v5029 = vmul.f32 %v4234, %v5001
        %v5030 = vmul.f32 %v4438, %v5000
        %v5031 = vmul.f32 %v4439, %v5001
        %v5032 = vmul.f32 %v4974, %v5000
        %v5033 = vmul.f32 %v4975, %v5001
        %v5034 = vmul.f32 %v4237, %v5000
        %v5035 = vmul.f32 %v4238, %v5001
        %v5036 = vmul.f32 %v4440, %v5000
        %v5037 = vmul.f32 %v4441, %v5001
        %v5038 = vmul.f32 %v4976, %v5000
        %v5039 = vmul.f32 %v4977, %v5001
        %v5040 = vmul.f32 %v4241, %v5000
        %v5041 = vmul.f32 %v4242, %v5001
        %v5042 = vmul.f32 %v4442, %v5000
        %v5043 = vmul.f32 %v4443, %v5001
        %v5044 = vmul.f32 %v4978, %v5000
        %v5045 = vmul.f32 %v4979, %v5001
        %v5046 = vmul.f32 %v4245, %v5000
        %v5047 = vmul.f32 %v4246, %v5001
        %v5048 = vmul.f32 %v4444, %v5000
        %v5049 = vmul.f32 %v4445, %v5001
        %v5050 = vmul.f32 %v4980, %v5000
        %v5051 = vmul.f32 %v4981, %v5001
        %v5052 = vmul.f32 %v4249, %v5000
        %v5053 = vmul.f32 %v4250, %v5001
        %v5054 = vmul.f32 %v4446, %v5000
        %v5055 = vmul.f32 %v4447, %v5001
        %v5056 = vmul.f32 %v4982, %v5000
        %v5057 = vmul.f32 %v4983, %v5001
        %v5058 = vmul.f32 %v4253, %v5000
        %v5059 = vmul.f32 %v4254, %v5001
        %v5060 = vmul.f32 %v4448, %v5000
        %v5061 = vmul.f32 %v4449, %v5001
        %v5062 = vmul.f32 %v4984, %v5000
        %v5063 = vmul.f32 %v4985, %v5001
        %v5064 = vmul.f32 %v4257, %v5000
        %v5065 = vmul.f32 %v4258, %v5001
        %v5066 = vmul.f32 %v4450, %v5000
        %v5067 = vmul.f32 %v4451, %v5001
        %v5068 = vmul.f32 %v4986, %v5000
        %v5069 = vmul.f32 %v4987, %v5001
        %v5070 = vmul.f32 %v4261, %v5000
        %v5071 = vmul.f32 %v4262, %v5001
        %v5072 = vmul.f32 %v4452, %v5000
        %v5073 = vmul.f32 %v4453, %v5001
        %v5074 = vmul.f32 %v4988, %v5000
        %v5075 = vmul.f32 %v4989, %v5001
        %v5076 = vmul.f32 %v4265, %v5000
        %v5077 = vmul.f32 %v4266, %v5001
        %v5078 = vmul.f32 %v4454, %v5000
        %v5079 = vmul.f32 %v4455, %v5001
        %v5080 = vmul.f32 %v4990, %v5000
        %v5081 = vmul.f32 %v4991, %v5001
        %v5082 = vmul.f32 %v4269, %v5000
        %v5083 = vmul.f32 %v4270, %v5001
        %v5084 = vmul.f32 %v4456, %v5000
        %v5085 = vmul.f32 %v4457, %v5001
        %v5086 = vmul.f32 %v4992, %v5000
        %v5087 = vmul.f32 %v4993, %v5001
        %v5088 = vmul.f32 %v4273, %v5000
        %v5089 = vmul.f32 %v4274, %v5001
        %v5090 = vmul.f32 %v4458, %v5000
        %v5091 = vmul.f32 %v4459, %v5001
        %v5092 = vmul.f32 %v4994, %v5000
        %v5093 = vmul.f32 %v4995, %v5001
        %v5094 = vmul.f32 %v4277, %v5000
        %v5095 = vmul.f32 %v4278, %v5001
        %v5096 = vmul.f32 %v4460, %v5000
        %v5097 = vmul.f32 %v4461, %v5001
        %v5194 = vrot.slane %v5002, 2
        %v5195 = vrot.slane %v5004, 2
        %v5196 = vsel %vm2594, %v5194, %v5195
        %v5197 = vrot.slane %v5003, 2
        %v5198 = vrot.slane %v5005, 2
        %v5199 = vsel %vm2594, %v5197, %v5198
        %v5200 = vrot.slane %v5006, 2
        %v5201 = vsel %vm2594, %v5195, %v5200
        %v5202 = vrot.slane %v5007, 2
        %v5203 = vsel %vm2594, %v5198, %v5202
        %v5204 = vrot.slane %v5008, 2
        %v5205 = vrot.slane %v5010, 2
        %v5206 = vsel %vm2594, %v5204, %v5205
        %v5207 = vrot.slane %v5009, 2
        %v5208 = vrot.slane %v5011, 2
        %v5209 = vsel %vm2594, %v5207, %v5208
        %v5210 = vrot.slane %v5012, 2
        %v5211 = vsel %vm2594, %v5205, %v5210
        %v5212 = vrot.slane %v5013, 2
        %v5213 = vsel %vm2594, %v5208, %v5212
        %v5214 = vrot.slane %v5014, 2
        %v5215 = vrot.slane %v5016, 2
        %v5216 = vsel %vm2594, %v5214, %v5215
        %v5217 = vrot.slane %v5015, 2
        %v5218 = vrot.slane %v5017, 2
        %v5219 = vsel %vm2594, %v5217, %v5218
        %v5220 = vrot.slane %v5018, 2
        %v5221 = vsel %vm2594, %v5215, %v5220
        %v5222 = vrot.slane %v5019, 2
        %v5223 = vsel %vm2594, %v5218, %v5222
        %v5224 = vrot.slane %v5020, 2
        %v5225 = vrot.slane %v5022, 2
        %v5226 = vsel %vm2594, %v5224, %v5225
        %v5227 = vrot.slane %v5021, 2
        %v5228 = vrot.slane %v5023, 2
        %v5229 = vsel %vm2594, %v5227, %v5228
        %v5230 = vrot.slane %v5024, 2
        %v5231 = vsel %vm2594, %v5225, %v5230
        %v5232 = vrot.slane %v5025, 2
        %v5233 = vsel %vm2594, %v5228, %v5232
        %v5234 = vrot.slane %v5026, 2
        %v5235 = vrot.slane %v5028, 2
        %v5236 = vsel %vm2594, %v5234, %v5235
        %v5237 = vrot.slane %v5027, 2
        %v5238 = vrot.slane %v5029, 2
        %v5239 = vsel %vm2594, %v5237, %v5238
        %v5240 = vrot.slane %v5030, 2
        %v5241 = vsel %vm2594, %v5235, %v5240
        %v5242 = vrot.slane %v5031, 2
        %v5243 = vsel %vm2594, %v5238, %v5242
        %v5244 = vrot.slane %v5032, 2
        %v5245 = vrot.slane %v5034, 2
        %v5246 = vsel %vm2594, %v5244, %v5245
        %v5247 = vrot.slane %v5033, 2
        %v5248 = vrot.slane %v5035, 2
        %v5249 = vsel %vm2594, %v5247, %v5248
        %v5250 = vrot.slane %v5036, 2
        %v5251 = vsel %vm2594, %v5245, %v5250
        %v5252 = vrot.slane %v5037, 2
        %v5253 = vsel %vm2594, %v5248, %v5252
        %v5254 = vrot.slane %v5038, 2
        %v5255 = vrot.slane %v5040, 2
        %v5256 = vsel %vm2594, %v5254, %v5255
        %v5257 = vrot.slane %v5039, 2
        %v5258 = vrot.slane %v5041, 2
        %v5259 = vsel %vm2594, %v5257, %v5258
        %v5260 = vrot.slane %v5042, 2
        %v5261 = vsel %vm2594, %v5255, %v5260
        %v5262 = vrot.slane %v5043, 2
        %v5263 = vsel %vm2594, %v5258, %v5262
        %v5264 = vrot.slane %v5044, 2
        %v5265 = vrot.slane %v5046, 2
        %v5266 = vsel %vm2594, %v5264, %v5265
        %v5267 = vrot.slane %v5045, 2
        %v5268 = vrot.slane %v5047, 2
        %v5269 = vsel %vm2594, %v5267, %v5268
        %v5270 = vrot.slane %v5048, 2
        %v5271 = vsel %vm2594, %v5265, %v5270
        %v5272 = vrot.slane %v5049, 2
        %v5273 = vsel %vm2594, %v5268, %v5272
        %v5274 = vrot.slane %v5050, 2
        %v5275 = vrot.slane %v5052, 2
        %v5276 = vsel %vm2594, %v5274, %v5275
        %v5277 = vrot.slane %v5051, 2
        %v5278 = vrot.slane %v5053, 2
        %v5279 = vsel %vm2594, %v5277, %v5278
        %v5280 = vrot.slane %v5054, 2
        %v5281 = vsel %vm2594, %v5275, %v5280
        %v5282 = vrot.slane %v5055, 2
        %v5283 = vsel %vm2594, %v5278, %v5282
        %v5284 = vrot.slane %v5056, 2
        %v5285 = vrot.slane %v5058, 2
        %v5286 = vsel %vm2594, %v5284, %v5285
        %v5287 = vrot.slane %v5057, 2
        %v5288 = vrot.slane %v5059, 2
        %v5289 = vsel %vm2594, %v5287, %v5288
        %v5290 = vrot.slane %v5060, 2
        %v5291 = vsel %vm2594, %v5285, %v5290
        %v5292 = vrot.slane %v5061, 2
        %v5293 = vsel %vm2594, %v5288, %v5292
        %v5294 = vrot.slane %v5062, 2
        %v5295 = vrot.slane %v5064, 2
        %v5296 = vsel %vm2594, %v5294, %v5295
        %v5297 = vrot.slane %v5063, 2
        %v5298 = vrot.slane %v5065, 2
        %v5299 = vsel %vm2594, %v5297, %v5298
        %v5300 = vrot.slane %v5066, 2
        %v5301 = vsel %vm2594, %v5295, %v5300
        %v5302 = vrot.slane %v5067, 2
        %v5303 = vsel %vm2594, %v5298, %v5302
        %v5304 = vrot.slane %v5068, 2
        %v5305 = vrot.slane %v5070, 2
        %v5306 = vsel %vm2594, %v5304, %v5305
        %v5307 = vrot.slane %v5069, 2
        %v5308 = vrot.slane %v5071, 2
        %v5309 = vsel %vm2594, %v5307, %v5308
        %v5310 = vrot.slane %v5072, 2
        %v5311 = vsel %vm2594, %v5305, %v5310
        %v5312 = vrot.slane %v5073, 2
        %v5313 = vsel %vm2594, %v5308, %v5312
        %v5314 = vrot.slane %v5074, 2
        %v5315 = vrot.slane %v5076, 2
        %v5316 = vsel %vm2594, %v5314, %v5315
        %v5317 = vrot.slane %v5075, 2
        %v5318 = vrot.slane %v5077, 2
        %v5319 = vsel %vm2594, %v5317, %v5318
        %v5320 = vrot.slane %v5078, 2
        %v5321 = vsel %vm2594, %v5315, %v5320
        %v5322 = vrot.slane %v5079, 2
        %v5323 = vsel %vm2594, %v5318, %v5322
        %v5324 = vrot.slane %v5080, 2
        %v5325 = vrot.slane %v5082, 2
        %v5326 = vsel %vm2594, %v5324, %v5325
        %v5327 = vrot.slane %v5081, 2
        %v5328 = vrot.slane %v5083, 2
        %v5329 = vsel %vm2594, %v5327, %v5328
        %v5330 = vrot.slane %v5084, 2
        %v5331 = vsel %vm2594, %v5325, %v5330
        %v5332 = vrot.slane %v5085, 2
        %v5333 = vsel %vm2594, %v5328, %v5332
        %v5334 = vrot.slane %v5086, 2
        %v5335 = vrot.slane %v5088, 2
        %v5336 = vsel %vm2594, %v5334, %v5335
        %v5337 = vrot.slane %v5087, 2
        %v5338 = vrot.slane %v5089, 2
        %v5339 = vsel %vm2594, %v5337, %v5338
        %v5340 = vrot.slane %v5090, 2
        %v5341 = vsel %vm2594, %v5335, %v5340
        %v5342 = vrot.slane %v5091, 2
        %v5343 = vsel %vm2594, %v5338, %v5342
        %v5344 = vrot.slane %v5092, 2
        %v5345 = vrot.slane %v5094, 2
        %v5346 = vsel %vm2594, %v5344, %v5345
        %v5347 = vrot.slane %v5093, 2
        %v5348 = vrot.slane %v5095, 2
        %v5349 = vsel %vm2594, %v5347, %v5348
        %v5350 = vrot.slane %v5096, 2
        %v5351 = vsel %vm2594, %v5345, %v5350
        %v5352 = vrot.slane %v5097, 2
        %v5353 = vsel %vm2594, %v5348, %v5352
        %v5418 = vadd.f32 %v4884, %v5196
        %v5419 = vadd.f32 %v4885, %v5199
        %v5420 = vadd.f32 %v4886, %v5201
        %v5421 = vadd.f32 %v4887, %v5203
        %v5422 = vadd.f32 %v4888, %v5206
        %v5423 = vadd.f32 %v4889, %v5209
        %v5424 = vadd.f32 %v4890, %v5211
        %v5425 = vadd.f32 %v4891, %v5213
        %v5426 = vadd.f32 %v4892, %v5216
        %v5427 = vadd.f32 %v4893, %v5219
        %v5428 = vadd.f32 %v4894, %v5221
        %v5429 = vadd.f32 %v4895, %v5223
        %v5430 = vadd.f32 %v4896, %v5226
        %v5431 = vadd.f32 %v4897, %v5229
        %v5432 = vadd.f32 %v4898, %v5231
        %v5433 = vadd.f32 %v4899, %v5233
        %v5434 = vadd.f32 %v4900, %v5236
        %v5435 = vadd.f32 %v4901, %v5239
        %v5436 = vadd.f32 %v4902, %v5241
        %v5437 = vadd.f32 %v4903, %v5243
        %v5438 = vadd.f32 %v4904, %v5246
        %v5439 = vadd.f32 %v4905, %v5249
        %v5440 = vadd.f32 %v4906, %v5251
        %v5441 = vadd.f32 %v4907, %v5253
        %v5442 = vadd.f32 %v4908, %v5256
        %v5443 = vadd.f32 %v4909, %v5259
        %v5444 = vadd.f32 %v4910, %v5261
        %v5445 = vadd.f32 %v4911, %v5263
        %v5446 = vadd.f32 %v4912, %v5266
        %v5447 = vadd.f32 %v4913, %v5269
        %v5448 = vadd.f32 %v4914, %v5271
        %v5449 = vadd.f32 %v4915, %v5273
        %v5450 = vadd.f32 %v4916, %v5276
        %v5451 = vadd.f32 %v4917, %v5279
        %v5452 = vadd.f32 %v4918, %v5281
        %v5453 = vadd.f32 %v4919, %v5283
        %v5454 = vadd.f32 %v4920, %v5286
        %v5455 = vadd.f32 %v4921, %v5289
        %v5456 = vadd.f32 %v4922, %v5291
        %v5457 = vadd.f32 %v4923, %v5293
        %v5458 = vadd.f32 %v4924, %v5296
        %v5459 = vadd.f32 %v4925, %v5299
        %v5460 = vadd.f32 %v4926, %v5301
        %v5461 = vadd.f32 %v4927, %v5303
        %v5462 = vadd.f32 %v4928, %v5306
        %v5463 = vadd.f32 %v4929, %v5309
        %v5464 = vadd.f32 %v4930, %v5311
        %v5465 = vadd.f32 %v4931, %v5313
        %v5466 = vadd.f32 %v4932, %v5316
        %v5467 = vadd.f32 %v4933, %v5319
        %v5468 = vadd.f32 %v4934, %v5321
        %v5469 = vadd.f32 %v4935, %v5323
        %v5470 = vadd.f32 %v4936, %v5326
        %v5471 = vadd.f32 %v4937, %v5329
        %v5472 = vadd.f32 %v4938, %v5331
        %v5473 = vadd.f32 %v4939, %v5333
        %v5474 = vadd.f32 %v4940, %v5336
        %v5475 = vadd.f32 %v4941, %v5339
        %v5476 = vadd.f32 %v4942, %v5341
        %v5477 = vadd.f32 %v4943, %v5343
        %v5478 = vadd.f32 %v4944, %v5346
        %v5479 = vadd.f32 %v4945, %v5349
        %v5480 = vadd.f32 %v4946, %v5351
        %v5481 = vadd.f32 %v4947, %v5353
        %v5483 = vperm.slane %v1581, 0
        %v5484 = vperm.slane %v1581, 1
        %v5487 = vadd.f32 %v5418, %v5483
        %v5488 = vadd.f32 %v5419, %v5484
        %v5489 = vadd.f32 %v5420, %v5483
        %v5490 = vadd.f32 %v5421, %v5484
        %v5491 = vadd.f32 %v5422, %v5483
        %v5492 = vadd.f32 %v5423, %v5484
        %v5493 = vadd.f32 %v5424, %v5483
        %v5494 = vadd.f32 %v5425, %v5484
        %v5495 = vadd.f32 %v5426, %v5483
        %v5496 = vadd.f32 %v5427, %v5484
        %v5497 = vadd.f32 %v5428, %v5483
        %v5498 = vadd.f32 %v5429, %v5484
        %v5499 = vadd.f32 %v5430, %v5483
        %v5500 = vadd.f32 %v5431, %v5484
        %v5501 = vadd.f32 %v5432, %v5483
        %v5502 = vadd.f32 %v5433, %v5484
        %v5503 = vadd.f32 %v5434, %v5483
        %v5504 = vadd.f32 %v5435, %v5484
        %v5505 = vadd.f32 %v5436, %v5483
        %v5506 = vadd.f32 %v5437, %v5484
        %v5507 = vadd.f32 %v5438, %v5483
        %v5508 = vadd.f32 %v5439, %v5484
        %v5509 = vadd.f32 %v5440, %v5483
        %v5510 = vadd.f32 %v5441, %v5484
        %v5511 = vadd.f32 %v5442, %v5483
        %v5512 = vadd.f32 %v5443, %v5484
        %v5513 = vadd.f32 %v5444, %v5483
        %v5514 = vadd.f32 %v5445, %v5484
        %v5515 = vadd.f32 %v5446, %v5483
        %v5516 = vadd.f32 %v5447, %v5484
        %v5517 = vadd.f32 %v5448, %v5483
        %v5518 = vadd.f32 %v5449, %v5484
        %v5519 = vadd.f32 %v5450, %v5483
        %v5520 = vadd.f32 %v5451, %v5484
        %v5521 = vadd.f32 %v5452, %v5483
        %v5522 = vadd.f32 %v5453, %v5484
        %v5523 = vadd.f32 %v5454, %v5483
        %v5524 = vadd.f32 %v5455, %v5484
        %v5525 = vadd.f32 %v5456, %v5483
        %v5526 = vadd.f32 %v5457, %v5484
        %v5527 = vadd.f32 %v5458, %v5483
        %v5528 = vadd.f32 %v5459, %v5484
        %v5529 = vadd.f32 %v5460, %v5483
        %v5530 = vadd.f32 %v5461, %v5484
        %v5531 = vadd.f32 %v5462, %v5483
        %v5532 = vadd.f32 %v5463, %v5484
        %v5533 = vadd.f32 %v5464, %v5483
        %v5534 = vadd.f32 %v5465, %v5484
        %v5535 = vadd.f32 %v5466, %v5483
        %v5536 = vadd.f32 %v5467, %v5484
        %v5537 = vadd.f32 %v5468, %v5483
        %v5538 = vadd.f32 %v5469, %v5484
        %v5539 = vadd.f32 %v5470, %v5483
        %v5540 = vadd.f32 %v5471, %v5484
        %v5541 = vadd.f32 %v5472, %v5483
        %v5542 = vadd.f32 %v5473, %v5484
        %v5543 = vadd.f32 %v5474, %v5483
        %v5544 = vadd.f32 %v5475, %v5484
        %v5545 = vadd.f32 %v5476, %v5483
        %v5546 = vadd.f32 %v5477, %v5484
        %v5547 = vadd.f32 %v5478, %v5483
        %v5548 = vadd.f32 %v5479, %v5484
        %v5549 = vadd.f32 %v5480, %v5483
        %v5550 = vadd.f32 %v5481, %v5484
        %v5551 = vmax.f32 %v5487, 0.0
        %v5552 = vmax.f32 %v5488, 0.0
        %v5553 = vmax.f32 %v5489, 0.0
        %v5554 = vmax.f32 %v5490, 0.0
        %v5555 = vmax.f32 %v5491, 0.0
        %v5556 = vmax.f32 %v5492, 0.0
        %v5557 = vmax.f32 %v5493, 0.0
        %v5558 = vmax.f32 %v5494, 0.0
        %v5559 = vmax.f32 %v5495, 0.0
        %v5560 = vmax.f32 %v5496, 0.0
        %v5561 = vmax.f32 %v5497, 0.0
        %v5562 = vmax.f32 %v5498, 0.0
        %v5563 = vmax.f32 %v5499, 0.0
        %v5564 = vmax.f32 %v5500, 0.0
        %v5565 = vmax.f32 %v5501, 0.0
        %v5566 = vmax.f32 %v5502, 0.0
        %v5567 = vmax.f32 %v5503, 0.0
        %v5568 = vmax.f32 %v5504, 0.0
        %v5569 = vmax.f32 %v5505, 0.0
        %v5570 = vmax.f32 %v5506, 0.0
        %v5571 = vmax.f32 %v5507, 0.0
        %v5572 = vmax.f32 %v5508, 0.0
        %v5573 = vmax.f32 %v5509, 0.0
        %v5574 = vmax.f32 %v5510, 0.0
        %v5575 = vmax.f32 %v5511, 0.0
        %v5576 = vmax.f32 %v5512, 0.0
        %v5577 = vmax.f32 %v5513, 0.0
        %v5578 = vmax.f32 %v5514, 0.0
        %v5579 = vmax.f32 %v5515, 0.0
        %v5580 = vmax.f32 %v5516, 0.0
        %v5581 = vmax.f32 %v5517, 0.0
        %v5582 = vmax.f32 %v5518, 0.0
        %v5583 = vmax.f32 %v5519, 0.0
        %v5584 = vmax.f32 %v5520, 0.0
        %v5585 = vmax.f32 %v5521, 0.0
        %v5586 = vmax.f32 %v5522, 0.0
        %v5587 = vmax.f32 %v5523, 0.0
        %v5588 = vmax.f32 %v5524, 0.0
        %v5589 = vmax.f32 %v5525, 0.0
        %v5590 = vmax.f32 %v5526, 0.0
        %v5591 = vmax.f32 %v5527, 0.0
        %v5592 = vmax.f32 %v5528, 0.0
        %v5593 = vmax.f32 %v5529, 0.0
        %v5594 = vmax.f32 %v5530, 0.0
        %v5595 = vmax.f32 %v5531, 0.0
        %v5596 = vmax.f32 %v5532, 0.0
        %v5597 = vmax.f32 %v5533, 0.0
        %v5598 = vmax.f32 %v5534, 0.0
        %v5599 = vmax.f32 %v5535, 0.0
        %v5600 = vmax.f32 %v5536, 0.0
        %v5601 = vmax.f32 %v5537, 0.0
        %v5602 = vmax.f32 %v5538, 0.0
        %v5603 = vmax.f32 %v5539, 0.0
        %v5604 = vmax.f32 %v5540, 0.0
        %v5605 = vmax.f32 %v5541, 0.0
        %v5606 = vmax.f32 %v5542, 0.0
        %v5607 = vmax.f32 %v5543, 0.0
        %v5608 = vmax.f32 %v5544, 0.0
        %v5609 = vmax.f32 %v5545, 0.0
        %v5610 = vmax.f32 %v5546, 0.0
        %v5611 = vmax.f32 %v5547, 0.0
        %v5612 = vmax.f32 %v5548, 0.0
        %v5613 = vmax.f32 %v5549, 0.0
        %v5614 = vmax.f32 %v5550, 0.0
        %v5615 = vmin.f32 %v5551, 6.0
        %v5616 = vmin.f32 %v5552, 6.0
        %v5617 = vmin.f32 %v5553, 6.0
        %v5618 = vmin.f32 %v5554, 6.0
        %v5619 = vmin.f32 %v5555, 6.0
        %v5620 = vmin.f32 %v5556, 6.0
        %v5621 = vmin.f32 %v5557, 6.0
        %v5622 = vmin.f32 %v5558, 6.0
        %v5623 = vmin.f32 %v5559, 6.0
        %v5624 = vmin.f32 %v5560, 6.0
        %v5625 = vmin.f32 %v5561, 6.0
        %v5626 = vmin.f32 %v5562, 6.0
        %v5627 = vmin.f32 %v5563, 6.0
        %v5628 = vmin.f32 %v5564, 6.0
        %v5629 = vmin.f32 %v5565, 6.0
        %v5630 = vmin.f32 %v5566, 6.0
        %v5631 = vmin.f32 %v5567, 6.0
        %v5632 = vmin.f32 %v5568, 6.0
        %v5633 = vmin.f32 %v5569, 6.0
        %v5634 = vmin.f32 %v5570, 6.0
        %v5635 = vmin.f32 %v5571, 6.0
        %v5636 = vmin.f32 %v5572, 6.0
        %v5637 = vmin.f32 %v5573, 6.0
        %v5638 = vmin.f32 %v5574, 6.0
        %v5639 = vmin.f32 %v5575, 6.0
        %v5640 = vmin.f32 %v5576, 6.0
        %v5641 = vmin.f32 %v5577, 6.0
        %v5642 = vmin.f32 %v5578, 6.0
        %v5643 = vmin.f32 %v5579, 6.0
        %v5644 = vmin.f32 %v5580, 6.0
        %v5645 = vmin.f32 %v5581, 6.0
        %v5646 = vmin.f32 %v5582, 6.0
        %v5647 = vmin.f32 %v5583, 6.0
        %v5648 = vmin.f32 %v5584, 6.0
        %v5649 = vmin.f32 %v5585, 6.0
        %v5650 = vmin.f32 %v5586, 6.0
        %v5651 = vmin.f32 %v5587, 6.0
        %v5652 = vmin.f32 %v5588, 6.0
        %v5653 = vmin.f32 %v5589, 6.0
        %v5654 = vmin.f32 %v5590, 6.0
        %v5655 = vmin.f32 %v5591, 6.0
        %v5656 = vmin.f32 %v5592, 6.0
        %v5657 = vmin.f32 %v5593, 6.0
        %v5658 = vmin.f32 %v5594, 6.0
        %v5659 = vmin.f32 %v5595, 6.0
        %v5660 = vmin.f32 %v5596, 6.0
        %v5661 = vmin.f32 %v5597, 6.0
        %v5662 = vmin.f32 %v5598, 6.0
        %v5663 = vmin.f32 %v5599, 6.0
        %v5664 = vmin.f32 %v5600, 6.0
        %v5665 = vmin.f32 %v5601, 6.0
        %v5666 = vmin.f32 %v5602, 6.0
        %v5667 = vmin.f32 %v5603, 6.0
        %v5668 = vmin.f32 %v5604, 6.0
        %v5669 = vmin.f32 %v5605, 6.0
        %v5670 = vmin.f32 %v5606, 6.0
        %v5671 = vmin.f32 %v5607, 6.0
        %v5672 = vmin.f32 %v5608, 6.0
        %v5673 = vmin.f32 %v5609, 6.0
        %v5674 = vmin.f32 %v5610, 6.0
        %v5675 = vmin.f32 %v5611, 6.0
        %v5676 = vmin.f32 %v5612, 6.0
        %v5677 = vmin.f32 %v5613, 6.0
        %v5678 = vmin.f32 %v5614, 6.0
        %v5679 = vpack.c.bf16 %v5617, %v5615
        %v5680 = vpack.c.bf16 %v5618, %v5616
        %v5681 = vpack.c.bf16 %v5621, %v5619
        %v5682 = vpack.c.bf16 %v5622, %v5620
        %v5683 = vpack.c.bf16 %v5625, %v5623
        %v5684 = vpack.c.bf16 %v5626, %v5624
        %v5685 = vpack.c.bf16 %v5629, %v5627
        %v5686 = vpack.c.bf16 %v5630, %v5628
        %v5687 = vpack.c.bf16 %v5633, %v5631
        %v5688 = vpack.c.bf16 %v5634, %v5632
        %v5689 = vpack.c.bf16 %v5637, %v5635
        %v5690 = vpack.c.bf16 %v5638, %v5636
        %v5691 = vpack.c.bf16 %v5641, %v5639
        %v5692 = vpack.c.bf16 %v5642, %v5640
        %v5693 = vpack.c.bf16 %v5645, %v5643
        %v5694 = vpack.c.bf16 %v5646, %v5644
        %v5695 = vpack.c.bf16 %v5649, %v5647
        %v5696 = vpack.c.bf16 %v5650, %v5648
        %v5697 = vpack.c.bf16 %v5653, %v5651
        %v5698 = vpack.c.bf16 %v5654, %v5652
        %v5699 = vpack.c.bf16 %v5657, %v5655
        %v5700 = vpack.c.bf16 %v5658, %v5656
        %v5701 = vpack.c.bf16 %v5661, %v5659
        %v5702 = vpack.c.bf16 %v5662, %v5660
        %v5703 = vpack.c.bf16 %v5665, %v5663
        %v5704 = vpack.c.bf16 %v5666, %v5664
        %v5705 = vpack.c.bf16 %v5669, %v5667
        %v5706 = vpack.c.bf16 %v5670, %v5668
        %v5707 = vpack.c.bf16 %v5673, %v5671
        %v5708 = vpack.c.bf16 %v5674, %v5672
        %v5709 = vpack.c.bf16 %v5677, %v5675
        %v5710 = vpack.c.bf16 %v5678, %v5676
        %v5711 = vld [vmem:[#allocation11] sm:$0xf]
        %v5712 = vld [vmem:[#allocation11 + $0x4] sm:$0xf]
        %v5713 = vld [vmem:[#allocation11 + $0x8] sm:$0xf]
        %v5714 = vld [vmem:[#allocation11 + $0xc] sm:$0xf]
        %v5715 = vld [vmem:[#allocation11 + $0x10] sm:$0xf]
        %v5716 = vld [vmem:[#allocation11 + $0x14] sm:$0xf]
        %v5717 = vld [vmem:[#allocation11 + $0x18] sm:$0xf]
        %v5718 = vld [vmem:[#allocation11 + $0x1c] sm:$0xf]
        %v5719 = vld [vmem:[#allocation11 + $0x20] sm:$0xf]
        %v5720 = vld [vmem:[#allocation11 + $0x24] sm:$0xf]
        %v5721 = vld [vmem:[#allocation11 + $0x28] sm:$0xf]
        %v5722 = vld [vmem:[#allocation11 + $0x2c] sm:$0xf]
        %v5723 = vld [vmem:[#allocation11 + $0x30] sm:$0xf]
        %v5724 = vld [vmem:[#allocation11 + $0x34] sm:$0xf]
        %v5725 = vld [vmem:[#allocation11 + $0x38] sm:$0xf]
        %v5726 = vld [vmem:[#allocation11 + $0x3c] sm:$0xf]
        %v5727 = vld [vmem:[#allocation11 + $0x40] sm:$0xf]
        %v5728 = vld [vmem:[#allocation11 + $0x44] sm:$0xf]
        %v5729 = vld [vmem:[#allocation11 + $0x48] sm:$0xf]
        %v5730 = vld [vmem:[#allocation11 + $0x4c] sm:$0xf]
        %v5731 = vld [vmem:[#allocation11 + $0x50] sm:$0xf]
        %v5732 = vld [vmem:[#allocation11 + $0x54] sm:$0xf]
        %v5733 = vld [vmem:[#allocation11 + $0x58] sm:$0xf]
        %v5734 = vld [vmem:[#allocation11 + $0x5c] sm:$0xf]
        %v5735 = vld [vmem:[#allocation11 + $0x60] sm:$0xf]
        %v5736 = vld [vmem:[#allocation11 + $0x64] sm:$0xf]
        %v5737 = vld [vmem:[#allocation11 + $0x68] sm:$0xf]
        %v5738 = vld [vmem:[#allocation11 + $0x6c] sm:$0xf]
        %v5739 = vld [vmem:[#allocation11 + $0x70] sm:$0xf]
        %v5740 = vld [vmem:[#allocation11 + $0x74] sm:$0xf]
        %v5741 = vld [vmem:[#allocation11 + $0x78] sm:$0xf]
        %v5742 = vld [vmem:[#allocation11 + $0x7c] sm:$0xf]
        %v5743 = vld [vmem:[%s6] sm:$0x1]
        %v5745 = vperm.slane %v5743, 0
        %v5779 = vunpack.c.l.b16 %v5711
        %v5780 = vunpack.c.l.b16 %v5712
        %v5781 = vunpack.c.l.b16 %v5713
        %v5782 = vunpack.c.l.b16 %v5714
        %v5783 = vunpack.c.l.b16 %v5715
        %v5784 = vunpack.c.l.b16 %v5716
        %v5785 = vunpack.c.l.b16 %v5717
        %v5786 = vunpack.c.l.b16 %v5718
        %v5787 = vunpack.c.l.b16 %v5719
        %v5788 = vunpack.c.l.b16 %v5720
        %v5789 = vunpack.c.l.b16 %v5721
        %v5790 = vunpack.c.l.b16 %v5722
        %v5791 = vunpack.c.l.b16 %v5723
        %v5792 = vunpack.c.l.b16 %v5724
        %v5793 = vunpack.c.l.b16 %v5725
        %v5794 = vunpack.c.l.b16 %v5726
        %v5795 = vunpack.c.l.b16 %v5727
        %v5796 = vunpack.c.l.b16 %v5728
        %v5797 = vunpack.c.l.b16 %v5729
        %v5798 = vunpack.c.l.b16 %v5730
        %v5799 = vunpack.c.l.b16 %v5731
        %v5800 = vunpack.c.l.b16 %v5732
        %v5801 = vunpack.c.l.b16 %v5733
        %v5802 = vunpack.c.l.b16 %v5734
        %v5803 = vunpack.c.l.b16 %v5735
        %v5804 = vunpack.c.l.b16 %v5736
        %v5805 = vunpack.c.l.b16 %v5737
        %v5806 = vunpack.c.l.b16 %v5738
        %v5807 = vunpack.c.l.b16 %v5739
        %v5808 = vunpack.c.l.b16 %v5740
        %v5809 = vunpack.c.l.b16 %v5741
        %v5810 = vunpack.c.l.b16 %v5742
        %v5811 = vpack.c.b16 %v5780, %v5779
        %v5812 = vpack.c.b16 %v5782, %v5781
        %v5813 = vpack.c.b16 %v5784, %v5783
        %v5814 = vpack.c.b16 %v5786, %v5785
        %v5815 = vpack.c.b16 %v5788, %v5787
        %v5816 = vpack.c.b16 %v5790, %v5789
        %v5817 = vpack.c.b16 %v5792, %v5791
        %v5818 = vpack.c.b16 %v5794, %v5793
        %v5819 = vpack.c.b16 %v5796, %v5795
        %v5820 = vpack.c.b16 %v5798, %v5797
        %v5821 = vpack.c.b16 %v5800, %v5799
        %v5822 = vpack.c.b16 %v5802, %v5801
        %v5823 = vpack.c.b16 %v5804, %v5803
        %v5824 = vpack.c.b16 %v5806, %v5805
        %v5825 = vpack.c.b16 %v5808, %v5807
        %v5826 = vpack.c.b16 %v5810, %v5809
        %5843 = vmatpush.bf16.msra.mxu0 %v5818
        %5844 = vmatpush.bf16.msra.mxu0 %v5817
        %5845 = vmatpush.bf16.msra.mxu0 %v5816
        %5846 = vmatpush.bf16.msra.mxu0 %v5815
        %5847 = vmatpush.bf16.msra.mxu0 %v5814
        %5848 = vmatpush.bf16.msra.mxu0 %v5813
        %5849 = vmatpush.bf16.msra.mxu0 %v5812
        %5850 = vmatpush.bf16.msra.mxu0 %v5811
        %5851 = vmatmul.bf16.gmra.mxu0 %v5679
        %v5852 = vpop.f32.mrf.mxu0
        %v5853 = vadd.f32 %v5745, %v5852
        %v5854 = vpop.f32.mrf.mxu0
        %v5855 = vadd.f32 %v5745, %v5854
        %5856 = vmatmul.bf16.gmra.mxu0 %v5681
        %v5857 = vpop.f32.mrf.mxu0
        %v5858 = vadd.f32 %v5745, %v5857
        %v5859 = vpop.f32.mrf.mxu0
        %v5860 = vadd.f32 %v5745, %v5859
        %5861 = vmatmul.bf16.gmra.mxu0 %v5683
        %v5862 = vpop.f32.mrf.mxu0
        %v5863 = vadd.f32 %v5745, %v5862
        %v5864 = vpop.f32.mrf.mxu0
        %v5865 = vadd.f32 %v5745, %v5864
        %5866 = vmatmul.bf16.gmra.mxu0 %v5685
        %v5867 = vpop.f32.mrf.mxu0
        %v5868 = vadd.f32 %v5745, %v5867
        %v5869 = vpop.f32.mrf.mxu0
        %v5870 = vadd.f32 %v5745, %v5869
        %5871 = vmatmul.bf16.gmra.mxu0 %v5687
        %v5872 = vpop.f32.mrf.mxu0
        %v5873 = vadd.f32 %v5745, %v5872
        %v5874 = vpop.f32.mrf.mxu0
        %v5875 = vadd.f32 %v5745, %v5874
        %5876 = vmatmul.bf16.gmra.mxu0 %v5689
        %v5877 = vpop.f32.mrf.mxu0
        %v5878 = vadd.f32 %v5745, %v5877
        %v5879 = vpop.f32.mrf.mxu0
        %v5880 = vadd.f32 %v5745, %v5879
        %5881 = vmatmul.bf16.gmra.mxu0 %v5691
        %v5882 = vpop.f32.mrf.mxu0
        %v5883 = vadd.f32 %v5745, %v5882
        %v5884 = vpop.f32.mrf.mxu0
        %v5885 = vadd.f32 %v5745, %v5884
        %5886 = vmatmul.bf16.gmra.mxu0 %v5693
        %v5887 = vpop.f32.mrf.mxu0
        %v5888 = vadd.f32 %v5745, %v5887
        %v5889 = vpop.f32.mrf.mxu0
        %v5890 = vadd.f32 %v5745, %v5889
        %5891 = vmatmul.bf16.gmra.mxu0 %v5695
        %v5892 = vpop.f32.mrf.mxu0
        %v5893 = vadd.f32 %v5745, %v5892
        %v5894 = vpop.f32.mrf.mxu0
        %v5895 = vadd.f32 %v5745, %v5894
        %5896 = vmatmul.bf16.gmra.mxu0 %v5697
        %v5897 = vpop.f32.mrf.mxu0
        %v5898 = vadd.f32 %v5745, %v5897
        %v5899 = vpop.f32.mrf.mxu0
        %v5900 = vadd.f32 %v5745, %v5899
        %5901 = vmatmul.bf16.gmra.mxu0 %v5699
        %v5902 = vpop.f32.mrf.mxu0
        %v5903 = vadd.f32 %v5745, %v5902
        %v5904 = vpop.f32.mrf.mxu0
        %v5905 = vadd.f32 %v5745, %v5904
        %5906 = vmatmul.bf16.gmra.mxu0 %v5701
        %v5907 = vpop.f32.mrf.mxu0
        %v5908 = vadd.f32 %v5745, %v5907
        %v5909 = vpop.f32.mrf.mxu0
        %v5910 = vadd.f32 %v5745, %v5909
        %5911 = vmatmul.bf16.gmra.mxu0 %v5703
        %v5912 = vpop.f32.mrf.mxu0
        %v5913 = vadd.f32 %v5745, %v5912
        %v5914 = vpop.f32.mrf.mxu0
        %v5915 = vadd.f32 %v5745, %v5914
        %5916 = vmatmul.bf16.gmra.mxu0 %v5705
        %v5917 = vpop.f32.mrf.mxu0
        %v5918 = vadd.f32 %v5745, %v5917
        %v5919 = vpop.f32.mrf.mxu0
        %v5920 = vadd.f32 %v5745, %v5919
        %5921 = vmatmul.bf16.gmra.mxu0 %v5707
        %v5922 = vpop.f32.mrf.mxu0
        %v5923 = vadd.f32 %v5745, %v5922
        %v5924 = vpop.f32.mrf.mxu0
        %v5925 = vadd.f32 %v5745, %v5924
        %5926 = vmatmul.bf16.gmra.mxu0 %v5709
        %v5927 = vpop.f32.mrf.mxu0
        %v5928 = vadd.f32 %v5745, %v5927
        %v5929 = vpop.f32.mrf.mxu0
        %v5930 = vadd.f32 %v5745, %v5929
        %5931 = vdwg.mxu0
        %5932 = vmatpush.bf16.msra.mxu0 %v5826
        %5933 = vmatpush.bf16.msra.mxu0 %v5825
        %5934 = vmatpush.bf16.msra.mxu0 %v5824
        %5935 = vmatpush.bf16.msra.mxu0 %v5823
        %5936 = vmatpush.bf16.msra.mxu0 %v5822
        %5937 = vmatpush.bf16.msra.mxu0 %v5821
        %5938 = vmatpush.bf16.msra.mxu0 %v5820
        %5939 = vmatpush.bf16.msra.mxu0 %v5819
        %5940 = vmatmul.bf16.gmra.mxu0 %v5680
        %v5941 = vpop.f32.mrf.mxu0
        %v5942 = vadd.f32 %v5853, %v5941
        %v5943 = vpop.f32.mrf.mxu0
        %v5944 = vadd.f32 %v5855, %v5943
        %5945 = vmatmul.bf16.gmra.mxu0 %v5682
        %v5946 = vpop.f32.mrf.mxu0
        %v5947 = vadd.f32 %v5858, %v5946
        %v5948 = vpop.f32.mrf.mxu0
        %v5949 = vadd.f32 %v5860, %v5948
        %5950 = vmatmul.bf16.gmra.mxu0 %v5684
        %v5951 = vpop.f32.mrf.mxu0
        %v5952 = vadd.f32 %v5863, %v5951
        %v5953 = vpop.f32.mrf.mxu0
        %v5954 = vadd.f32 %v5865, %v5953
        %5955 = vmatmul.bf16.gmra.mxu0 %v5686
        %v5956 = vpop.f32.mrf.mxu0
        %v5957 = vadd.f32 %v5868, %v5956
        %v5958 = vpop.f32.mrf.mxu0
        %v5959 = vadd.f32 %v5870, %v5958
        %5960 = vmatmul.bf16.gmra.mxu0 %v5688
        %v5961 = vpop.f32.mrf.mxu0
        %v5962 = vadd.f32 %v5873, %v5961
        %v5963 = vpop.f32.mrf.mxu0
        %v5964 = vadd.f32 %v5875, %v5963
        %5965 = vmatmul.bf16.gmra.mxu0 %v5690
        %v5966 = vpop.f32.mrf.mxu0
        %v5967 = vadd.f32 %v5878, %v5966
        %v5968 = vpop.f32.mrf.mxu0
        %v5969 = vadd.f32 %v5880, %v5968
        %5970 = vmatmul.bf16.gmra.mxu0 %v5692
        %v5971 = vpop.f32.mrf.mxu0
        %v5972 = vadd.f32 %v5883, %v5971
        %v5973 = vpop.f32.mrf.mxu0
        %v5974 = vadd.f32 %v5885, %v5973
        %5975 = vmatmul.bf16.gmra.mxu0 %v5694
        %v5976 = vpop.f32.mrf.mxu0
        %v5977 = vadd.f32 %v5888, %v5976
        %v5978 = vpop.f32.mrf.mxu0
        %v5979 = vadd.f32 %v5890, %v5978
        %5980 = vmatmul.bf16.gmra.mxu0 %v5696
        %v5981 = vpop.f32.mrf.mxu0
        %v5982 = vadd.f32 %v5893, %v5981
        %v5983 = vpop.f32.mrf.mxu0
        %v5984 = vadd.f32 %v5895, %v5983
        %5985 = vmatmul.bf16.gmra.mxu0 %v5698
        %v5986 = vpop.f32.mrf.mxu0
        %v5987 = vadd.f32 %v5898, %v5986
        %v5988 = vpop.f32.mrf.mxu0
        %v5989 = vadd.f32 %v5900, %v5988
        %5990 = vmatmul.bf16.gmra.mxu0 %v5700
        %v5991 = vpop.f32.mrf.mxu0
        %v5992 = vadd.f32 %v5903, %v5991
        %v5993 = vpop.f32.mrf.mxu0
        %v5994 = vadd.f32 %v5905, %v5993
        %5995 = vmatmul.bf16.gmra.mxu0 %v5702
        %v5996 = vpop.f32.mrf.mxu0
        %v5997 = vadd.f32 %v5908, %v5996
        %v5998 = vpop.f32.mrf.mxu0
        %v5999 = vadd.f32 %v5910, %v5998
        %6000 = vmatmul.bf16.gmra.mxu0 %v5704
        %v6001 = vpop.f32.mrf.mxu0
        %v6002 = vadd.f32 %v5913, %v6001
        %v6003 = vpop.f32.mrf.mxu0
        %v6004 = vadd.f32 %v5915, %v6003
        %6005 = vmatmul.bf16.gmra.mxu0 %v5706
        %v6006 = vpop.f32.mrf.mxu0
        %v6007 = vadd.f32 %v5918, %v6006
        %v6008 = vpop.f32.mrf.mxu0
        %v6009 = vadd.f32 %v5920, %v6008
        %6010 = vmatmul.bf16.gmra.mxu0 %v5708
        %v6011 = vpop.f32.mrf.mxu0
        %v6012 = vadd.f32 %v5923, %v6011
        %v6013 = vpop.f32.mrf.mxu0
        %v6014 = vadd.f32 %v5925, %v6013
        %6015 = vmatmul.bf16.gmra.mxu0 %v5710
        %v6016 = vpop.f32.mrf.mxu0
        %v6017 = vadd.f32 %v5928, %v6016
        %v6018 = vpop.f32.mrf.mxu0
        %v6019 = vadd.f32 %v5930, %v6018
        %6020 = vdwg.mxu0
        %v6021 = vunpack.c.l.bf16 %v561
        %v6022 = vunpack.c.l.bf16 %v562
        %v6023 = vunpack.c.l.bf16 %v563
        %v6024 = vunpack.c.l.bf16 %v564
        %v6025 = vunpack.c.l.bf16 %v565
        %v6026 = vunpack.c.l.bf16 %v566
        %v6027 = vunpack.c.l.bf16 %v567
        %v6028 = vunpack.c.l.bf16 %v568
        %v6029 = vunpack.c.l.bf16 %v569
        %v6030 = vunpack.c.l.bf16 %v570
        %v6031 = vunpack.c.l.bf16 %v571
        %v6032 = vunpack.c.l.bf16 %v572
        %v6033 = vunpack.c.l.bf16 %v573
        %v6034 = vunpack.c.l.bf16 %v574
        %v6035 = vunpack.c.l.bf16 %v575
        %v6036 = vunpack.c.l.bf16 %v576
        %v6037 = vunpack.c.l.bf16 %v577
        %v6038 = vunpack.c.l.bf16 %v578
        %v6039 = vunpack.c.l.bf16 %v579
        %v6040 = vunpack.c.l.bf16 %v580
        %v6041 = vunpack.c.l.bf16 %v581
        %v6042 = vunpack.c.l.bf16 %v582
        %v6043 = vunpack.c.l.bf16 %v583
        %v6044 = vunpack.c.l.bf16 %v584
        %v6045 = vunpack.c.l.bf16 %v585
        %v6046 = vunpack.c.l.bf16 %v586
        %v6047 = vunpack.c.l.bf16 %v587
        %v6048 = vunpack.c.l.bf16 %v588
        %v6049 = vunpack.c.l.bf16 %v589
        %v6050 = vunpack.c.l.bf16 %v590
        %v6051 = vunpack.c.l.bf16 %v591
        %v6052 = vunpack.c.l.bf16 %v592
        %v6053 = vadd.f32 %v5942, %v6021
        %v6054 = vadd.f32 %v5944, %v6022
        %v6055 = vadd.f32 %v5947, %v6023
        %v6056 = vadd.f32 %v5949, %v6024
        %v6057 = vadd.f32 %v5952, %v6025
        %v6058 = vadd.f32 %v5954, %v6026
        %v6059 = vadd.f32 %v5957, %v6027
        %v6060 = vadd.f32 %v5959, %v6028
        %v6061 = vadd.f32 %v5962, %v6029
        %v6062 = vadd.f32 %v5964, %v6030
        %v6063 = vadd.f32 %v5967, %v6031
        %v6064 = vadd.f32 %v5969, %v6032
        %v6065 = vadd.f32 %v5972, %v6033
        %v6066 = vadd.f32 %v5974, %v6034
        %v6067 = vadd.f32 %v5977, %v6035
        %v6068 = vadd.f32 %v5979, %v6036
        %v6069 = vadd.f32 %v5982, %v6037
        %v6070 = vadd.f32 %v5984, %v6038
        %v6071 = vadd.f32 %v5987, %v6039
        %v6072 = vadd.f32 %v5989, %v6040
        %v6073 = vadd.f32 %v5992, %v6041
        %v6074 = vadd.f32 %v5994, %v6042
        %v6075 = vadd.f32 %v5997, %v6043
        %v6076 = vadd.f32 %v5999, %v6044
        %v6077 = vadd.f32 %v6002, %v6045
        %v6078 = vadd.f32 %v6004, %v6046
        %v6079 = vadd.f32 %v6007, %v6047
        %v6080 = vadd.f32 %v6009, %v6048
        %v6081 = vadd.f32 %v6012, %v6049
        %v6082 = vadd.f32 %v6014, %v6050
        %v6083 = vadd.f32 %v6017, %v6051
        %v6084 = vadd.f32 %v6019, %v6052
        %v6085 = vpack.c.bf16 %v6053, %v6053
        %v6086 = vpack.c.bf16 %v6054, %v6054
        %v6087 = vpack.c.bf16 %v6055, %v6055
        %v6088 = vpack.c.bf16 %v6056, %v6056
        %v6089 = vpack.c.bf16 %v6057, %v6057
        %v6090 = vpack.c.bf16 %v6058, %v6058
        %v6091 = vpack.c.bf16 %v6059, %v6059
        %v6092 = vpack.c.bf16 %v6060, %v6060
        %v6093 = vpack.c.bf16 %v6061, %v6061
        %v6094 = vpack.c.bf16 %v6062, %v6062
        %v6095 = vpack.c.bf16 %v6063, %v6063
        %v6096 = vpack.c.bf16 %v6064, %v6064
        %v6097 = vpack.c.bf16 %v6065, %v6065
        %v6098 = vpack.c.bf16 %v6066, %v6066
        %v6099 = vpack.c.bf16 %v6067, %v6067
        %v6100 = vpack.c.bf16 %v6068, %v6068
        %v6101 = vpack.c.bf16 %v6069, %v6069
        %v6102 = vpack.c.bf16 %v6070, %v6070
        %v6103 = vpack.c.bf16 %v6071, %v6071
        %v6104 = vpack.c.bf16 %v6072, %v6072
        %v6105 = vpack.c.bf16 %v6073, %v6073
        %v6106 = vpack.c.bf16 %v6074, %v6074
        %v6107 = vpack.c.bf16 %v6075, %v6075
        %v6108 = vpack.c.bf16 %v6076, %v6076
        %v6109 = vpack.c.bf16 %v6077, %v6077
        %v6110 = vpack.c.bf16 %v6078, %v6078
        %v6111 = vpack.c.bf16 %v6079, %v6079
        %v6112 = vpack.c.bf16 %v6080, %v6080
        %v6113 = vpack.c.bf16 %v6081, %v6081
        %v6114 = vpack.c.bf16 %v6082, %v6082
        %v6115 = vpack.c.bf16 %v6083, %v6083
        %v6116 = vpack.c.bf16 %v6084, %v6084
        %6117 = vst [vmem:[%s419] sm:$0xf] %v6085
        %6118 = vst [vmem:[%s419 + $0x4] sm:$0xf] %v6086
        %6119 = vst [vmem:[%s419 + $0x8] sm:$0xf] %v6087
        %6120 = vst [vmem:[%s419 + $0xc] sm:$0xf] %v6088
        %6121 = vst [vmem:[%s419 + $0x10] sm:$0xf] %v6089
        %6122 = vst [vmem:[%s419 + $0x14] sm:$0xf] %v6090
        %6123 = vst [vmem:[%s419 + $0x18] sm:$0xf] %v6091
        %6124 = vst [vmem:[%s419 + $0x1c] sm:$0xf] %v6092
        %6125 = vst [vmem:[%s419 + $0x20] sm:$0xf] %v6093
        %6126 = vst [vmem:[%s419 + $0x24] sm:$0xf] %v6094
        %6127 = vst [vmem:[%s419 + $0x28] sm:$0xf] %v6095
        %6128 = vst [vmem:[%s419 + $0x2c] sm:$0xf] %v6096
        %6129 = vst [vmem:[%s419 + $0x30] sm:$0xf] %v6097
        %6130 = vst [vmem:[%s419 + $0x34] sm:$0xf] %v6098
        %6131 = vst [vmem:[%s419 + $0x38] sm:$0xf] %v6099
        %6132 = vst [vmem:[%s419 + $0x3c] sm:$0xf] %v6100
        %6133 = vst [vmem:[%s419 + $0x40] sm:$0xf] %v6101
        %6134 = vst [vmem:[%s419 + $0x44] sm:$0xf] %v6102
        %6135 = vst [vmem:[%s419 + $0x48] sm:$0xf] %v6103
        %6136 = vst [vmem:[%s419 + $0x4c] sm:$0xf] %v6104
        %6137 = vst [vmem:[%s419 + $0x50] sm:$0xf] %v6105
        %6138 = vst [vmem:[%s419 + $0x54] sm:$0xf] %v6106
        %6139 = vst [vmem:[%s419 + $0x58] sm:$0xf] %v6107
        %6140 = vst [vmem:[%s419 + $0x5c] sm:$0xf] %v6108
        %6141 = vst [vmem:[%s419 + $0x60] sm:$0xf] %v6109
        %6142 = vst [vmem:[%s419 + $0x64] sm:$0xf] %v6110
        %6143 = vst [vmem:[%s419 + $0x68] sm:$0xf] %v6111
        %6144 = vst [vmem:[%s419 + $0x6c] sm:$0xf] %v6112
        %6145 = vst [vmem:[%s419 + $0x70] sm:$0xf] %v6113
        %6146 = vst [vmem:[%s419 + $0x74] sm:$0xf] %v6114
        %6147 = vst [vmem:[%s419 + $0x78] sm:$0xf] %v6115
        %6148 = vst [vmem:[%s419 + $0x7c] sm:$0xf] %v6116
        %s6149 = sand.u32 %s223, 1
        %s6150 = scalar_lea.sflag [#allocation5], %s6149
        %s6151 = sand.u32 %s223, 1
        %s6152 = smul.addr %s6151, 128
        %s6153 = scalar_lea.vmem [#allocation12], %s6152
        // Predicated region
        $region73: #{tpu_custom_call.1} parent=47 // pred_check
          %p6154 = pneg %p233
        $region74: #{tpu_custom_call.1} parent=47 // pred_check_branch
          %6156 = sbr.rel (%p6154) target = $region76
        $region75: #{tpu_custom_call.1} parent=47 // pred_region
          %6158 = vsyncadd %s6150, 0
          %s6159 = smul.addr %s30, 32
          %s6160 = smul.addr %s6159, 4
          %s6161 = scalar_lea.hbm %s7, %s6160
          %s6162 = sshll.u32 %s6153, 4
          %s6163 = int_to_ptr.vmem [resolvable:$true] %s6162
          %s6164 = sshll.u32 %s6161, 4
          %s6165 = int_to_ptr.hbm [resolvable:$true] %s6164
          %6170 = dma.vmem_to_hbm [thread:$0]  %s6163, 2048, %s6165, %s6150, 64, 64, 4
        $region76: #{tpu_custom_call.1} parent=47 // pred_fallthru
          _
      $region48: #{tpu_custom_call.1} parent=5 // pred_fallthru
        _
      %p6171 = scmp.le.s32.totalorder 2, %s21
      // Predicated region
      $region77: #{tpu_custom_call.1} parent=5 // pred_check
        %p6172 = pneg %p6171
      $region78: #{tpu_custom_call.1} parent=5 // pred_check_branch
        %6174 = sbr.rel (%p6172) target = $region80
      $region79: #{tpu_custom_call.1} parent=5 // pred_region
        %s6175 = ssub.s32 %s21, 2
        // Predicated region
        $region81: #{tpu_custom_call.1} parent=79 // pred_check
          %p6176 = pneg %p239
        $region82: #{tpu_custom_call.1} parent=79 // pred_check_branch
          %6178 = sbr.rel (%p6176) target = $region84
        $region83: #{tpu_custom_call.1} parent=79 // pred_region
          %s6179 = sand.u32 %s224, 1
          %s6180 = scalar_lea.sflag [#allocation5], %s6179
          %s6181 = sand.u32 %s224, 1
          %s6182 = smul.addr %s6181, 128
          %s6183 = scalar_lea.vmem [#allocation12], %s6182
          %6185 = dma.done %s6180, 2048
        $region84: #{tpu_custom_call.1} parent=79 // pred_fallthru
          _
      $region80: #{tpu_custom_call.1} parent=5 // pred_fallthru
        _
    $region6: #{tpu_custom_call.1} parent=1 // loop_footer
      %s25 = sadd.s32 1, %s21
    $region7: #{tpu_custom_call.1} parent=1 // loop_footer_branch
      %20 = sbr.rel target = $region3
    $region8: #{tpu_custom_call.1} parent=1 // loop_exit
      _
    %6186 = vsyncpa [#allocation4], 1
    %s6187 = scalar_lea.sflag [#allocation4], 1
    %6188 = vsyncpa %s6187, 1
    %6189 = vsyncpa [#allocation7], 1
    %6190 = vsyncpa [#allocation10], 1
    %6191 = vsyncpa [#allocation5], 1
    %s6192 = scalar_lea.sflag [#allocation5], 1
    %6193 = vsyncpa %s6192, 1

</llo_original>
